<compile_context>
chip_gen: v7x
topology: tpu7x:2x2x1
jax: 0.10.0
libtpu: 0.0.40
codegen_flags: <defaults>
</compile_context>

<pallas_src>
import math
from functools import partial

import jax
import jax.numpy as jnp
from jax.experimental import pallas as pl
from jax.experimental.pallas import tpu as pltpu

LN_EPS = 1e-5


# ----------------------------- small math helpers (used inside kernels) -----

def _gelu_exact(x):
    return 0.5 * x * (1.0 + jax.lax.erf(x * (1.0 / math.sqrt(2.0))))


def _layernorm(x, eps=LN_EPS):
    mu = jnp.mean(x, axis=-1, keepdims=True)
    var = jnp.mean(jnp.square(x - mu), axis=-1, keepdims=True)
    return (x - mu) * jax.lax.rsqrt(var + eps)


def _recip(x):
    # EUP approximate reciprocal when available; exact divide otherwise.
    if hasattr(pl, "reciprocal"):
        return pl.reciprocal(x, approx=True)
    return 1.0 / x


def _row_tile(n):
    for t in (512, 256, 128, 64, 32, 16, 8):
        if n % t == 0:
            return t
    return n          # fall back to the full (untiled) dimension


def _lane_tile(n):
    for t in (512, 256, 128):
        if n % t == 0:
            return t
    return n


def _const_spec(a):
    # Full-array block, same block for every grid step (weights / small params).
    # TODO(synk): on VMEM-tight parts (v7x, 64 MiB) these could additionally use
    # pipeline_mode=pl.Buffered(1) to avoid double-buffering never-changing weights.
    nd = a.ndim
    return pl.BlockSpec(a.shape, lambda *_: (0,) * nd)


_VMEM_LIMIT_CACHE = None


def _vmem_limit_bytes():
    global _VMEM_LIMIT_CACHE
    if _VMEM_LIMIT_CACHE is None:
        cap = 128 * 1024 * 1024
        try:
            info = pltpu.get_tpu_info()
            cap = int(getattr(info, "vmem_capacity_bytes", cap))
        except Exception:
            pass
        # ~96 MiB scoped on 128 MiB parts (v5e/v6e), ~40 MiB on 64 MiB parts (v7x)
        _VMEM_LIMIT_CACHE = (96 * 1024 * 1024 if cap >= 100 * 1024 * 1024
                             else 40 * 1024 * 1024)
    return _VMEM_LIMIT_CACHE


def _mosaic(sem):
    return pltpu.CompilerParams(dimension_semantics=sem,
                                vmem_limit_bytes=_vmem_limit_bytes())


# ---------------------------------------------------------------- kernels ---

def embed_kernel(e_ref, pe_ref, w_ref, b_ref, o_ref):
    # content_emb_proj (Linear) + ScaledPositionalEncoding (x + alpha * pe)
    o_ref[...] = (
        jnp.dot(e_ref[...].astype(jnp.bfloat16), w_ref[...],
                preferred_element_type=jnp.float32)
        + b_ref[...] + pe_ref[...]
    )


def qkv_kernel(x_ref, scale_ref, shift_ref, wqkv_ref, bqkv_ref,
               q_ref, k_ref, v_ref):
    # AdaLayerNorm (scale/shift precomputed) + packed q/k/v projection (one dot).
    x = x_ref[...]                                            # (TL, C) f32
    xln = _layernorm(x) * (1.0 + scale_ref[...]) + shift_ref[...]
    xb = xln.astype(jnp.bfloat16)
    qkv = jnp.dot(xb, wqkv_ref[...],
                  preferred_element_type=jnp.float32) + bqkv_ref[...]   # (TL, 3C)
    C = q_ref.shape[-1]
    q_ref[...] = qkv[:, :C].astype(jnp.bfloat16)
    k_ref[...] = qkv[:, C:2 * C].astype(jnp.bfloat16)
    v_ref[...] = qkv[:, 2 * C:].astype(jnp.bfloat16)


def flash_attn_kernel(q_ref, k_ref, v_ref, o_ref, m_ref, l_ref, acc_ref,
                      *, n_head, sm_scale):
    # Head-fused online-softmax attention: all heads of one (batch, q-tile) are
    # processed per kv-tile step; heads are value-sliced from the (TQ, C) block.
    # mask=None path of FullAttention (the all-False mask is a no-op).
    ki = pl.program_id(2)

    @pl.when(ki == 0)
    def _init():
        m_ref[...] = jnp.full(m_ref.shape, -jnp.inf, jnp.float32)
        l_ref[...] = jnp.zeros(l_ref.shape, jnp.float32)
        acc_ref[...] = jnp.zeros(acc_ref.shape, jnp.float32)

    q = q_ref[...]                                            # (TQ, C) bf16
    k = k_ref[...]                                            # (TK, C) bf16
    v = v_ref[...]                                            # (TK, C) bf16
    tq, c = q.shape
    dh = c // n_head

    m_all = m_ref[...]                                        # (TQ, C) f32
    l_all = l_ref[...]
    acc_all = acc_ref[...]

    new_m, new_l, new_acc = [], [], []
    for h in range(n_head):                                   # unrolled at trace time
        lo = h * dh
        qh = q[:, lo:lo + dh]
        kh = k[:, lo:lo + dh]
        vh = v[:, lo:lo + dh]
        s = jax.lax.dot_general(qh, kh, (((1,), (1,)), ((), ())),
                                preferred_element_type=jnp.float32) * sm_scale
        m_prev = m_all[:, lo:lo + 1]                          # (TQ, 1)
        l_prev = l_all[:, lo:lo + 1]
        m_new = jnp.maximum(m_prev, jnp.max(s, axis=-1, keepdims=True))
        alpha = jnp.exp(m_prev - m_new)
        p = jnp.exp(s - m_new)
        l_new = alpha * l_prev + jnp.sum(p, axis=-1, keepdims=True)
        acc_h = alpha * acc_all[:, lo:lo + dh] + jnp.dot(
            p.astype(vh.dtype), vh, preferred_element_type=jnp.float32)
        new_m.append(jnp.broadcast_to(m_new, (tq, dh)))
        new_l.append(jnp.broadcast_to(l_new, (tq, dh)))
        new_acc.append(acc_h)

    # full-width (lane-dense) scratch writes
    m_ref[...] = jnp.concatenate(new_m, axis=1)
    l_ref[...] = jnp.concatenate(new_l, axis=1)
    acc_ref[...] = jnp.concatenate(new_acc, axis=1)

    @pl.when(ki == pl.num_programs(2) - 1)
    def _finalize():
        o_ref[...] = (acc_ref[...] * _recip(l_ref[...])).astype(o_ref.dtype)


def post_kernel(x_ref, y_ref, cond_ref,
                wo_ref, bo_ref, wc_ref, bc_ref, ln2w_ref, ln2b_ref,
                w1_ref, b1_ref, w2_ref, b2_ref, o_ref):
    # attention output projection + residual + fused cross branch + MLP.
    x = x_ref[...]                                            # (TL, C) f32
    att = jnp.dot(y_ref[...], wo_ref[...],
                  preferred_element_type=jnp.float32) + bo_ref[...]
    cross = jnp.dot(cond_ref[...].astype(jnp.bfloat16), wc_ref[...],
                    preferred_element_type=jnp.float32) + bc_ref[...]
    x = x + att + cross
    xn2 = _layernorm(x) * ln2w_ref[...] + ln2b_ref[...]
    h1 = jnp.dot(xn2.astype(jnp.bfloat16), w1_ref[...],
                 preferred_element_type=jnp.float32) + b1_ref[...]
    h1 = _gelu_exact(h1)
    x = x + jnp.dot(h1.astype(jnp.bfloat16), w2_ref[...],
                    preferred_element_type=jnp.float32) + b2_ref[...]
    o_ref[...] = x


def logits_kernel(x_ref, lnw_ref, lnb_ref, w_ref, b_ref, o_ref):
    # to_logits: LayerNorm(affine) + Linear, emitted transposed as (num_cls-1, L)
    # so L is the lane dim (lane-dense stores) and the wrapper needs no transpose.
    xn = _layernorm(x_ref[...]) * lnw_ref[...] + lnb_ref[...]      # (TL, C)
    lt = jax.lax.dot_general(w_ref[...], xn.astype(jnp.bfloat16),
                             (((1,), (1,)), ((), ())),
                             preferred_element_type=jnp.float32)   # (K, TL)
    o_ref[...] = lt + b_ref[...]


# ------------------------------------------------------------ pallas glue ---

def run_embed(emb, w, b, pe_scaled):
    B, L, E = emb.shape
    C = w.shape[1]
    TL = _row_tile(L)
    return pl.pallas_call(
        embed_kernel,
        out_shape=jax.ShapeDtypeStruct((B, L, C), jnp.float32),
        grid=(B, L // TL),
        in_specs=[pl.BlockSpec((None, TL, E), lambda b_, i: (b_, i, 0)),
                  pl.BlockSpec((TL, C), lambda b_, i: (i, 0)),
                  _const_spec(w), _const_spec(b)],
        out_specs=pl.BlockSpec((None, TL, C), lambda b_, i: (b_, i, 0)),
        compiler_params=_mosaic(("parallel", "parallel")),
    )(emb, pe_scaled, w, b)


def run_qkv(x, scale, shift, bp):
    B, L, C = x.shape
    TL = _row_tile(L)
    act_spec = pl.BlockSpec((None, TL, C), lambda b_, i: (b_, i, 0))
    ss_spec = pl.BlockSpec((None, 1, C), lambda b_, i: (b_, 0, 0))
    out_sd = jax.ShapeDtypeStruct((B, L, C), jnp.bfloat16)
    return pl.pallas_call(
        qkv_kernel,
        out_shape=(out_sd, out_sd, out_sd),
        grid=(B, L // TL),
        in_specs=[act_spec, ss_spec, ss_spec,
                  _const_spec(bp['wqkv']), _const_spec(bp['bqkv'])],
        out_specs=(act_spec, act_spec, act_spec),
        compiler_params=_mosaic(("parallel", "parallel")),
    )(x, scale, shift, bp['wqkv'], bp['bqkv'])


def run_flash_attention(q, k, v, n_head):
    B, L, C = q.shape
    TQ = _row_tile(L)
    TK = _row_tile(L)
    sm_scale = 1.0 / math.sqrt(C // n_head)
    q_spec = pl.BlockSpec((None, TQ, C), lambda b_, qi, ki: (b_, qi, 0))
    kv_spec = pl.BlockSpec((None, TK, C), lambda b_, qi, ki: (b_, ki, 0))
    return pl.pallas_call(
        partial(flash_attn_kernel, n_head=n_head, sm_scale=sm_scale),
        out_shape=jax.ShapeDtypeStruct((B, L, C), jnp.bfloat16),
        grid=(B, L // TQ, L // TK),
        in_specs=[q_spec, kv_spec, kv_spec],
        out_specs=q_spec,
        scratch_shapes=[pltpu.VMEM((TQ, C), jnp.float32),
                        pltpu.VMEM((TQ, C), jnp.float32),
                        pltpu.VMEM((TQ, C), jnp.float32)],
        compiler_params=_mosaic(("parallel", "parallel", "arbitrary")),
    )(q, k, v)


def run_post(x, y, cond, bp):
    B, L, C = x.shape
    Dc = cond.shape[-1]
    TL = _row_tile(L)
    act_spec = pl.BlockSpec((None, TL, C), lambda b_, i: (b_, i, 0))
    cond_spec = pl.BlockSpec((None, TL, Dc), lambda b_, i: (b_, i, 0))
    weights = [bp['wo'], bp['bo'], bp['wc'], bp['bc'],
               bp['ln2_w'], bp['ln2_b'], bp['w1'], bp['b1'], bp['w2'], bp['b2']]
    return pl.pallas_call(
        post_kernel,
        out_shape=jax.ShapeDtypeStruct((B, L, C), jnp.float32),
        grid=(B, L // TL),
        in_specs=[act_spec, act_spec, cond_spec] + [_const_spec(w) for w in weights],
        out_specs=act_spec,
        input_output_aliases={0: 0},          # update the residual stream in place
        compiler_params=_mosaic(("parallel", "parallel")),
    )(x, y, cond, *weights)


def run_logits(x, lnw, lnb, w, b_col):
    B, L, C = x.shape
    K = w.shape[0]
    TL = _lane_tile(L)                        # L is the lane dim of the output
    return pl.pallas_call(
        logits_kernel,
        out_shape=jax.ShapeDtypeStruct((B, K, L), jnp.float32),
        grid=(B, L // TL),
        in_specs=[pl.BlockSpec((None, TL, C), lambda b_, i: (b_, i, 0)),
                  _const_spec(lnw), _const_spec(lnb),
                  _const_spec(w), _const_spec(b_col)],
        out_specs=pl.BlockSpec((None, K, TL), lambda b_, i: (b_, 0, i)),
        compiler_params=_mosaic(("parallel", "parallel")),
    )(x, lnw, lnb, w, b_col)


# ------------------------------------------------- plain-JAX glue / params --

def sinusoidal_timestep_emb(t, num_steps, dim, rescale_steps=4000.0):
    # SinusoidalPosEmb.forward
    x = t.astype(jnp.float32) / float(num_steps) * rescale_steps
    half = dim // 2
    freqs = jnp.exp(jnp.arange(half, dtype=jnp.float32)
                    * -(math.log(10000.0) / (half - 1)))
    emb = x[:, None] * freqs[None, :]
    return jnp.concatenate([jnp.sin(emb), jnp.cos(emb)], axis=-1)   # (B, dim)


def espnet_positional_encoding(length, d_model):
    # table for ScaledPositionalEncoding (ESPnet): x + alpha * pe
    position = jnp.arange(length, dtype=jnp.float32)[:, None]
    div_term = jnp.exp(jnp.arange(0, d_model, 2, dtype=jnp.float32)
                       * -(math.log(10000.0) / d_model))
    pe = jnp.zeros((length, d_model), jnp.float32)
    pe = pe.at[:, 0::2].set(jnp.sin(position * div_term))
    pe = pe.at[:, 1::2].set(jnp.cos(position * div_term))
    return pe


def init_params(key, *, num_cls, emb_in, n_embd, n_head, n_layer,
                condition_dim, mlp_hidden_times, seq_len):
    del n_head
    keys = iter(jax.random.split(key, 8 + 8 * n_layer))

    def nrm(shape, dtype=jnp.float32):
        return (0.02 * jax.random.normal(next(keys), shape,
                                         dtype=jnp.float32)).astype(dtype)

    def zeros(shape):
        return jnp.zeros(shape, jnp.float32)

    C = n_embd
    hidden = mlp_hidden_times * n_embd
    params = {
        # _init_weights overwrites the pretrained codebook table with N(0, 0.02)
        'content_emb': nrm((num_cls, emb_in)),
        'ctx_emb': nrm((2, emb_in)),
        'proj_w': nrm((emb_in, C), jnp.bfloat16),
        'proj_b': zeros((1, C)),
        'alpha': jnp.float32(1.0),             # ScaledPositionalEncoding alpha init
        'pe': espnet_positional_encoding(seq_len, C),
        # hoisted AdaLayerNorm timestep-MLP weights (stacked over layers, tiny)
        'ada_w': nrm((n_layer, C, 2 * C)),
        'ada_b': zeros((n_layer, 1, 2 * C)),
        'out_ln_w': jnp.ones((1, C), jnp.float32),
        'out_ln_b': zeros((1, C)),
        'out_w': nrm((num_cls - 1, C), jnp.bfloat16),   # torch layout (out, in)
        'out_b': zeros((num_cls - 1, 1)),
        'blocks': [],
    }
    for _ in range(n_layer):
        params['blocks'].append({
            # packed q/k/v projection: columns [0:C)=q, [C:2C)=k, [2C:3C)=v
            'wqkv': nrm((C, 3 * C), jnp.bfloat16), 'bqkv': zeros((1, 3 * C)),
            'wo': nrm((C, C), jnp.bfloat16), 'bo': zeros((1, C)),
            # cross branch attn2: Linear(condition_dim, n_embd)
            'wc': nrm((condition_dim, C), jnp.bfloat16), 'bc': zeros((1, C)),
            'ln2_w': jnp.ones((1, C), jnp.float32), 'ln2_b': zeros((1, C)),
            'w1': nrm((C, hidden), jnp.bfloat16), 'b1': zeros((1, hidden)),
            'w2': nrm((hidden, C), jnp.bfloat16), 'b2': zeros((1, C)),
        })
    return params


def diffusion_transformer_forward(params, x_t, context_indicator, cond_emb, t,
                                  mask=None, *, n_head, diffusion_step):
    # TODO(synk): non-None attention `mask` not implemented; the default call path
    # (mask=None) builds an all-False mask in torch, which is a no-op.
    B, L = x_t.shape
    C = params['pe'].shape[-1]

    # embedding gathers (content + context indicator) -- plain-JAX glue
    emb = jnp.take(params['content_emb'], x_t, axis=0)
    emb = emb + jnp.take(params['ctx_emb'], context_indicator, axis=0)

    # content_emb_proj + ScaledPositionalEncoding
    x = run_embed(emb, params['proj_w'], params['proj_b'],
                  params['alpha'] * params['pe'])

    # hoisted AdaLayerNorm timestep path: silu(sinusoidal(t)) @ Wa + ba per layer
    # (M=B tiny matmul -> plain JAX, removes a weight DMA per per-layer step)
    tsin = sinusoidal_timestep_emb(t, diffusion_step, C)               # (B, C)
    hsil = tsin * jax.nn.sigmoid(tsin)                                 # SiLU
    ada = jnp.einsum('bc,ncd->nbd', hsil, params['ada_w']) + params['ada_b']
    scale_all = ada[:, :, :C][:, :, None, :]                           # (NL, B, 1, C)
    shift_all = ada[:, :, C:][:, :, None, :]

    for n, bp in enumerate(params['blocks']):
        q, k, v = run_qkv(x, scale_all[n], shift_all[n], bp)  # (B,L,C) bf16 each
        y = run_flash_attention(q, k, v, n_head)              # (B,L,C) bf16
        x = run_post(x, y, cond_emb, bp)                      # cross fused inside

    # logits come out already transposed as (B, num_cls-1, L) == 'b c l'
    return run_logits(x, params['out_ln_w'], params['out_ln_b'],
                      params['out_w'], params['out_b'])


if __name__ == "__main__":
    B, L = 2, 8
    n_embd, n_head, n_layer = 32, 4, 2
    condition_dim = 16
    mlp_hidden_times = 4
    num_cls = 9
    num_groups, entry_dim = 2, 8             # content emb dim = 16
    emb_in = num_groups * entry_dim
    diffusion_step = 100

    key = jax.random.PRNGKey(0)
    kp, kx, kc, kcond, kt = jax.random.split(key, 5)
    params = init_params(kp, num_cls=num_cls, emb_in=emb_in, n_embd=n_embd,
                         n_head=n_head, n_layer=n_layer,
                         condition_dim=condition_dim,
                         mlp_hidden_times=mlp_hidden_times, seq_len=L)

    x_t = jax.random.randint(kx, (B, L), 0, num_cls)
    context_indicator = jax.random.randint(kc, (B, L), 0, 2)
    cond_emb = jax.random.normal(kcond, (B, L, condition_dim), dtype=jnp.float32)
    t = jax.random.randint(kt, (B,), 0, diffusion_step)

    fwd = jax.jit(partial(diffusion_transformer_forward,
                          n_head=n_head, diffusion_step=diffusion_step))
    out = jax.block_until_ready(fwd(params, x_t, context_indicator, cond_emb, t))
    assert out.shape == (B, num_cls - 1, L) and out.dtype == jnp.float32
    assert bool(jnp.all(jnp.isfinite(out)))
    print("KERNEL_OK")
</pallas_src>

<mosaic_0001>
module attributes {stable_mosaic.version = 11 : i64} {
  func.func @embed_kernel(%arg0: i32, %arg1: i32, %arg2: memref<1x8x16xf32, #tpu.memory_space<vmem>>, %arg3: memref<8x32xf32, #tpu.memory_space<vmem>>, %arg4: memref<16x32xbf16, #tpu.memory_space<vmem>>, %arg5: memref<1x32xf32, #tpu.memory_space<vmem>>, %arg6: memref<1x8x32xf32, #tpu.memory_space<vmem>>) attributes {dimension_semantics = [#tpu.dimension_semantics<parallel>, #tpu.dimension_semantics<parallel>], iteration_bounds = array<i64: 2, 1>, scalar_prefetch = 0 : i64, scratch_operands = 0 : i64, tpu.core_type = #tpu.core_type<tc>, window_params = [{transform_indices = @transform_0, window_bounds = array<i64: 1, 8, 16>}, {transform_indices = @transform_1, window_bounds = array<i64: 8, 32>}, {pipeline_mode = #tpu.pipeline_mode<synchronous>, transform_indices = @transform_2, window_bounds = array<i64: 16, 32>}, {pipeline_mode = #tpu.pipeline_mode<synchronous>, transform_indices = @transform_3, window_bounds = array<i64: 1, 32>}, {transform_indices = @transform_4, window_bounds = array<i64: 1, 8, 32>}]} {
    %c0 = arith.constant 0 : index
    %c0_0 = arith.constant 0 : index
    %c0_1 = arith.constant 0 : index
    %0 = vector.load %arg2[%c0, %c0_0, %c0_1] : memref<1x8x16xf32, #tpu.memory_space<vmem>>, vector<1x8x16xf32>
    %1 = vector.shape_cast %0 : vector<1x8x16xf32> to vector<8x16xf32>
    %2 = arith.truncf %1 : vector<8x16xf32> to vector<8x16xbf16>
    %c0_2 = arith.constant 0 : index
    %c0_3 = arith.constant 0 : index
    %3 = vector.load %arg4[%c0_2, %c0_3] : memref<16x32xbf16, #tpu.memory_space<vmem>>, vector<16x32xbf16>
    %cst = arith.constant dense<0.000000e+00> : vector<8x32xf32>
    %4 = tpu.matmul %2, %3, %cst {dimension_numbers = #tpu.dot_dimension_numbers<[1], [0], [0], [1], [0, 0, 1, 1], [], []>} : vector<8x16xbf16>, vector<16x32xbf16>, vector<8x32xf32> -> vector<8x32xf32>
    %c0_4 = arith.constant 0 : index
    %c0_5 = arith.constant 0 : index
    %5 = vector.load %arg5[%c0_4, %c0_5] : memref<1x32xf32, #tpu.memory_space<vmem>>, vector<1x32xf32>
    %6 = vector.broadcast %5 : vector<1x32xf32> to vector<8x32xf32>
    %7 = arith.addf %4, %6 : vector<8x32xf32>
    %c0_6 = arith.constant 0 : index
    %c0_7 = arith.constant 0 : index
    %8 = vector.load %arg3[%c0_6, %c0_7] : memref<8x32xf32, #tpu.memory_space<vmem>>, vector<8x32xf32>
    %9 = arith.addf %7, %8 : vector<8x32xf32>
    %c0_8 = arith.constant 0 : index
    %c0_9 = arith.constant 0 : index
    %c0_10 = arith.constant 0 : index
    %10 = vector.load %arg6[%c0_8, %c0_9, %c0_10] : memref<1x8x32xf32, #tpu.memory_space<vmem>>, vector<1x8x32xf32>
    %11 = vector.shape_cast %10 : vector<1x8x32xf32> to vector<8x32xf32>
    %12 = vector.shape_cast %9 : vector<8x32xf32> to vector<1x8x32xf32>
    tpu.vector_store %arg6[%c0_8, %c0_9, %c0_10], %12 {strides = array<i32>} : memref<1x8x32xf32, #tpu.memory_space<vmem>>, vector<1x8x32xf32>,
    return
  }
  func.func @transform_0(%arg0: i32, %arg1: i32) -> (i32, i32, i32) {
    %c0_i32 = arith.constant 0 : i32
    %c0_i32_0 = arith.constant 0 : i32
    return %arg0, %arg1, %c0_i32 : i32, i32, i32
  }
  func.func @transform_1(%arg0: i32, %arg1: i32) -> (i32, i32) {
    %c0_i32 = arith.constant 0 : i32
    %c0_i32_0 = arith.constant 0 : i32
    return %arg1, %c0_i32 : i32, i32
  }
  func.func @transform_2(%arg0: i32, %arg1: i32) -> (i32, i32) {
    %c0_i32 = arith.constant 0 : i32
    %c0_i32_0 = arith.constant 0 : i32
    %c0_i32_1 = arith.constant 0 : i32
    return %c0_i32, %c0_i32_0 : i32, i32
  }
  func.func @transform_3(%arg0: i32, %arg1: i32) -> (i32, i32) {
    %c0_i32 = arith.constant 0 : i32
    %c0_i32_0 = arith.constant 0 : i32
    %c0_i32_1 = arith.constant 0 : i32
    return %c0_i32, %c0_i32_0 : i32, i32
  }
  func.func @transform_4(%arg0: i32, %arg1: i32) -> (i32, i32, i32) {
    %c0_i32 = arith.constant 0 : i32
    %c0_i32_0 = arith.constant 0 : i32
    return %arg0, %arg1, %c0_i32 : i32, i32, i32
  }
}

module attributes {stable_mosaic.version = 11 : i64} {
  func.func @qkv_kernel(%arg0: i32, %arg1: i32, %arg2: memref<1x8x32xf32, #tpu.memory_space<vmem>>, %arg3: memref<1x1x32xf32, #tpu.memory_space<vmem>>, %arg4: memref<1x1x32xf32, #tpu.memory_space<vmem>>, %arg5: memref<32x96xbf16, #tpu.memory_space<vmem>>, %arg6: memref<1x96xf32, #tpu.memory_space<vmem>>, %arg7: memref<1x8x32xbf16, #tpu.memory_space<vmem>>, %arg8: memref<1x8x32xbf16, #tpu.memory_space<vmem>>, %arg9: memref<1x8x32xbf16, #tpu.memory_space<vmem>>) attributes {dimension_semantics = [#tpu.dimension_semantics<parallel>, #tpu.dimension_semantics<parallel>], iteration_bounds = array<i64: 2, 1>, scalar_prefetch = 0 : i64, scratch_operands = 0 : i64, tpu.core_type = #tpu.core_type<tc>, window_params = [{transform_indices = @transform_0, window_bounds = array<i64: 1, 8, 32>}, {transform_indices = @transform_1, window_bounds = array<i64: 1, 1, 32>}, {transform_indices = @transform_2, window_bounds = array<i64: 1, 1, 32>}, {pipeline_mode = #tpu.pipeline_mode<synchronous>, transform_indices = @transform_3, window_bounds = array<i64: 32, 96>}, {pipeline_mode = #tpu.pipeline_mode<synchronous>, transform_indices = @transform_4, window_bounds = array<i64: 1, 96>}, {transform_indices = @transform_5, window_bounds = array<i64: 1, 8, 32>}, {transform_indices = @transform_6, window_bounds = array<i64: 1, 8, 32>}, {transform_indices = @transform_7, window_bounds = array<i64: 1, 8, 32>}]} {
    %c0 = arith.constant 0 : index
    %c0_0 = arith.constant 0 : index
    %c0_1 = arith.constant 0 : index
    %0 = vector.load %arg2[%c0, %c0_0, %c0_1] : memref<1x8x32xf32, #tpu.memory_space<vmem>>, vector<1x8x32xf32>
    %1 = vector.shape_cast %0 : vector<1x8x32xf32> to vector<8x32xf32>
    %cst = arith.constant dense<0.000000e+00> : vector<8xf32>
    %2 = vector.multi_reduction <add>, %1, %cst [1] : vector<8x32xf32> to vector<8xf32>
    %3 = vector.shape_cast %2 : vector<8xf32> to vector<8x1xf32>
    %cst_2 = arith.constant 3.200000e+01 : f32
    %4 = vector.broadcast %cst_2 : f32 to vector<8x1xf32>
    %5 = arith.divf %3, %4 : vector<8x1xf32>
    %6 = vector.broadcast %5 : vector<8x1xf32> to vector<8x32xf32>
    %7 = arith.subf %1, %6 : vector<8x32xf32>
    %8 = arith.mulf %7, %7 : vector<8x32xf32>
    %cst_3 = arith.constant dense<0.000000e+00> : vector<8xf32>
    %9 = vector.multi_reduction <add>, %8, %cst_3 [1] : vector<8x32xf32> to vector<8xf32>
    %10 = vector.shape_cast %9 : vector<8xf32> to vector<8x1xf32>
    %cst_4 = arith.constant 3.200000e+01 : f32
    %11 = vector.broadcast %cst_4 : f32 to vector<8x1xf32>
    %12 = arith.divf %10, %11 : vector<8x1xf32>
    %13 = vector.broadcast %5 : vector<8x1xf32> to vector<8x32xf32>
    %14 = arith.subf %1, %13 : vector<8x32xf32>
    %cst_5 = arith.constant 9.99999974E-6 : f32
    %15 = vector.broadcast %cst_5 : f32 to vector<8x1xf32>
    %16 = arith.addf %12, %15 : vector<8x1xf32>
    %17 = math.rsqrt %16 : vector<8x1xf32>
    %18 = vector.broadcast %17 : vector<8x1xf32> to vector<8x32xf32>
    %19 = arith.mulf %14, %18 : vector<8x32xf32>
    %c0_6 = arith.constant 0 : index
    %c0_7 = arith.constant 0 : index
    %c0_8 = arith.constant 0 : index
    %20 = vector.load %arg3[%c0_6, %c0_7, %c0_8] : memref<1x1x32xf32, #tpu.memory_space<vmem>>, vector<1x1x32xf32>
    %21 = vector.shape_cast %20 : vector<1x1x32xf32> to vector<1x32xf32>
    %cst_9 = arith.constant 1.000000e+00 : f32
    %22 = vector.broadcast %cst_9 : f32 to vector<1x32xf32>
    %23 = arith.addf %22, %21 : vector<1x32xf32>
    %24 = vector.broadcast %23 : vector<1x32xf32> to vector<8x32xf32>
    %25 = arith.mulf %19, %24 : vector<8x32xf32>
    %c0_10 = arith.constant 0 : index
    %c0_11 = arith.constant 0 : index
    %c0_12 = arith.constant 0 : index
    %26 = vector.load %arg4[%c0_10, %c0_11, %c0_12] : memref<1x1x32xf32, #tpu.memory_space<vmem>>, vector<1x1x32xf32>
    %27 = vector.shape_cast %26 : vector<1x1x32xf32> to vector<1x32xf32>
    %28 = vector.broadcast %27 : vector<1x32xf32> to vector<8x32xf32>
    %29 = arith.addf %25, %28 : vector<8x32xf32>
    %30 = arith.truncf %29 : vector<8x32xf32> to vector<8x32xbf16>
    %c0_13 = arith.constant 0 : index
    %c0_14 = arith.constant 0 : index
    %31 = vector.load %arg5[%c0_13, %c0_14] : memref<32x96xbf16, #tpu.memory_space<vmem>>, vector<32x96xbf16>
    %cst_15 = arith.constant dense<0.000000e+00> : vector<8x96xf32>
    %32 = tpu.matmul %30, %31, %cst_15 {dimension_numbers = #tpu.dot_dimension_numbers<[1], [0], [0], [1], [0, 0, 1, 1], [], []>} : vector<8x32xbf16>, vector<32x96xbf16>, vector<8x96xf32> -> vector<8x96xf32>
    %c0_16 = arith.constant 0 : index
    %c0_17 = arith.constant 0 : index
    %33 = vector.load %arg6[%c0_16, %c0_17] : memref<1x96xf32, #tpu.memory_space<vmem>>, vector<1x96xf32>
    %34 = vector.broadcast %33 : vector<1x96xf32> to vector<8x96xf32>
    %35 = arith.addf %32, %34 : vector<8x96xf32>
    %36 = vector.extract_strided_slice %35 {offsets = [0, 0], sizes = [8, 32], strides = [1, 1]} : vector<8x96xf32> to vector<8x32xf32>
    %37 = arith.truncf %36 : vector<8x32xf32> to vector<8x32xbf16>
    %c0_18 = arith.constant 0 : index
    %c0_19 = arith.constant 0 : index
    %c0_20 = arith.constant 0 : index
    %38 = vector.load %arg7[%c0_18, %c0_19, %c0_20] : memref<1x8x32xbf16, #tpu.memory_space<vmem>>, vector<1x8x32xbf16>
    %39 = vector.shape_cast %38 : vector<1x8x32xbf16> to vector<8x32xbf16>
    %40 = vector.shape_cast %37 : vector<8x32xbf16> to vector<1x8x32xbf16>
    tpu.vector_store %arg7[%c0_18, %c0_19, %c0_20], %40 {strides = array<i32>} : memref<1x8x32xbf16, #tpu.memory_space<vmem>>, vector<1x8x32xbf16>,
    %41 = vector.extract_strided_slice %35 {offsets = [0, 32], sizes = [8, 32], strides = [1, 1]} : vector<8x96xf32> to vector<8x32xf32>
    %42 = arith.truncf %41 : vector<8x32xf32> to vector<8x32xbf16>
    %c0_21 = arith.constant 0 : index
    %c0_22 = arith.constant 0 : index
    %c0_23 = arith.constant 0 : index
    %43 = vector.load %arg8[%c0_21, %c0_22, %c0_23] : memref<1x8x32xbf16, #tpu.memory_space<vmem>>, vector<1x8x32xbf16>
    %44 = vector.shape_cast %43 : vector<1x8x32xbf16> to vector<8x32xbf16>
    %45 = vector.shape_cast %42 : vector<8x32xbf16> to vector<1x8x32xbf16>
    tpu.vector_store %arg8[%c0_21, %c0_22, %c0_23], %45 {strides = array<i32>} : memref<1x8x32xbf16, #tpu.memory_space<vmem>>, vector<1x8x32xbf16>,
    %46 = vector.extract_strided_slice %35 {offsets = [0, 64], sizes = [8, 32], strides = [1, 1]} : vector<8x96xf32> to vector<8x32xf32>
    %47 = arith.truncf %46 : vector<8x32xf32> to vector<8x32xbf16>
    %c0_24 = arith.constant 0 : index
    %c0_25 = arith.constant 0 : index
    %c0_26 = arith.constant 0 : index
    %48 = vector.load %arg9[%c0_24, %c0_25, %c0_26] : memref<1x8x32xbf16, #tpu.memory_space<vmem>>, vector<1x8x32xbf16>
    %49 = vector.shape_cast %48 : vector<1x8x32xbf16> to vector<8x32xbf16>
    %50 = vector.shape_cast %47 : vector<8x32xbf16> to vector<1x8x32xbf16>
    tpu.vector_store %arg9[%c0_24, %c0_25, %c0_26], %50 {strides = array<i32>} : memref<1x8x32xbf16, #tpu.memory_space<vmem>>, vector<1x8x32xbf16>,
    return
  }
  func.func @transform_0(%arg0: i32, %arg1: i32) -> (i32, i32, i32) {
    %c0_i32 = arith.constant 0 : i32
    %c0_i32_0 = arith.constant 0 : i32
    return %arg0, %arg1, %c0_i32 : i32, i32, i32
  }
  func.func @transform_1(%arg0: i32, %arg1: i32) -> (i32, i32, i32) {
    %c0_i32 = arith.constant 0 : i32
    %c0_i32_0 = arith.constant 0 : i32
    %c0_i32_1 = arith.constant 0 : i32
    return %arg0, %c0_i32, %c0_i32_0 : i32, i32, i32
  }
  func.func @transform_2(%arg0: i32, %arg1: i32) -> (i32, i32, i32) {
    %c0_i32 = arith.constant 0 : i32
    %c0_i32_0 = arith.constant 0 : i32
    %c0_i32_1 = arith.constant 0 : i32
    return %arg0, %c0_i32, %c0_i32_0 : i32, i32, i32
  }
  func.func @transform_3(%arg0: i32, %arg1: i32) -> (i32, i32) {
    %c0_i32 = arith.constant 0 : i32
    %c0_i32_0 = arith.constant 0 : i32
    %c0_i32_1 = arith.constant 0 : i32
    return %c0_i32, %c0_i32_0 : i32, i32
  }
  func.func @transform_4(%arg0: i32, %arg1: i32) -> (i32, i32) {
    %c0_i32 = arith.constant 0 : i32
    %c0_i32_0 = arith.constant 0 : i32
    %c0_i32_1 = arith.constant 0 : i32
    return %c0_i32, %c0_i32_0 : i32, i32
  }
  func.func @transform_5(%arg0: i32, %arg1: i32) -> (i32, i32, i32) {
    %c0_i32 = arith.constant 0 : i32
    %c0_i32_0 = arith.constant 0 : i32
    return %arg0, %arg1, %c0_i32 : i32, i32, i32
  }
  func.func @transform_6(%arg0: i32, %arg1: i32) -> (i32, i32, i32) {
    %c0_i32 = arith.constant 0 : i32
    %c0_i32_0 = arith.constant 0 : i32
    return %arg0, %arg1, %c0_i32 : i32, i32, i32
  }
  func.func @transform_7(%arg0: i32, %arg1: i32) -> (i32, i32, i32) {
    %c0_i32 = arith.constant 0 : i32
    %c0_i32_0 = arith.constant 0 : i32
    return %arg0, %arg1, %c0_i32 : i32, i32, i32
  }
}

module attributes {stable_mosaic.version = 11 : i64} {
  func.func @flash_attn_kernel(%arg0: i32, %arg1: i32, %arg2: i32, %arg3: memref<1x8x32xbf16, #tpu.memory_space<vmem>>, %arg4: memref<1x8x32xbf16, #tpu.memory_space<vmem>>, %arg5: memref<1x8x32xbf16, #tpu.memory_space<vmem>>, %arg6: memref<1x8x32xbf16, #tpu.memory_space<vmem>>, %arg7: memref<8x32xf32, #tpu.memory_space<vmem>>, %arg8: memref<8x32xf32, #tpu.memory_space<vmem>>, %arg9: memref<8x32xf32, #tpu.memory_space<vmem>>) attributes {dimension_semantics = [#tpu.dimension_semantics<parallel>, #tpu.dimension_semantics<parallel>, #tpu.dimension_semantics<arbitrary>], iteration_bounds = array<i64: 2, 1, 1>, scalar_prefetch = 0 : i64, scratch_operands = 3 : i64, tpu.core_type = #tpu.core_type<tc>, window_params = [{transform_indices = @transform_0, window_bounds = array<i64: 1, 8, 32>}, {transform_indices = @transform_1, window_bounds = array<i64: 1, 8, 32>}, {transform_indices = @transform_2, window_bounds = array<i64: 1, 8, 32>}, {transform_indices = @transform_3, window_bounds = array<i64: 1, 8, 32>}]} {
    %c0_i32 = arith.constant 0 : i32
    %0 = arith.cmpi eq, %arg2, %c0_i32 : i32
    %1 = arith.extui %0 : i1 to i32
    %c0_i32_0 = arith.constant 0 : i32
    %2 = arith.cmpi ne, %1, %c0_i32_0 : i32
    scf.if %2 {
      %cst_42 = arith.constant 0xFF800000 : f32
      %141 = vector.broadcast %cst_42 : f32 to vector<8x32xf32>
      %c0_43 = arith.constant 0 : index
      %c0_44 = arith.constant 0 : index
      %142 = vector.load %arg7[%c0_43, %c0_44] : memref<8x32xf32, #tpu.memory_space<vmem>>, vector<8x32xf32>
      tpu.vector_store %arg7[%c0_43, %c0_44], %141 {strides = array<i32>} : memref<8x32xf32, #tpu.memory_space<vmem>>, vector<8x32xf32>,
      %cst_45 = arith.constant 0.000000e+00 : f32
      %143 = vector.broadcast %cst_45 : f32 to vector<8x32xf32>
      %c0_46 = arith.constant 0 : index
      %c0_47 = arith.constant 0 : index
      %144 = vector.load %arg8[%c0_46, %c0_47] : memref<8x32xf32, #tpu.memory_space<vmem>>, vector<8x32xf32>
      tpu.vector_store %arg8[%c0_46, %c0_47], %143 {strides = array<i32>} : memref<8x32xf32, #tpu.memory_space<vmem>>, vector<8x32xf32>,
      %cst_48 = arith.constant 0.000000e+00 : f32
      %145 = vector.broadcast %cst_48 : f32 to vector<8x32xf32>
      %c0_49 = arith.constant 0 : index
      %c0_50 = arith.constant 0 : index
      %146 = vector.load %arg9[%c0_49, %c0_50] : memref<8x32xf32, #tpu.memory_space<vmem>>, vector<8x32xf32>
      tpu.vector_store %arg9[%c0_49, %c0_50], %145 {strides = array<i32>} : memref<8x32xf32, #tpu.memory_space<vmem>>, vector<8x32xf32>,
    } else {
    }
    %c0 = arith.constant 0 : index
    %c0_1 = arith.constant 0 : index
    %c0_2 = arith.constant 0 : index
    %3 = vector.load %arg3[%c0, %c0_1, %c0_2] : memref<1x8x32xbf16, #tpu.memory_space<vmem>>, vector<1x8x32xbf16>
    %4 = vector.shape_cast %3 : vector<1x8x32xbf16> to vector<8x32xbf16>
    %c0_3 = arith.constant 0 : index
    %c0_4 = arith.constant 0 : index
    %c0_5 = arith.constant 0 : index
    %5 = vector.load %arg4[%c0_3, %c0_4, %c0_5] : memref<1x8x32xbf16, #tpu.memory_space<vmem>>, vector<1x8x32xbf16>
    %6 = vector.shape_cast %5 : vector<1x8x32xbf16> to vector<8x32xbf16>
    %c0_6 = arith.constant 0 : index
    %c0_7 = arith.constant 0 : index
    %c0_8 = arith.constant 0 : index
    %7 = vector.load %arg5[%c0_6, %c0_7, %c0_8] : memref<1x8x32xbf16, #tpu.memory_space<vmem>>, vector<1x8x32xbf16>
    %8 = vector.shape_cast %7 : vector<1x8x32xbf16> to vector<8x32xbf16>
    %c0_9 = arith.constant 0 : index
    %c0_10 = arith.constant 0 : index
    %9 = vector.load %arg7[%c0_9, %c0_10] : memref<8x32xf32, #tpu.memory_space<vmem>>, vector<8x32xf32>
    %c0_11 = arith.constant 0 : index
    %c0_12 = arith.constant 0 : index
    %10 = vector.load %arg8[%c0_11, %c0_12] : memref<8x32xf32, #tpu.memory_space<vmem>>, vector<8x32xf32>
    %c0_13 = arith.constant 0 : index
    %c0_14 = arith.constant 0 : index
    %11 = vector.load %arg9[%c0_13, %c0_14] : memref<8x32xf32, #tpu.memory_space<vmem>>, vector<8x32xf32>
    %12 = vector.extract_strided_slice %4 {offsets = [0, 0], sizes = [8, 8], strides = [1, 1]} : vector<8x32xbf16> to vector<8x8xbf16>
    %13 = vector.extract_strided_slice %6 {offsets = [0, 0], sizes = [8, 8], strides = [1, 1]} : vector<8x32xbf16> to vector<8x8xbf16>
    %14 = vector.extract_strided_slice %8 {offsets = [0, 0], sizes = [8, 8], strides = [1, 1]} : vector<8x32xbf16> to vector<8x8xbf16>
    %cst = arith.constant dense<0.000000e+00> : vector<8x8xf32>
    %15 = tpu.matmul %12, %13, %cst {dimension_numbers = #tpu.dot_dimension_numbers<[1], [1], [0], [0], [0, 0, 1, 0], [], []>} : vector<8x8xbf16>, vector<8x8xbf16>, vector<8x8xf32> -> vector<8x8xf32>
    %cst_15 = arith.constant 0.353553385 : f32
    %16 = vector.broadcast %cst_15 : f32 to vector<8x8xf32>
    %17 = arith.mulf %15, %16 : vector<8x8xf32>
    %18 = vector.extract_strided_slice %9 {offsets = [0, 0], sizes = [8, 1], strides = [1, 1]} : vector<8x32xf32> to vector<8x1xf32>
    %19 = vector.extract_strided_slice %10 {offsets = [0, 0], sizes = [8, 1], strides = [1, 1]} : vector<8x32xf32> to vector<8x1xf32>
    %cst_16 = arith.constant dense<0xFF800000> : vector<8xf32>
    %20 = vector.multi_reduction <maximumf>, %17, %cst_16 [1] : vector<8x8xf32> to vector<8xf32>
    %21 = vector.shape_cast %20 : vector<8xf32> to vector<8x1xf32>
    %22 = arith.maximumf %18, %21 : vector<8x1xf32>
    %23 = arith.subf %18, %22 : vector<8x1xf32>
    %24 = math.exp %23 : vector<8x1xf32>
    %25 = vector.broadcast %22 : vector<8x1xf32> to vector<8x8xf32>
    %26 = arith.subf %17, %25 : vector<8x8xf32>
    %27 = math.exp %26 : vector<8x8xf32>
    %28 = arith.mulf %24, %19 : vector<8x1xf32>
    %cst_17 = arith.constant dense<0.000000e+00> : vector<8xf32>
    %29 = vector.multi_reduction <add>, %27, %cst_17 [1] : vector<8x8xf32> to vector<8xf32>
    %30 = vector.shape_cast %29 : vector<8xf32> to vector<8x1xf32>
    %31 = arith.addf %28, %30 : vector<8x1xf32>
    %32 = vector.extract_strided_slice %11 {offsets = [0, 0], sizes = [8, 8], strides = [1, 1]} : vector<8x32xf32> to vector<8x8xf32>
    %33 = vector.broadcast %24 : vector<8x1xf32> to vector<8x8xf32>
    %34 = arith.mulf %33, %32 : vector<8x8xf32>
    %35 = arith.truncf %27 : vector<8x8xf32> to vector<8x8xbf16>
    %cst_18 = arith.constant dense<0.000000e+00> : vector<8x8xf32>
    %36 = tpu.matmul %35, %14, %cst_18 {dimension_numbers = #tpu.dot_dimension_numbers<[1], [0], [0], [1], [0, 0, 1, 1], [], []>} : vector<8x8xbf16>, vector<8x8xbf16>, vector<8x8xf32> -> vector<8x8xf32>
    %37 = arith.addf %34, %36 : vector<8x8xf32>
    %38 = vector.shape_cast %22 : vector<8x1xf32> to vector<8x1xf32>
    %39 = vector.broadcast %38 : vector<8x1xf32> to vector<8x8xf32>
    %40 = vector.shape_cast %31 : vector<8x1xf32> to vector<8x1xf32>
    %41 = vector.broadcast %40 : vector<8x1xf32> to vector<8x8xf32>
    %42 = vector.extract_strided_slice %4 {offsets = [0, 8], sizes = [8, 8], strides = [1, 1]} : vector<8x32xbf16> to vector<8x8xbf16>
    %43 = vector.extract_strided_slice %6 {offsets = [0, 8], sizes = [8, 8], strides = [1, 1]} : vector<8x32xbf16> to vector<8x8xbf16>
    %44 = vector.extract_strided_slice %8 {offsets = [0, 8], sizes = [8, 8], strides = [1, 1]} : vector<8x32xbf16> to vector<8x8xbf16>
    %cst_19 = arith.constant dense<0.000000e+00> : vector<8x8xf32>
    %45 = tpu.matmul %42, %43, %cst_19 {dimension_numbers = #tpu.dot_dimension_numbers<[1], [1], [0], [0], [0, 0, 1, 0], [], []>} : vector<8x8xbf16>, vector<8x8xbf16>, vector<8x8xf32> -> vector<8x8xf32>
    %cst_20 = arith.constant 0.353553385 : f32
    %46 = vector.broadcast %cst_20 : f32 to vector<8x8xf32>
    %47 = arith.mulf %45, %46 : vector<8x8xf32>
    %48 = vector.extract_strided_slice %9 {offsets = [0, 8], sizes = [8, 1], strides = [1, 1]} : vector<8x32xf32> to vector<8x1xf32>
    %49 = vector.extract_strided_slice %10 {offsets = [0, 8], sizes = [8, 1], strides = [1, 1]} : vector<8x32xf32> to vector<8x1xf32>
    %cst_21 = arith.constant dense<0xFF800000> : vector<8xf32>
    %50 = vector.multi_reduction <maximumf>, %47, %cst_21 [1] : vector<8x8xf32> to vector<8xf32>
    %51 = vector.shape_cast %50 : vector<8xf32> to vector<8x1xf32>
    %52 = arith.maximumf %48, %51 : vector<8x1xf32>
    %53 = arith.subf %48, %52 : vector<8x1xf32>
    %54 = math.exp %53 : vector<8x1xf32>
    %55 = vector.broadcast %52 : vector<8x1xf32> to vector<8x8xf32>
    %56 = arith.subf %47, %55 : vector<8x8xf32>
    %57 = math.exp %56 : vector<8x8xf32>
    %58 = arith.mulf %54, %49 : vector<8x1xf32>
    %cst_22 = arith.constant dense<0.000000e+00> : vector<8xf32>
    %59 = vector.multi_reduction <add>, %57, %cst_22 [1] : vector<8x8xf32> to vector<8xf32>
    %60 = vector.shape_cast %59 : vector<8xf32> to vector<8x1xf32>
    %61 = arith.addf %58, %60 : vector<8x1xf32>
    %62 = vector.extract_strided_slice %11 {offsets = [0, 8], sizes = [8, 8], strides = [1, 1]} : vector<8x32xf32> to vector<8x8xf32>
    %63 = vector.broadcast %54 : vector<8x1xf32> to vector<8x8xf32>
    %64 = arith.mulf %63, %62 : vector<8x8xf32>
    %65 = arith.truncf %57 : vector<8x8xf32> to vector<8x8xbf16>
    %cst_23 = arith.constant dense<0.000000e+00> : vector<8x8xf32>
    %66 = tpu.matmul %65, %44, %cst_23 {dimension_numbers = #tpu.dot_dimension_numbers<[1], [0], [0], [1], [0, 0, 1, 1], [], []>} : vector<8x8xbf16>, vector<8x8xbf16>, vector<8x8xf32> -> vector<8x8xf32>
    %67 = arith.addf %64, %66 : vector<8x8xf32>
    %68 = vector.shape_cast %52 : vector<8x1xf32> to vector<8x1xf32>
    %69 = vector.broadcast %68 : vector<8x1xf32> to vector<8x8xf32>
    %70 = vector.shape_cast %61 : vector<8x1xf32> to vector<8x1xf32>
    %71 = vector.broadcast %70 : vector<8x1xf32> to vector<8x8xf32>
    %72 = vector.extract_strided_slice %4 {offsets = [0, 16], sizes = [8, 8], strides = [1, 1]} : vector<8x32xbf16> to vector<8x8xbf16>
    %73 = vector.extract_strided_slice %6 {offsets = [0, 16], sizes = [8, 8], strides = [1, 1]} : vector<8x32xbf16> to vector<8x8xbf16>
    %74 = vector.extract_strided_slice %8 {offsets = [0, 16], sizes = [8, 8], strides = [1, 1]} : vector<8x32xbf16> to vector<8x8xbf16>
    %cst_24 = arith.constant dense<0.000000e+00> : vector<8x8xf32>
    %75 = tpu.matmul %72, %73, %cst_24 {dimension_numbers = #tpu.dot_dimension_numbers<[1], [1], [0], [0], [0, 0, 1, 0], [], []>} : vector<8x8xbf16>, vector<8x8xbf16>, vector<8x8xf32> -> vector<8x8xf32>
    %cst_25 = arith.constant 0.353553385 : f32
    %76 = vector.broadcast %cst_25 : f32 to vector<8x8xf32>
    %77 = arith.mulf %75, %76 : vector<8x8xf32>
    %78 = vector.extract_strided_slice %9 {offsets = [0, 16], sizes = [8, 1], strides = [1, 1]} : vector<8x32xf32> to vector<8x1xf32>
    %79 = vector.extract_strided_slice %10 {offsets = [0, 16], sizes = [8, 1], strides = [1, 1]} : vector<8x32xf32> to vector<8x1xf32>
    %cst_26 = arith.constant dense<0xFF800000> : vector<8xf32>
    %80 = vector.multi_reduction <maximumf>, %77, %cst_26 [1] : vector<8x8xf32> to vector<8xf32>
    %81 = vector.shape_cast %80 : vector<8xf32> to vector<8x1xf32>
    %82 = arith.maximumf %78, %81 : vector<8x1xf32>
    %83 = arith.subf %78, %82 : vector<8x1xf32>
    %84 = math.exp %83 : vector<8x1xf32>
    %85 = vector.broadcast %82 : vector<8x1xf32> to vector<8x8xf32>
    %86 = arith.subf %77, %85 : vector<8x8xf32>
    %87 = math.exp %86 : vector<8x8xf32>
    %88 = arith.mulf %84, %79 : vector<8x1xf32>
    %cst_27 = arith.constant dense<0.000000e+00> : vector<8xf32>
    %89 = vector.multi_reduction <add>, %87, %cst_27 [1] : vector<8x8xf32> to vector<8xf32>
    %90 = vector.shape_cast %89 : vector<8xf32> to vector<8x1xf32>
    %91 = arith.addf %88, %90 : vector<8x1xf32>
    %92 = vector.extract_strided_slice %11 {offsets = [0, 16], sizes = [8, 8], strides = [1, 1]} : vector<8x32xf32> to vector<8x8xf32>
    %93 = vector.broadcast %84 : vector<8x1xf32> to vector<8x8xf32>
    %94 = arith.mulf %93, %92 : vector<8x8xf32>
    %95 = arith.truncf %87 : vector<8x8xf32> to vector<8x8xbf16>
    %cst_28 = arith.constant dense<0.000000e+00> : vector<8x8xf32>
    %96 = tpu.matmul %95, %74, %cst_28 {dimension_numbers = #tpu.dot_dimension_numbers<[1], [0], [0], [1], [0, 0, 1, 1], [], []>} : vector<8x8xbf16>, vector<8x8xbf16>, vector<8x8xf32> -> vector<8x8xf32>
    %97 = arith.addf %94, %96 : vector<8x8xf32>
    %98 = vector.shape_cast %82 : vector<8x1xf32> to vector<8x1xf32>
    %99 = vector.broadcast %98 : vector<8x1xf32> to vector<8x8xf32>
    %100 = vector.shape_cast %91 : vector<8x1xf32> to vector<8x1xf32>
    %101 = vector.broadcast %100 : vector<8x1xf32> to vector<8x8xf32>
    %102 = vector.extract_strided_slice %4 {offsets = [0, 24], sizes = [8, 8], strides = [1, 1]} : vector<8x32xbf16> to vector<8x8xbf16>
    %103 = vector.extract_strided_slice %6 {offsets = [0, 24], sizes = [8, 8], strides = [1, 1]} : vector<8x32xbf16> to vector<8x8xbf16>
    %104 = vector.extract_strided_slice %8 {offsets = [0, 24], sizes = [8, 8], strides = [1, 1]} : vector<8x32xbf16> to vector<8x8xbf16>
    %cst_29 = arith.constant dense<0.000000e+00> : vector<8x8xf32>
    %105 = tpu.matmul %102, %103, %cst_29 {dimension_numbers = #tpu.dot_dimension_numbers<[1], [1], [0], [0], [0, 0, 1, 0], [], []>} : vector<8x8xbf16>, vector<8x8xbf16>, vector<8x8xf32> -> vector<8x8xf32>
    %cst_30 = arith.constant 0.353553385 : f32
    %106 = vector.broadcast %cst_30 : f32 to vector<8x8xf32>
    %107 = arith.mulf %105, %106 : vector<8x8xf32>
    %108 = vector.extract_strided_slice %9 {offsets = [0, 24], sizes = [8, 1], strides = [1, 1]} : vector<8x32xf32> to vector<8x1xf32>
    %109 = vector.extract_strided_slice %10 {offsets = [0, 24], sizes = [8, 1], strides = [1, 1]} : vector<8x32xf32> to vector<8x1xf32>
    %cst_31 = arith.constant dense<0xFF800000> : vector<8xf32>
    %110 = vector.multi_reduction <maximumf>, %107, %cst_31 [1] : vector<8x8xf32> to vector<8xf32>
    %111 = vector.shape_cast %110 : vector<8xf32> to vector<8x1xf32>
    %112 = arith.maximumf %108, %111 : vector<8x1xf32>
    %113 = arith.subf %108, %112 : vector<8x1xf32>
    %114 = math.exp %113 : vector<8x1xf32>
    %115 = vector.broadcast %112 : vector<8x1xf32> to vector<8x8xf32>
    %116 = arith.subf %107, %115 : vector<8x8xf32>
    %117 = math.exp %116 : vector<8x8xf32>
    %118 = arith.mulf %114, %109 : vector<8x1xf32>
    %cst_32 = arith.constant dense<0.000000e+00> : vector<8xf32>
    %119 = vector.multi_reduction <add>, %117, %cst_32 [1] : vector<8x8xf32> to vector<8xf32>
    %120 = vector.shape_cast %119 : vector<8xf32> to vector<8x1xf32>
    %121 = arith.addf %118, %120 : vector<8x1xf32>
    %122 = vector.extract_strided_slice %11 {offsets = [0, 24], sizes = [8, 8], strides = [1, 1]} : vector<8x32xf32> to vector<8x8xf32>
    %123 = vector.broadcast %114 : vector<8x1xf32> to vector<8x8xf32>
    %124 = arith.mulf %123, %122 : vector<8x8xf32>
    %125 = arith.truncf %117 : vector<8x8xf32> to vector<8x8xbf16>
    %cst_33 = arith.constant dense<0.000000e+00> : vector<8x8xf32>
    %126 = tpu.matmul %125, %104, %cst_33 {dimension_numbers = #tpu.dot_dimension_numbers<[1], [0], [0], [1], [0, 0, 1, 1], [], []>} : vector<8x8xbf16>, vector<8x8xbf16>, vector<8x8xf32> -> vector<8x8xf32>
    %127 = arith.addf %124, %126 : vector<8x8xf32>
    %128 = vector.shape_cast %112 : vector<8x1xf32> to vector<8x1xf32>
    %129 = vector.broadcast %128 : vector<8x1xf32> to vector<8x8xf32>
    %130 = vector.shape_cast %121 : vector<8x1xf32> to vector<8x1xf32>
    %131 = vector.broadcast %130 : vector<8x1xf32> to vector<8x8xf32>
    %132 = tpu.concatenate %39, %69, %99, %129 in 1 : vector<8x8xf32>, vector<8x8xf32>, vector<8x8xf32>, vector<8x8xf32> -> vector<8x32xf32>
    %c0_34 = arith.constant 0 : index
    %c0_35 = arith.constant 0 : index
    %133 = vector.load %arg7[%c0_34, %c0_35] : memref<8x32xf32, #tpu.memory_space<vmem>>, vector<8x32xf32>
    tpu.vector_store %arg7[%c0_34, %c0_35], %132 {strides = array<i32>} : memref<8x32xf32, #tpu.memory_space<vmem>>, vector<8x32xf32>,
    %134 = tpu.concatenate %41, %71, %101, %131 in 1 : vector<8x8xf32>, vector<8x8xf32>, vector<8x8xf32>, vector<8x8xf32> -> vector<8x32xf32>
    %c0_36 = arith.constant 0 : index
    %c0_37 = arith.constant 0 : index
    %135 = vector.load %arg8[%c0_36, %c0_37] : memref<8x32xf32, #tpu.memory_space<vmem>>, vector<8x32xf32>
    tpu.vector_store %arg8[%c0_36, %c0_37], %134 {strides = array<i32>} : memref<8x32xf32, #tpu.memory_space<vmem>>, vector<8x32xf32>,
    %136 = tpu.concatenate %37, %67, %97, %127 in 1 : vector<8x8xf32>, vector<8x8xf32>, vector<8x8xf32>, vector<8x8xf32> -> vector<8x32xf32>
    %c0_38 = arith.constant 0 : index
    %c0_39 = arith.constant 0 : index
    %137 = vector.load %arg9[%c0_38, %c0_39] : memref<8x32xf32, #tpu.memory_space<vmem>>, vector<8x32xf32>
    tpu.vector_store %arg9[%c0_38, %c0_39], %136 {strides = array<i32>} : memref<8x32xf32, #tpu.memory_space<vmem>>, vector<8x32xf32>,
    %c0_i32_40 = arith.constant 0 : i32
    %138 = arith.cmpi eq, %arg2, %c0_i32_40 : i32
    %139 = arith.extui %138 : i1 to i32
    %c0_i32_41 = arith.constant 0 : i32
    %140 = arith.cmpi ne, %139, %c0_i32_41 : i32
    scf.if %140 {
      %c0_42 = arith.constant 0 : index
      %c0_43 = arith.constant 0 : index
      %141 = vector.load %arg9[%c0_42, %c0_43] : memref<8x32xf32, #tpu.memory_space<vmem>>, vector<8x32xf32>
      %c0_44 = arith.constant 0 : index
      %c0_45 = arith.constant 0 : index
      %142 = vector.load %arg8[%c0_44, %c0_45] : memref<8x32xf32, #tpu.memory_space<vmem>>, vector<8x32xf32>
      %143 = tpu.reciprocal %142 {approx = true} : vector<8x32xf32> -> vector<8x32xf32>
      %144 = arith.mulf %141, %143 : vector<8x32xf32>
      %145 = arith.truncf %144 : vector<8x32xf32> to vector<8x32xbf16>
      %c0_46 = arith.constant 0 : index
      %c0_47 = arith.constant 0 : index
      %c0_48 = arith.constant 0 : index
      %146 = vector.load %arg6[%c0_46, %c0_47, %c0_48] : memref<1x8x32xbf16, #tpu.memory_space<vmem>>, vector<1x8x32xbf16>
      %147 = vector.shape_cast %146 : vector<1x8x32xbf16> to vector<8x32xbf16>
      %148 = vector.shape_cast %145 : vector<8x32xbf16> to vector<1x8x32xbf16>
      tpu.vector_store %arg6[%c0_46, %c0_47, %c0_48], %148 {strides = array<i32>} : memref<1x8x32xbf16, #tpu.memory_space<vmem>>, vector<1x8x32xbf16>,
    } else {
    }
    return
  }
  func.func @transform_0(%arg0: i32, %arg1: i32, %arg2: i32) -> (i32, i32, i32) {
    %c0_i32 = arith.constant 0 : i32
    %c0_i32_0 = arith.constant 0 : i32
    return %arg0, %arg1, %c0_i32 : i32, i32, i32
  }
  func.func @transform_1(%arg0: i32, %arg1: i32, %arg2: i32) -> (i32, i32, i32) {
    %c0_i32 = arith.constant 0 : i32
    %c0_i32_0 = arith.constant 0 : i32
    return %arg0, %arg2, %c0_i32 : i32, i32, i32
  }
  func.func @transform_2(%arg0: i32, %arg1: i32, %arg2: i32) -> (i32, i32, i32) {
    %c0_i32 = arith.constant 0 : i32
    %c0_i32_0 = arith.constant 0 : i32
    return %arg0, %arg2, %c0_i32 : i32, i32, i32
  }
  func.func @transform_3(%arg0: i32, %arg1: i32, %arg2: i32) -> (i32, i32, i32) {
    %c0_i32 = arith.constant 0 : i32
    %c0_i32_0 = arith.constant 0 : i32
    return %arg0, %arg1, %c0_i32 : i32, i32, i32
  }
}

module attributes {stable_mosaic.version = 11 : i64} {
  func.func @post_kernel(%arg0: i32, %arg1: i32, %arg2: memref<1x8x32xf32, #tpu.memory_space<vmem>>, %arg3: memref<1x8x32xbf16, #tpu.memory_space<vmem>>, %arg4: memref<1x8x16xf32, #tpu.memory_space<vmem>>, %arg5: memref<32x32xbf16, #tpu.memory_space<vmem>>, %arg6: memref<1x32xf32, #tpu.memory_space<vmem>>, %arg7: memref<16x32xbf16, #tpu.memory_space<vmem>>, %arg8: memref<1x32xf32, #tpu.memory_space<vmem>>, %arg9: memref<1x32xf32, #tpu.memory_space<vmem>>, %arg10: memref<1x32xf32, #tpu.memory_space<vmem>>, %arg11: memref<32x128xbf16, #tpu.memory_space<vmem>>, %arg12: memref<1x128xf32, #tpu.memory_space<vmem>>, %arg13: memref<128x32xbf16, #tpu.memory_space<vmem>>, %arg14: memref<1x32xf32, #tpu.memory_space<vmem>>, %arg15: memref<1x8x32xf32, #tpu.memory_space<vmem>>) attributes {dimension_semantics = [#tpu.dimension_semantics<parallel>, #tpu.dimension_semantics<parallel>], iteration_bounds = array<i64: 2, 1>, scalar_prefetch = 0 : i64, scratch_operands = 0 : i64, tpu.core_type = #tpu.core_type<tc>, window_params = [{transform_indices = @transform_0, window_bounds = array<i64: 1, 8, 32>}, {transform_indices = @transform_1, window_bounds = array<i64: 1, 8, 32>}, {transform_indices = @transform_2, window_bounds = array<i64: 1, 8, 16>}, {pipeline_mode = #tpu.pipeline_mode<synchronous>, transform_indices = @transform_3, window_bounds = array<i64: 32, 32>}, {pipeline_mode = #tpu.pipeline_mode<synchronous>, transform_indices = @transform_4, window_bounds = array<i64: 1, 32>}, {pipeline_mode = #tpu.pipeline_mode<synchronous>, transform_indices = @transform_5, window_bounds = array<i64: 16, 32>}, {pipeline_mode = #tpu.pipeline_mode<synchronous>, transform_indices = @transform_6, window_bounds = array<i64: 1, 32>}, {pipeline_mode = #tpu.pipeline_mode<synchronous>, transform_indices = @transform_7, window_bounds = array<i64: 1, 32>}, {pipeline_mode = #tpu.pipeline_mode<synchronous>, transform_indices = @transform_8, window_bounds = array<i64: 1, 32>}, {pipeline_mode = #tpu.pipeline_mode<synchronous>, transform_indices = @transform_9, window_bounds = array<i64: 32, 128>}, {pipeline_mode = #tpu.pipeline_mode<synchronous>, transform_indices = @transform_10, window_bounds = array<i64: 1, 128>}, {pipeline_mode = #tpu.pipeline_mode<synchronous>, transform_indices = @transform_11, window_bounds = array<i64: 128, 32>}, {pipeline_mode = #tpu.pipeline_mode<synchronous>, transform_indices = @transform_12, window_bounds = array<i64: 1, 32>}, {transform_indices = @transform_13, window_bounds = array<i64: 1, 8, 32>}]} {
    %c0 = arith.constant 0 : index
    %c0_0 = arith.constant 0 : index
    %c0_1 = arith.constant 0 : index
    %0 = vector.load %arg2[%c0, %c0_0, %c0_1] : memref<1x8x32xf32, #tpu.memory_space<vmem>>, vector<1x8x32xf32>
    %1 = vector.shape_cast %0 : vector<1x8x32xf32> to vector<8x32xf32>
    %c0_2 = arith.constant 0 : index
    %c0_3 = arith.constant 0 : index
    %c0_4 = arith.constant 0 : index
    %2 = vector.load %arg3[%c0_2, %c0_3, %c0_4] : memref<1x8x32xbf16, #tpu.memory_space<vmem>>, vector<1x8x32xbf16>
    %3 = vector.shape_cast %2 : vector<1x8x32xbf16> to vector<8x32xbf16>
    %c0_5 = arith.constant 0 : index
    %c0_6 = arith.constant 0 : index
    %4 = vector.load %arg5[%c0_5, %c0_6] : memref<32x32xbf16, #tpu.memory_space<vmem>>, vector<32x32xbf16>
    %cst = arith.constant dense<0.000000e+00> : vector<8x32xf32>
    %5 = tpu.matmul %3, %4, %cst {dimension_numbers = #tpu.dot_dimension_numbers<[1], [0], [0], [1], [0, 0, 1, 1], [], []>} : vector<8x32xbf16>, vector<32x32xbf16>, vector<8x32xf32> -> vector<8x32xf32>
    %c0_7 = arith.constant 0 : index
    %c0_8 = arith.constant 0 : index
    %6 = vector.load %arg6[%c0_7, %c0_8] : memref<1x32xf32, #tpu.memory_space<vmem>>, vector<1x32xf32>
    %7 = vector.broadcast %6 : vector<1x32xf32> to vector<8x32xf32>
    %8 = arith.addf %5, %7 : vector<8x32xf32>
    %c0_9 = arith.constant 0 : index
    %c0_10 = arith.constant 0 : index
    %c0_11 = arith.constant 0 : index
    %9 = vector.load %arg4[%c0_9, %c0_10, %c0_11] : memref<1x8x16xf32, #tpu.memory_space<vmem>>, vector<1x8x16xf32>
    %10 = vector.shape_cast %9 : vector<1x8x16xf32> to vector<8x16xf32>
    %11 = arith.truncf %10 : vector<8x16xf32> to vector<8x16xbf16>
    %c0_12 = arith.constant 0 : index
    %c0_13 = arith.constant 0 : index
    %12 = vector.load %arg7[%c0_12, %c0_13] : memref<16x32xbf16, #tpu.memory_space<vmem>>, vector<16x32xbf16>
    %cst_14 = arith.constant dense<0.000000e+00> : vector<8x32xf32>
    %13 = tpu.matmul %11, %12, %cst_14 {dimension_numbers = #tpu.dot_dimension_numbers<[1], [0], [0], [1], [0, 0, 1, 1], [], []>} : vector<8x16xbf16>, vector<16x32xbf16>, vector<8x32xf32> -> vector<8x32xf32>
    %c0_15 = arith.constant 0 : index
    %c0_16 = arith.constant 0 : index
    %14 = vector.load %arg8[%c0_15, %c0_16] : memref<1x32xf32, #tpu.memory_space<vmem>>, vector<1x32xf32>
    %15 = vector.broadcast %14 : vector<1x32xf32> to vector<8x32xf32>
    %16 = arith.addf %13, %15 : vector<8x32xf32>
    %17 = arith.addf %1, %8 : vector<8x32xf32>
    %18 = arith.addf %17, %16 : vector<8x32xf32>
    %cst_17 = arith.constant dense<0.000000e+00> : vector<8xf32>
    %19 = vector.multi_reduction <add>, %18, %cst_17 [1] : vector<8x32xf32> to vector<8xf32>
    %20 = vector.shape_cast %19 : vector<8xf32> to vector<8x1xf32>
    %cst_18 = arith.constant 3.200000e+01 : f32
    %21 = vector.broadcast %cst_18 : f32 to vector<8x1xf32>
    %22 = arith.divf %20, %21 : vector<8x1xf32>
    %23 = vector.broadcast %22 : vector<8x1xf32> to vector<8x32xf32>
    %24 = arith.subf %18, %23 : vector<8x32xf32>
    %25 = arith.mulf %24, %24 : vector<8x32xf32>
    %cst_19 = arith.constant dense<0.000000e+00> : vector<8xf32>
    %26 = vector.multi_reduction <add>, %25, %cst_19 [1] : vector<8x32xf32> to vector<8xf32>
    %27 = vector.shape_cast %26 : vector<8xf32> to vector<8x1xf32>
    %cst_20 = arith.constant 3.200000e+01 : f32
    %28 = vector.broadcast %cst_20 : f32 to vector<8x1xf32>
    %29 = arith.divf %27, %28 : vector<8x1xf32>
    %30 = vector.broadcast %22 : vector<8x1xf32> to vector<8x32xf32>
    %31 = arith.subf %18, %30 : vector<8x32xf32>
    %cst_21 = arith.constant 9.99999974E-6 : f32
    %32 = vector.broadcast %cst_21 : f32 to vector<8x1xf32>
    %33 = arith.addf %29, %32 : vector<8x1xf32>
    %34 = math.rsqrt %33 : vector<8x1xf32>
    %35 = vector.broadcast %34 : vector<8x1xf32> to vector<8x32xf32>
    %36 = arith.mulf %31, %35 : vector<8x32xf32>
    %c0_22 = arith.constant 0 : index
    %c0_23 = arith.constant 0 : index
    %37 = vector.load %arg9[%c0_22, %c0_23] : memref<1x32xf32, #tpu.memory_space<vmem>>, vector<1x32xf32>
    %38 = vector.broadcast %37 : vector<1x32xf32> to vector<8x32xf32>
    %39 = arith.mulf %36, %38 : vector<8x32xf32>
    %c0_24 = arith.constant 0 : index
    %c0_25 = arith.constant 0 : index
    %40 = vector.load %arg10[%c0_24, %c0_25] : memref<1x32xf32, #tpu.memory_space<vmem>>, vector<1x32xf32>
    %41 = vector.broadcast %40 : vector<1x32xf32> to vector<8x32xf32>
    %42 = arith.addf %39, %41 : vector<8x32xf32>
    %43 = arith.truncf %42 : vector<8x32xf32> to vector<8x32xbf16>
    %c0_26 = arith.constant 0 : index
    %c0_27 = arith.constant 0 : index
    %44 = vector.load %arg11[%c0_26, %c0_27] : memref<32x128xbf16, #tpu.memory_space<vmem>>, vector<32x128xbf16>
    %cst_28 = arith.constant dense<0.000000e+00> : vector<8x128xf32>
    %45 = tpu.matmul %43, %44, %cst_28 {dimension_numbers = #tpu.dot_dimension_numbers<[1], [0], [0], [1], [0, 0, 1, 1], [], []>} : vector<8x32xbf16>, vector<32x128xbf16>, vector<8x128xf32> -> vector<8x128xf32>
    %c0_29 = arith.constant 0 : index
    %c0_30 = arith.constant 0 : index
    %46 = vector.load %arg12[%c0_29, %c0_30] : memref<1x128xf32, #tpu.memory_space<vmem>>, vector<1x128xf32>
    %47 = vector.broadcast %46 : vector<1x128xf32> to vector<8x128xf32>
    %48 = arith.addf %45, %47 : vector<8x128xf32>
    %cst_31 = arith.constant 5.000000e-01 : f32
    %49 = vector.broadcast %cst_31 : f32 to vector<8x128xf32>
    %50 = arith.mulf %49, %48 : vector<8x128xf32>
    %cst_32 = arith.constant 0.707106769 : f32
    %51 = vector.broadcast %cst_32 : f32 to vector<8x128xf32>
    %52 = arith.mulf %48, %51 : vector<8x128xf32>
    %53 = math.erf %52 : vector<8x128xf32>
    %cst_33 = arith.constant 1.000000e+00 : f32
    %54 = vector.broadcast %cst_33 : f32 to vector<8x128xf32>
    %55 = arith.addf %54, %53 : vector<8x128xf32>
    %56 = arith.mulf %50, %55 : vector<8x128xf32>
    %57 = arith.truncf %56 : vector<8x128xf32> to vector<8x128xbf16>
    %c0_34 = arith.constant 0 : index
    %c0_35 = arith.constant 0 : index
    %58 = vector.load %arg13[%c0_34, %c0_35] : memref<128x32xbf16, #tpu.memory_space<vmem>>, vector<128x32xbf16>
    %cst_36 = arith.constant dense<0.000000e+00> : vector<8x32xf32>
    %59 = tpu.matmul %57, %58, %cst_36 {dimension_numbers = #tpu.dot_dimension_numbers<[1], [0], [0], [1], [0, 0, 1, 1], [], []>} : vector<8x128xbf16>, vector<128x32xbf16>, vector<8x32xf32> -> vector<8x32xf32>
    %60 = arith.addf %18, %59 : vector<8x32xf32>
    %c0_37 = arith.constant 0 : index
    %c0_38 = arith.constant 0 : index
    %61 = vector.load %arg14[%c0_37, %c0_38] : memref<1x32xf32, #tpu.memory_space<vmem>>, vector<1x32xf32>
    %62 = vector.broadcast %61 : vector<1x32xf32> to vector<8x32xf32>
    %63 = arith.addf %60, %62 : vector<8x32xf32>
    %c0_39 = arith.constant 0 : index
    %c0_40 = arith.constant 0 : index
    %c0_41 = arith.constant 0 : index
    %64 = vector.load %arg15[%c0_39, %c0_40, %c0_41] : memref<1x8x32xf32, #tpu.memory_space<vmem>>, vector<1x8x32xf32>
    %65 = vector.shape_cast %64 : vector<1x8x32xf32> to vector<8x32xf32>
    %66 = vector.shape_cast %63 : vector<8x32xf32> to vector<1x8x32xf32>
    tpu.vector_store %arg15[%c0_39, %c0_40, %c0_41], %66 {strides = array<i32>} : memref<1x8x32xf32, #tpu.memory_space<vmem>>, vector<1x8x32xf32>,
    return
  }
  func.func @transform_0(%arg0: i32, %arg1: i32) -> (i32, i32, i32) {
    %c0_i32 = arith.constant 0 : i32
    %c0_i32_0 = arith.constant 0 : i32
    return %arg0, %arg1, %c0_i32 : i32, i32, i32
  }
  func.func @transform_1(%arg0: i32, %arg1: i32) -> (i32, i32, i32) {
    %c0_i32 = arith.constant 0 : i32
    %c0_i32_0 = arith.constant 0 : i32
    return %arg0, %arg1, %c0_i32 : i32, i32, i32
  }
  func.func @transform_2(%arg0: i32, %arg1: i32) -> (i32, i32, i32) {
    %c0_i32 = arith.constant 0 : i32
    %c0_i32_0 = arith.constant 0 : i32
    return %arg0, %arg1, %c0_i32 : i32, i32, i32
  }
  func.func @transform_3(%arg0: i32, %arg1: i32) -> (i32, i32) {
    %c0_i32 = arith.constant 0 : i32
    %c0_i32_0 = arith.constant 0 : i32
    %c0_i32_1 = arith.constant 0 : i32
    return %c0_i32, %c0_i32_0 : i32, i32
  }
  func.func @transform_4(%arg0: i32, %arg1: i32) -> (i32, i32) {
    %c0_i32 = arith.constant 0 : i32
    %c0_i32_0 = arith.constant 0 : i32
    %c0_i32_1 = arith.constant 0 : i32
    return %c0_i32, %c0_i32_0 : i32, i32
  }
  func.func @transform_5(%arg0: i32, %arg1: i32) -> (i32, i32) {
    %c0_i32 = arith.constant 0 : i32
    %c0_i32_0 = arith.constant 0 : i32
    %c0_i32_1 = arith.constant 0 : i32
    return %c0_i32, %c0_i32_0 : i32, i32
  }
  func.func @transform_6(%arg0: i32, %arg1: i32) -> (i32, i32) {
    %c0_i32 = arith.constant 0 : i32
    %c0_i32_0 = arith.constant 0 : i32
    %c0_i32_1 = arith.constant 0 : i32
    return %c0_i32, %c0_i32_0 : i32, i32
  }
  func.func @transform_7(%arg0: i32, %arg1: i32) -> (i32, i32) {
    %c0_i32 = arith.constant 0 : i32
    %c0_i32_0 = arith.constant 0 : i32
    %c0_i32_1 = arith.constant 0 : i32
    return %c0_i32, %c0_i32_0 : i32, i32
  }
  func.func @transform_8(%arg0: i32, %arg1: i32) -> (i32, i32) {
    %c0_i32 = arith.constant 0 : i32
    %c0_i32_0 = arith.constant 0 : i32
    %c0_i32_1 = arith.constant 0 : i32
    return %c0_i32, %c0_i32_0 : i32, i32
  }
  func.func @transform_9(%arg0: i32, %arg1: i32) -> (i32, i32) {
    %c0_i32 = arith.constant 0 : i32
    %c0_i32_0 = arith.constant 0 : i32
    %c0_i32_1 = arith.constant 0 : i32
    return %c0_i32, %c0_i32_0 : i32, i32
  }
  func.func @transform_10(%arg0: i32, %arg1: i32) -> (i32, i32) {
    %c0_i32 = arith.constant 0 : i32
    %c0_i32_0 = arith.constant 0 : i32
    %c0_i32_1 = arith.constant 0 : i32
    return %c0_i32, %c0_i32_0 : i32, i32
  }
  func.func @transform_11(%arg0: i32, %arg1: i32) -> (i32, i32) {
    %c0_i32 = arith.constant 0 : i32
    %c0_i32_0 = arith.constant 0 : i32
    %c0_i32_1 = arith.constant 0 : i32
    return %c0_i32, %c0_i32_0 : i32, i32
  }
  func.func @transform_12(%arg0: i32, %arg1: i32) -> (i32, i32) {
    %c0_i32 = arith.constant 0 : i32
    %c0_i32_0 = arith.constant 0 : i32
    %c0_i32_1 = arith.constant 0 : i32
    return %c0_i32, %c0_i32_0 : i32, i32
  }
  func.func @transform_13(%arg0: i32, %arg1: i32) -> (i32, i32, i32) {
    %c0_i32 = arith.constant 0 : i32
    %c0_i32_0 = arith.constant 0 : i32
    return %arg0, %arg1, %c0_i32 : i32, i32, i32
  }
}

module attributes {stable_mosaic.version = 11 : i64} {
  func.func @logits_kernel(%arg0: i32, %arg1: i32, %arg2: memref<1x8x32xf32, #tpu.memory_space<vmem>>, %arg3: memref<1x32xf32, #tpu.memory_space<vmem>>, %arg4: memref<1x32xf32, #tpu.memory_space<vmem>>, %arg5: memref<8x32xbf16, #tpu.memory_space<vmem>>, %arg6: memref<8x1xf32, #tpu.memory_space<vmem>>, %arg7: memref<1x8x8xf32, #tpu.memory_space<vmem>>) attributes {dimension_semantics = [#tpu.dimension_semantics<parallel>, #tpu.dimension_semantics<parallel>], iteration_bounds = array<i64: 2, 1>, scalar_prefetch = 0 : i64, scratch_operands = 0 : i64, tpu.core_type = #tpu.core_type<tc>, window_params = [{transform_indices = @transform_0, window_bounds = array<i64: 1, 8, 32>}, {pipeline_mode = #tpu.pipeline_mode<synchronous>, transform_indices = @transform_1, window_bounds = array<i64: 1, 32>}, {pipeline_mode = #tpu.pipeline_mode<synchronous>, transform_indices = @transform_2, window_bounds = array<i64: 1, 32>}, {pipeline_mode = #tpu.pipeline_mode<synchronous>, transform_indices = @transform_3, window_bounds = array<i64: 8, 32>}, {pipeline_mode = #tpu.pipeline_mode<synchronous>, transform_indices = @transform_4, window_bounds = array<i64: 8, 1>}, {transform_indices = @transform_5, window_bounds = array<i64: 1, 8, 8>}]} {
    %c0 = arith.constant 0 : index
    %c0_0 = arith.constant 0 : index
    %c0_1 = arith.constant 0 : index
    %0 = vector.load %arg2[%c0, %c0_0, %c0_1] : memref<1x8x32xf32, #tpu.memory_space<vmem>>, vector<1x8x32xf32>
    %1 = vector.shape_cast %0 : vector<1x8x32xf32> to vector<8x32xf32>
    %cst = arith.constant dense<0.000000e+00> : vector<8xf32>
    %2 = vector.multi_reduction <add>, %1, %cst [1] : vector<8x32xf32> to vector<8xf32>
    %3 = vector.shape_cast %2 : vector<8xf32> to vector<8x1xf32>
    %cst_2 = arith.constant 3.200000e+01 : f32
    %4 = vector.broadcast %cst_2 : f32 to vector<8x1xf32>
    %5 = arith.divf %3, %4 : vector<8x1xf32>
    %6 = vector.broadcast %5 : vector<8x1xf32> to vector<8x32xf32>
    %7 = arith.subf %1, %6 : vector<8x32xf32>
    %8 = arith.mulf %7, %7 : vector<8x32xf32>
    %cst_3 = arith.constant dense<0.000000e+00> : vector<8xf32>
    %9 = vector.multi_reduction <add>, %8, %cst_3 [1] : vector<8x32xf32> to vector<8xf32>
    %10 = vector.shape_cast %9 : vector<8xf32> to vector<8x1xf32>
    %cst_4 = arith.constant 3.200000e+01 : f32
    %11 = vector.broadcast %cst_4 : f32 to vector<8x1xf32>
    %12 = arith.divf %10, %11 : vector<8x1xf32>
    %13 = vector.broadcast %5 : vector<8x1xf32> to vector<8x32xf32>
    %14 = arith.subf %1, %13 : vector<8x32xf32>
    %cst_5 = arith.constant 9.99999974E-6 : f32
    %15 = vector.broadcast %cst_5 : f32 to vector<8x1xf32>
    %16 = arith.addf %12, %15 : vector<8x1xf32>
    %17 = math.rsqrt %16 : vector<8x1xf32>
    %18 = vector.broadcast %17 : vector<8x1xf32> to vector<8x32xf32>
    %19 = arith.mulf %14, %18 : vector<8x32xf32>
    %c0_6 = arith.constant 0 : index
    %c0_7 = arith.constant 0 : index
    %20 = vector.load %arg3[%c0_6, %c0_7] : memref<1x32xf32, #tpu.memory_space<vmem>>, vector<1x32xf32>
    %21 = vector.broadcast %20 : vector<1x32xf32> to vector<8x32xf32>
    %22 = arith.mulf %19, %21 : vector<8x32xf32>
    %c0_8 = arith.constant 0 : index
    %c0_9 = arith.constant 0 : index
    %23 = vector.load %arg4[%c0_8, %c0_9] : memref<1x32xf32, #tpu.memory_space<vmem>>, vector<1x32xf32>
    %24 = vector.broadcast %23 : vector<1x32xf32> to vector<8x32xf32>
    %25 = arith.addf %22, %24 : vector<8x32xf32>
    %c0_10 = arith.constant 0 : index
    %c0_11 = arith.constant 0 : index
    %26 = vector.load %arg5[%c0_10, %c0_11] : memref<8x32xbf16, #tpu.memory_space<vmem>>, vector<8x32xbf16>
    %27 = arith.truncf %25 : vector<8x32xf32> to vector<8x32xbf16>
    %cst_12 = arith.constant dense<0.000000e+00> : vector<8x8xf32>
    %28 = tpu.matmul %26, %27, %cst_12 {dimension_numbers = #tpu.dot_dimension_numbers<[1], [1], [0], [0], [0, 0, 1, 0], [], []>} : vector<8x32xbf16>, vector<8x32xbf16>, vector<8x8xf32> -> vector<8x8xf32>
    %c0_13 = arith.constant 0 : index
    %c0_14 = arith.constant 0 : index
    %29 = vector.load %arg6[%c0_13, %c0_14] : memref<8x1xf32, #tpu.memory_space<vmem>>, vector<8x1xf32>
    %30 = vector.broadcast %29 : vector<8x1xf32> to vector<8x8xf32>
    %31 = arith.addf %28, %30 : vector<8x8xf32>
    %c0_15 = arith.constant 0 : index
    %c0_16 = arith.constant 0 : index
    %c0_17 = arith.constant 0 : index
    %32 = vector.load %arg7[%c0_15, %c0_16, %c0_17] : memref<1x8x8xf32, #tpu.memory_space<vmem>>, vector<1x8x8xf32>
    %33 = vector.shape_cast %32 : vector<1x8x8xf32> to vector<8x8xf32>
    %34 = vector.shape_cast %31 : vector<8x8xf32> to vector<1x8x8xf32>
    tpu.vector_store %arg7[%c0_15, %c0_16, %c0_17], %34 {strides = array<i32>} : memref<1x8x8xf32, #tpu.memory_space<vmem>>, vector<1x8x8xf32>,
    return
  }
  func.func @transform_0(%arg0: i32, %arg1: i32) -> (i32, i32, i32) {
    %c0_i32 = arith.constant 0 : i32
    %c0_i32_0 = arith.constant 0 : i32
    return %arg0, %arg1, %c0_i32 : i32, i32, i32
  }
  func.func @transform_1(%arg0: i32, %arg1: i32) -> (i32, i32) {
    %c0_i32 = arith.constant 0 : i32
    %c0_i32_0 = arith.constant 0 : i32
    %c0_i32_1 = arith.constant 0 : i32
    return %c0_i32, %c0_i32_0 : i32, i32
  }
  func.func @transform_2(%arg0: i32, %arg1: i32) -> (i32, i32) {
    %c0_i32 = arith.constant 0 : i32
    %c0_i32_0 = arith.constant 0 : i32
    %c0_i32_1 = arith.constant 0 : i32
    return %c0_i32, %c0_i32_0 : i32, i32
  }
  func.func @transform_3(%arg0: i32, %arg1: i32) -> (i32, i32) {
    %c0_i32 = arith.constant 0 : i32
    %c0_i32_0 = arith.constant 0 : i32
    %c0_i32_1 = arith.constant 0 : i32
    return %c0_i32, %c0_i32_0 : i32, i32
  }
  func.func @transform_4(%arg0: i32, %arg1: i32) -> (i32, i32) {
    %c0_i32 = arith.constant 0 : i32
    %c0_i32_0 = arith.constant 0 : i32
    %c0_i32_1 = arith.constant 0 : i32
    return %c0_i32, %c0_i32_0 : i32, i32
  }
  func.func @transform_5(%arg0: i32, %arg1: i32) -> (i32, i32, i32) {
    %c0_i32 = arith.constant 0 : i32
    %c0_i32_0 = arith.constant 0 : i32
    return %arg0, %c0_i32, %arg1 : i32, i32, i32
  }
}

</mosaic_0001>

<llo_original>
// kernel: diffusion_transformer_forward.8
$region0: #{diffusion_transformer_forward.8}
  #allocation0 [shape = 'u32[]', space=smem, size = 0x4, offset = 0x4, fixed_abs, tag = 'smem constant byte address 0x4 - core index']
  #allocation1 [shape = 'u32[144,128]{1,0:T(1,128)}', space=vmem, size = 0x12000, scoped, tag = 'internal scratch']
  %s0 = inlined_call_operand.hbm [shape: f32[2,8,16], index: 0, kind: input, shape index: {}]
  %s1 = inlined_call_operand.hbm [shape: f32[8,32], index: 1, kind: input, shape index: {}]
  %s2 = inlined_call_operand.hbm [shape: bf16[16,32], index: 2, kind: input, shape index: {}]
  %s3 = inlined_call_operand.hbm [shape: f32[1,32], index: 3, kind: input, shape index: {}]
  %s4 = inlined_call_operand.hbm [shape: f32[2,8,32], index: 4, kind: output, shape index: {}]
  %s5 = sld [smem:[#allocation0]]
  $region65: #{diffusion_transformer_forward.8} parent=0
    _
  %s7 = ssub.s32 1, %s5
  %s8 = scalar_select 0, %s7, %s5
  $region1: #{diffusion_transformer_forward.8} parent=0
    #allocation2 [shape = 'u8[8192]{0}', space=vmem, size = 0x2000, scoped, tag = 'input window, operand 0']
    #allocation3 [shape = 's32[2]{0}', space=sflag, size = 0x8, scoped, tag = 'scoped memory for diffusion_transformer_forward.8']
    #allocation4 [shape = 's32[2]{0}', space=sflag, size = 0x8, scoped, tag = 'scoped memory for diffusion_transformer_forward.8']
    #allocation5 [shape = 'u8[4096]{0}', space=vmem, size = 0x1000, scoped, tag = 'input window, operand 1, single buffered']
    #allocation6 [shape = 's32[1]{0}', space=sflag, size = 0x4, scoped, tag = 'scoped memory for diffusion_transformer_forward.8']
    #allocation7 [shape = 'u8[4096]{0}', space=vmem, size = 0x1000, scoped, tag = 'input window, operand 2, single buffered']
    #allocation8 [shape = 'u8[512]{0}', space=vmem, size = 0x400, scoped, tag = 'input window, operand 3, single buffered']
    #allocation9 [shape = 's32[1]{0}', space=sflag, size = 0x4, scoped, tag = 'scoped memory for diffusion_transformer_forward.8']
    #allocation10 [shape = 'u8[8192]{0}', space=vmem, size = 0x2000, scoped, tag = 'output window, operand 0']
    %9 = vsyncpa [#allocation3], 0
    %s10 = scalar_lea.sflag [#allocation3], 1
    %11 = vsyncpa %s10, 0
    %12 = vsyncpa [#allocation6], 0
    %13 = vsyncpa [#allocation9], 0
    %14 = vsyncpa [#allocation4], 0
    %s15 = scalar_lea.sflag [#allocation4], 1
    %16 = vsyncpa %s15, 0
    loop: start=0, step=1, limit=4
    $region2: #{diffusion_transformer_forward.8} parent=1 // loop_pre_header
      _
    $region3: #{diffusion_transformer_forward.8} parent=1 // loop_header
      %s18 = sphi 0, %s22
      %p19 = scmp.ge.s32.totalorder %s18, 4
      %s25 = sphi 0, %s37
      %s26 = sphi 0, %s33
      %s27 = sphi 0, %s25
      %s28 = sphi 0, %s26
      %s29 = sphi 0, %s27
      %s30 = sphi 0, %s28
      %s42 = sphi 0, %s44
      %s45 = sphi 0, %s42
      %s46 = sphi 0, %s45
      %s62 = sphi 0, %s46
      %s68 = sphi 0, %s70
      %s71 = sphi 0, %s68
      %s72 = sphi 0, %s71
      %s88 = sphi 0, %s72
      %s92 = sphi 0, %s92
      %s94 = sphi 0, %s92
      %s95 = sphi 0, %s94
      %s109 = sphi 0, %s95
      %s113 = sphi 0, %s113
      %s115 = sphi 0, %s113
      %s116 = sphi 0, %s115
      %s130 = sphi 0, %s116
      %s138 = sphi 0, %s140
      %s141 = sphi 0, %s138
      %s142 = sphi 0, %s141
      %s158 = sphi 0, %s142
    $region4: #{diffusion_transformer_forward.8} parent=1 // loop_header_branch
      %21 = sbr.rel (%p19) target = $region8
    $region5: #{diffusion_transformer_forward.8} parent=1 // loop_body
      %s23 = ssub.s32 %s18, 1
      %s24 = ssub.s32 %s18, 2
      %s31 = sadd.s32 1, %s26
      %p32 = scmp.ge.s32.totalorder %s31, 1
      %s33 = scalar_select %p32, 0, %s31
      %s34 = sadd.s32 1, %s25
      %s35 = scalar_select %p32, %s34, %s25
      %p36 = scmp.ge.s32.totalorder %s35, 2
      %s37 = scalar_select %p36, 0, %s35
      %s38 = ssub.s32 %s25, %s37
      %s39 = ssub.s32 %s26, %s33
      %s40 = sor.u32 %s38, %s39
      %p41 = scmp.eq.s32.totalorder %s40, 0
      %s43 = sadd.s32 %s42, 1
      %s44 = scalar_select %p41, %s42, %s43
      %p47 = pneg %p41
      %p48 = scmp.eq.s32.totalorder %s18, 1
      %p49 = por %p47, %p48
      %p50 = scmp.ne.s32.totalorder %s42, %s45
      %p51 = scmp.eq.s32.totalorder %s18, 0
      %p52 = por %p50, %p51
      %p53 = scmp.ne.s32.totalorder %s42, %s45
      %p54 = scmp.eq.s32.totalorder %s23, 1
      %p55 = por %p53, %p54
      %p56 = scmp.ne.s32.totalorder %s45, %s46
      %p57 = scmp.eq.s32.totalorder %s23, 0
      %p58 = por %p56, %p57
      %p59 = scmp.ne.s32.totalorder %s45, %s46
      %p60 = scmp.eq.s32.totalorder %s24, 1
      %p61 = por %p59, %p60
      %p63 = scmp.ne.s32.totalorder %s46, %s62
      %p64 = scmp.eq.s32.totalorder %s24, 0
      %p65 = por %p63, %p64
      %s66 = ssub.s32 %s26, %s33
      %p67 = scmp.eq.s32.totalorder %s66, 0
      %s69 = sadd.s32 %s68, 1
      %s70 = scalar_select %p67, %s68, %s69
      %p73 = pneg %p67
      %p74 = scmp.eq.s32.totalorder %s18, 1
      %p75 = por %p73, %p74
      %p76 = scmp.ne.s32.totalorder %s68, %s71
      %p77 = scmp.eq.s32.totalorder %s18, 0
      %p78 = por %p76, %p77
      %p79 = scmp.ne.s32.totalorder %s68, %s71
      %p80 = scmp.eq.s32.totalorder %s23, 1
      %p81 = por %p79, %p80
      %p82 = scmp.ne.s32.totalorder %s71, %s72
      %p83 = scmp.eq.s32.totalorder %s23, 0
      %p84 = por %p82, %p83
      %p85 = scmp.ne.s32.totalorder %s71, %s72
      %p86 = scmp.eq.s32.totalorder %s24, 1
      %p87 = por %p85, %p86
      %p89 = scmp.ne.s32.totalorder %s72, %s88
      %p90 = scmp.eq.s32.totalorder %s24, 0
      %p91 = por %p89, %p90
      %s93 = sadd.s32 %s92, 1
      %p96 = scmp.eq.s32.totalorder %s18, 1
      %p97 = scmp.ne.s32.totalorder %s92, %s94
      %p98 = scmp.eq.s32.totalorder %s18, 0
      %p99 = por %p97, %p98
      %p100 = scmp.ne.s32.totalorder %s92, %s94
      %p101 = scmp.eq.s32.totalorder %s23, 1
      %p102 = por %p100, %p101
      %p103 = scmp.ne.s32.totalorder %s94, %s95
      %p104 = scmp.eq.s32.totalorder %s23, 0
      %p105 = por %p103, %p104
      %p106 = scmp.ne.s32.totalorder %s94, %s95
      %p107 = scmp.eq.s32.totalorder %s24, 1
      %p108 = por %p106, %p107
      %p110 = scmp.ne.s32.totalorder %s95, %s109
      %p111 = scmp.eq.s32.totalorder %s24, 0
      %p112 = por %p110, %p111
      %s114 = sadd.s32 %s113, 1
      %p117 = scmp.eq.s32.totalorder %s18, 1
      %p118 = scmp.ne.s32.totalorder %s113, %s115
      %p119 = scmp.eq.s32.totalorder %s18, 0
      %p120 = por %p118, %p119
      %p121 = scmp.ne.s32.totalorder %s113, %s115
      %p122 = scmp.eq.s32.totalorder %s23, 1
      %p123 = por %p121, %p122
      %p124 = scmp.ne.s32.totalorder %s115, %s116
      %p125 = scmp.eq.s32.totalorder %s23, 0
      %p126 = por %p124, %p125
      %p127 = scmp.ne.s32.totalorder %s115, %s116
      %p128 = scmp.eq.s32.totalorder %s24, 1
      %p129 = por %p127, %p128
      %p131 = scmp.ne.s32.totalorder %s116, %s130
      %p132 = scmp.eq.s32.totalorder %s24, 0
      %p133 = por %p131, %p132
      %s134 = ssub.s32 %s25, %s37
      %s135 = ssub.s32 %s26, %s33
      %s136 = sor.u32 %s134, %s135
      %p137 = scmp.eq.s32.totalorder %s136, 0
      %s139 = sadd.s32 %s138, 1
      %s140 = scalar_select %p137, %s138, %s139
      %p143 = pneg %p137
      %p144 = scmp.eq.s32.totalorder %s18, 1
      %p145 = por %p143, %p144
      %p146 = scmp.ne.s32.totalorder %s138, %s141
      %p147 = scmp.eq.s32.totalorder %s18, 0
      %p148 = por %p146, %p147
      %p149 = scmp.ne.s32.totalorder %s138, %s141
      %p150 = scmp.eq.s32.totalorder %s23, 1
      %p151 = por %p149, %p150
      %p152 = scmp.ne.s32.totalorder %s141, %s142
      %p153 = scmp.eq.s32.totalorder %s23, 0
      %p154 = por %p152, %p153
      %p155 = scmp.ne.s32.totalorder %s141, %s142
      %p156 = scmp.eq.s32.totalorder %s24, 1
      %p157 = por %p155, %p156
      %p159 = scmp.ne.s32.totalorder %s142, %s158
      %p160 = scmp.eq.s32.totalorder %s24, 0
      %p161 = por %p159, %p160
      %p162 = scmp.le.s32.totalorder 1, %s18
      %p163 = scmp.lt.s32.totalorder %s18, 3
      %p164 = pnand %p162, %p163
      %p165 = pneg %p164
      // Predicated region
      $region9: #{diffusion_transformer_forward.8} parent=5 // pred_check
        _
      $region10: #{diffusion_transformer_forward.8} parent=5 // pred_check_branch
        %167 = sbr.rel (%p164) target = $region12
      $region11: #{diffusion_transformer_forward.8} parent=5 // pred_region
        %s168 = ssub.s32 %s18, 1
        // Predicated region
        $region13: #{diffusion_transformer_forward.8} parent=11 // pred_check
          %p169 = pneg %p84
        $region14: #{diffusion_transformer_forward.8} parent=11 // pred_check_branch
          %171 = sbr.rel (%p169) target = $region16
        $region15: #{diffusion_transformer_forward.8} parent=11 // pred_region
          %s173 = ssub.s32 128, 128
          %174 = vsyncadd [#allocation6], %s173
          %s175 = smul.addr %s28, 128
          %s176 = scalar_lea.hbm %s1, %s175
          %s178 = sshll.u32 [#allocation5], 4
          %s179 = int_to_ptr.vmem [resolvable:$true] %s178
          %181 = dma.hbm_to_vmem [thread:$0]  %s176, 128, %s179, [#allocation6]
        $region16: #{diffusion_transformer_forward.8} parent=11 // pred_fallthru
          _
        // Predicated region
        $region17: #{diffusion_transformer_forward.8} parent=11 // pred_check
          %p182 = pneg %p105
        $region18: #{diffusion_transformer_forward.8} parent=11 // pred_check_branch
          %184 = sbr.rel (%p182) target = $region20
        $region19: #{diffusion_transformer_forward.8} parent=11 // pred_region
          %s186 = ssub.s32 128, 128
          %187 = vsyncadd [#allocation6], %s186
          %s188 = sshll.u32 [#allocation7], 4
          %s189 = int_to_ptr.vmem [resolvable:$true] %s188
          %194 = dma.hbm_to_vmem [thread:$0]  %s2, 128, %s189, [#allocation6], 64, 64, 4
        $region20: #{diffusion_transformer_forward.8} parent=11 // pred_fallthru
          _
        // Predicated region
        $region21: #{diffusion_transformer_forward.8} parent=11 // pred_check
          %p195 = pneg %p126
        $region22: #{diffusion_transformer_forward.8} parent=11 // pred_check_branch
          %197 = sbr.rel (%p195) target = $region24
        $region23: #{diffusion_transformer_forward.8} parent=11 // pred_region
          %s199 = ssub.s32 16, 16
          %200 = vsyncadd [#allocation9], %s199
          %s202 = sshll.u32 [#allocation8], 4
          %s203 = int_to_ptr.vmem [resolvable:$true] %s202
          %205 = dma.hbm_to_vmem [thread:$0]  %s3, 16, %s203, [#allocation9]
        $region24: #{diffusion_transformer_forward.8} parent=11 // pred_fallthru
          _
      $region12: #{diffusion_transformer_forward.8} parent=5 // pred_fallthru
        _
      %p206 = scmp.lt.s32.totalorder %s18, 2
      // Predicated region
      $region25: #{diffusion_transformer_forward.8} parent=5 // pred_check
        %p207 = pneg %p206
      $region26: #{diffusion_transformer_forward.8} parent=5 // pred_check_branch
        %209 = sbr.rel (%p207) target = $region28
      $region27: #{diffusion_transformer_forward.8} parent=5 // pred_region
        // Predicated region
        $region29: #{diffusion_transformer_forward.8} parent=27 // pred_check
          %p210 = pneg %p52
        $region30: #{diffusion_transformer_forward.8} parent=27 // pred_check_branch
          %212 = sbr.rel (%p210) target = $region32
        $region31: #{diffusion_transformer_forward.8} parent=27 // pred_region
          %s213 = sand.u32 %s42, 1
          %s214 = scalar_lea.sflag [#allocation3], %s213
          %s215 = sand.u32 %s42, 1
          %s216 = smul.addr %s215, 8
          %s217 = scalar_lea.vmem [#allocation2], %s216
          %s219 = ssub.s32 128, 128
          %220 = vsyncadd %s214, %s219
          %s221 = sadd.s32 %s26, %s25
          %s222 = smul.addr %s221, 128
          %s223 = scalar_lea.hbm %s0, %s222
          %s225 = sshll.u32 %s217, 4
          %s226 = int_to_ptr.vmem [resolvable:$true] %s225
          %228 = dma.hbm_to_vmem [thread:$0]  %s223, 128, %s226, %s214
        $region32: #{diffusion_transformer_forward.8} parent=27 // pred_fallthru
          _
      $region28: #{diffusion_transformer_forward.8} parent=5 // pred_fallthru
        _
      %p229 = scmp.le.s32.totalorder 1, %s18
      %p230 = scmp.lt.s32.totalorder %s18, 3
      %p231 = pnand %p229, %p230
      %p232 = pneg %p231
      // Predicated region
      $region33: #{diffusion_transformer_forward.8} parent=5 // pred_check
        _
      $region34: #{diffusion_transformer_forward.8} parent=5 // pred_check_branch
        %234 = sbr.rel (%p231) target = $region36
      $region35: #{diffusion_transformer_forward.8} parent=5 // pred_region
        %s235 = ssub.s32 %s18, 1
        %s236 = sand.u32 %s45, 1
        %s237 = scalar_lea.sflag [#allocation3], %s236
        %s238 = sand.u32 %s45, 1
        %s239 = smul.addr %s238, 8
        %s240 = scalar_lea.vmem [#allocation2], %s239
        // Predicated region
        $region37: #{diffusion_transformer_forward.8} parent=35 // pred_check
          %p241 = pneg %p58
        $region38: #{diffusion_transformer_forward.8} parent=35 // pred_check_branch
          %243 = sbr.rel (%p241) target = $region40
        $region39: #{diffusion_transformer_forward.8} parent=35 // pred_region
          %244 = dma.done %s237, 128
        $region40: #{diffusion_transformer_forward.8} parent=35 // pred_fallthru
          _
        // Predicated region
        $region41: #{diffusion_transformer_forward.8} parent=35 // pred_check
          %p245 = pneg %p84
        $region42: #{diffusion_transformer_forward.8} parent=35 // pred_check_branch
          %247 = sbr.rel (%p245) target = $region44
        $region43: #{diffusion_transformer_forward.8} parent=35 // pred_region
          %248 = dma.done [#allocation6], 128
        $region44: #{diffusion_transformer_forward.8} parent=35 // pred_fallthru
          _
        // Predicated region
        $region45: #{diffusion_transformer_forward.8} parent=35 // pred_check
          %p249 = pneg %p105
        $region46: #{diffusion_transformer_forward.8} parent=35 // pred_check_branch
          %251 = sbr.rel (%p249) target = $region48
        $region47: #{diffusion_transformer_forward.8} parent=35 // pred_region
          %252 = dma.done [#allocation6], 128
        $region48: #{diffusion_transformer_forward.8} parent=35 // pred_fallthru
          _
        // Predicated region
        $region49: #{diffusion_transformer_forward.8} parent=35 // pred_check
          %p253 = pneg %p126
        $region50: #{diffusion_transformer_forward.8} parent=35 // pred_check_branch
          %255 = sbr.rel (%p253) target = $region52
        $region51: #{diffusion_transformer_forward.8} parent=35 // pred_region
          %256 = dma.done [#allocation9], 16
        $region52: #{diffusion_transformer_forward.8} parent=35 // pred_fallthru
          _
        %s257 = sand.u32 %s45, 1
        %s258 = scalar_lea.sflag [#allocation3], %s257
        %s259 = sand.u32 %s45, 1
        %s260 = smul.addr %s259, 8
        %s261 = scalar_lea.vmem [#allocation2], %s260
        %p262 = pneg %p58
        %p263 = pneg %p55
        %p264 = pneg %p84
        %p265 = pneg %p81
        %p266 = pneg %p105
        %p267 = pneg %p102
        %p268 = pneg %p126
        %p269 = pneg %p123
        %p270 = pneg %p154
        %p271 = pneg %p151
        %s272 = sand.u32 %s141, 1
        %s273 = scalar_lea.sflag [#allocation4], %s272
        %s274 = sand.u32 %s141, 1
        %s275 = smul.addr %s274, 8
        %s276 = scalar_lea.vmem [#allocation10], %s275
        %v278 = vld [vmem:[%s240] sm:$0xff]
        %v279 = vpack.c.bf16 %v278, %v278
        %v280 = vld [vmem:[#allocation7] sm:$0xf]
        %v281 = vld [vmem:[#allocation7 + $0x4] sm:$0xf]
        %v282 = vld [vmem:[#allocation8] sm:$0x1]
        %v284 = vlaneseq
        %v285 = vshrl.u32 %v284, 7
        %v286 = vsub.s32 0, %v285
        %v287 = vrot.slane %v282, %v286
        %v291 = vunpack.c.l.b16 %v280
        %v292 = vunpack.c.l.b16 %v281
        %v293 = vpack.c.b16 %v292, %v291
        %vm295 = vcmask 130048
        %v297 = vsel %vm295, %v279, 0
        %299 = vmatprep.subr.bf16.mxu0 0
        %300 = vmatpush1.bf16.msra.mxu0 %v293
        %301 = vmatprep.subr.bf16.mxu0 0
        %302 = vmatpush1.bf16.msra.mxu0 0
        %303 = vmatprep.subr.bf16.mxu0 0
        %304 = vmatpush1.bf16.msra.mxu0 0
        %305 = vmatprep.subr.bf16.mxu0 0
        %306 = vmatpush1.bf16.msra.mxu0 0
        %307 = vmatprep.subr.bf16.mxu0 0
        %308 = vmatpush1.bf16.msra.mxu0 0
        %309 = vmatprep.subr.bf16.mxu0 0
        %310 = vmatpush1.bf16.msra.mxu0 0
        %311 = vmatprep.subr.bf16.mxu0 0
        %312 = vmatpush1.bf16.msra.mxu0 0
        %313 = vmatprep.subr.bf16.mxu0 0
        %314 = vmatpush1.bf16.msra.mxu0 0
        %315 = vmatprep.subr.bf16.mxu0 0
        %316 = vmatpush1.bf16.msra.mxu0 0
        %317 = vmatprep.subr.bf16.mxu0 0
        %318 = vmatpush1.bf16.msra.mxu0 0
        %319 = vmatprep.subr.bf16.mxu0 0
        %320 = vmatpush1.bf16.msra.mxu0 0
        %321 = vmatprep.subr.bf16.mxu0 0
        %322 = vmatpush1.bf16.msra.mxu0 0
        %323 = vmatprep.subr.bf16.mxu0 0
        %324 = vmatpush1.bf16.msra.mxu0 0
        %325 = vmatprep.subr.bf16.mxu0 0
        %326 = vmatpush1.bf16.msra.mxu0 0
        %327 = vmatprep.subr.bf16.mxu0 0
        %328 = vmatpush1.bf16.msra.mxu0 0
        %329 = vmatprep.subr.bf16.mxu0 0
        %330 = vmatpush1.bf16.msra.mxu0 0
        %331 = vmatprep.mubr.bf16.mxu0 0
        %332 = vmatmul.mubr.bf16.gmra.mrb[0].mxu0 %v297
        %v333 = vpop.f32.mrb[0].mxu0
        %v334 = vadd.f32 %v287, %v333
        %v335 = vpop.f32.mrb[0].mxu0
        %v336 = vpop.f32.mrb[0].mxu0
        %v337 = vpop.f32.mrb[0].mxu0
        %338 = vdwg.mxu0
        %v339 = vld [vmem:[#allocation5] sm:$0xff]
        %v340 = vadd.f32 %v334, %v339
        %vm341 = vcmask 261120
        %342 = vst.msk [vmem:[%s276] sm:$0xff] %vm341, %v340
        %s343 = sand.u32 %s141, 1
        %s344 = scalar_lea.sflag [#allocation4], %s343
        %s345 = sand.u32 %s141, 1
        %s346 = smul.addr %s345, 8
        %s347 = scalar_lea.vmem [#allocation10], %s346
        // Predicated region
        $region53: #{diffusion_transformer_forward.8} parent=35 // pred_check
          %p348 = pneg %p151
        $region54: #{diffusion_transformer_forward.8} parent=35 // pred_check_branch
          %350 = sbr.rel (%p348) target = $region56
        $region55: #{diffusion_transformer_forward.8} parent=35 // pred_region
          %s352 = ssub.s32 128, 128
          %353 = vsyncadd %s344, %s352
          %s354 = sadd.s32 %s28, %s27
          %s355 = smul.addr %s354, 128
          %s356 = scalar_lea.hbm %s4, %s355
          %s358 = sshll.u32 %s347, 4
          %s359 = int_to_ptr.vmem [resolvable:$true] %s358
          %361 = dma.vmem_to_hbm [thread:$0]  %s359, 128, %s356, %s344
        $region56: #{diffusion_transformer_forward.8} parent=35 // pred_fallthru
          _
      $region36: #{diffusion_transformer_forward.8} parent=5 // pred_fallthru
        _
      %p362 = scmp.le.s32.totalorder 2, %s18
      // Predicated region
      $region57: #{diffusion_transformer_forward.8} parent=5 // pred_check
        %p363 = pneg %p362
      $region58: #{diffusion_transformer_forward.8} parent=5 // pred_check_branch
        %365 = sbr.rel (%p363) target = $region60
      $region59: #{diffusion_transformer_forward.8} parent=5 // pred_region
        %s366 = ssub.s32 %s18, 2
        // Predicated region
        $region61: #{diffusion_transformer_forward.8} parent=59 // pred_check
          %p367 = pneg %p157
        $region62: #{diffusion_transformer_forward.8} parent=59 // pred_check_branch
          %369 = sbr.rel (%p367) target = $region64
        $region63: #{diffusion_transformer_forward.8} parent=59 // pred_region
          %s370 = sand.u32 %s142, 1
          %s371 = scalar_lea.sflag [#allocation4], %s370
          %s372 = sand.u32 %s142, 1
          %s373 = smul.addr %s372, 8
          %s374 = scalar_lea.vmem [#allocation10], %s373
          %375 = dma.done %s371, 128
        $region64: #{diffusion_transformer_forward.8} parent=59 // pred_fallthru
          _
      $region60: #{diffusion_transformer_forward.8} parent=5 // pred_fallthru
        _
    $region6: #{diffusion_transformer_forward.8} parent=1 // loop_footer
      %s22 = sadd.s32 1, %s18
    $region7: #{diffusion_transformer_forward.8} parent=1 // loop_footer_branch
      %17 = sbr.rel target = $region3
    $region8: #{diffusion_transformer_forward.8} parent=1 // loop_exit
      _
    %376 = vsyncpa [#allocation3], 1
    %s377 = scalar_lea.sflag [#allocation3], 1
    %378 = vsyncpa %s377, 1
    %379 = vsyncpa [#allocation6], 1
    %380 = vsyncpa [#allocation9], 1
    %381 = vsyncpa [#allocation4], 1
    %s382 = scalar_lea.sflag [#allocation4], 1
    %383 = vsyncpa %s382, 1

// kernel: diffusion_transformer_forward.9
$region0: #{diffusion_transformer_forward.9}
  #allocation0 [shape = 'u32[]', space=smem, size = 0x4, offset = 0x4, fixed_abs, tag = 'smem constant byte address 0x4 - core index']
  #allocation1 [shape = 'u32[144,128]{1,0:T(1,128)}', space=vmem, size = 0x12000, scoped, tag = 'internal scratch']
  %s0 = inlined_call_operand.hbm [shape: f32[2,8,32], index: 0, kind: input, shape index: {}]
  %s1 = inlined_call_operand.hbm [shape: f32[2,1,32], index: 1, kind: input, shape index: {}]
  %s2 = inlined_call_operand.hbm [shape: f32[2,1,32], index: 2, kind: input, shape index: {}]
  %s3 = inlined_call_operand.hbm [shape: bf16[32,96], index: 3, kind: input, shape index: {}]
  %s4 = inlined_call_operand.hbm [shape: f32[1,96], index: 4, kind: input, shape index: {}]
  %s5 = inlined_call_operand.hbm [shape: bf16[2,8,32], index: 5, kind: output, shape index: {0}]
  %s6 = inlined_call_operand.hbm [shape: bf16[2,8,32], index: 6, kind: output, shape index: {1}]
  %s7 = inlined_call_operand.hbm [shape: bf16[2,8,32], index: 7, kind: output, shape index: {2}]
  %8 = xla_tuple %s5, %s6, %s7
  %s9 = sld [smem:[#allocation0]]
  $region89: #{diffusion_transformer_forward.9} parent=0
    _
  %s11 = ssub.s32 1, %s9
  %s12 = scalar_select 0, %s11, %s9
  $region1: #{diffusion_transformer_forward.9} parent=0
    #allocation2 [shape = 'u8[8192]{0}', space=vmem, size = 0x2000, scoped, tag = 'input window, operand 0']
    #allocation3 [shape = 's32[2]{0}', space=sflag, size = 0x8, scoped, tag = 'scoped memory for diffusion_transformer_forward.9']
    #allocation4 [shape = 's32[2]{0}', space=sflag, size = 0x8, scoped, tag = 'scoped memory for diffusion_transformer_forward.9']
    #allocation5 [shape = 'u8[1024]{0}', space=vmem, size = 0x400, scoped, tag = 'input window, operand 1']
    #allocation6 [shape = 's32[2]{0}', space=sflag, size = 0x8, scoped, tag = 'scoped memory for diffusion_transformer_forward.9']
    #allocation7 [shape = 'u8[1024]{0}', space=vmem, size = 0x400, scoped, tag = 'input window, operand 2']
    #allocation8 [shape = 'u8[8192]{0}', space=vmem, size = 0x2000, scoped, tag = 'input window, operand 3, single buffered']
    #allocation9 [shape = 's32[1]{0}', space=sflag, size = 0x4, scoped, tag = 'scoped memory for diffusion_transformer_forward.9']
    #allocation10 [shape = 'u8[512]{0}', space=vmem, size = 0x400, scoped, tag = 'input window, operand 4, single buffered']
    #allocation11 [shape = 'u8[4096]{0}', space=vmem, size = 0x1000, scoped, tag = 'output window, operand 0']
    #allocation12 [shape = 'u8[4096]{0}', space=vmem, size = 0x1000, scoped, tag = 'output window, operand 1']
    #allocation13 [shape = 's32[2]{0}', space=sflag, size = 0x8, scoped, tag = 'scoped memory for diffusion_transformer_forward.9']
    #allocation14 [shape = 'u8[4096]{0}', space=vmem, size = 0x1000, scoped, tag = 'output window, operand 2']
    %13 = vsyncpa [#allocation3], 0
    %s14 = scalar_lea.sflag [#allocation3], 1
    %15 = vsyncpa %s14, 0
    %16 = vsyncpa [#allocation6], 0
    %s17 = scalar_lea.sflag [#allocation6], 1
    %18 = vsyncpa %s17, 0
    %19 = vsyncpa [#allocation9], 0
    %20 = vsyncpa [#allocation4], 0
    %s21 = scalar_lea.sflag [#allocation4], 1
    %22 = vsyncpa %s21, 0
    %23 = vsyncpa [#allocation13], 0
    %s24 = scalar_lea.sflag [#allocation13], 1
    %25 = vsyncpa %s24, 0
    loop: start=0, step=1, limit=4
    $region2: #{diffusion_transformer_forward.9} parent=1 // loop_pre_header
      _
    $region3: #{diffusion_transformer_forward.9} parent=1 // loop_header
      %s27 = sphi 0, %s31
      %p28 = scmp.ge.s32.totalorder %s27, 4
      %s34 = sphi 0, %s46
      %s35 = sphi 0, %s42
      %s36 = sphi 0, %s34
      %s37 = sphi 0, %s35
      %s38 = sphi 0, %s36
      %s39 = sphi 0, %s37
      %s51 = sphi 0, %s53
      %s54 = sphi 0, %s51
      %s55 = sphi 0, %s54
      %s71 = sphi 0, %s55
      %s77 = sphi 0, %s79
      %s80 = sphi 0, %s77
      %s81 = sphi 0, %s80
      %s97 = sphi 0, %s81
      %s103 = sphi 0, %s105
      %s106 = sphi 0, %s103
      %s107 = sphi 0, %s106
      %s123 = sphi 0, %s107
      %s127 = sphi 0, %s127
      %s129 = sphi 0, %s127
      %s130 = sphi 0, %s129
      %s144 = sphi 0, %s130
      %s148 = sphi 0, %s148
      %s150 = sphi 0, %s148
      %s151 = sphi 0, %s150
      %s165 = sphi 0, %s151
      %s173 = sphi 0, %s175
      %s176 = sphi 0, %s173
      %s177 = sphi 0, %s176
      %s193 = sphi 0, %s177
      %s201 = sphi 0, %s203
      %s204 = sphi 0, %s201
      %s205 = sphi 0, %s204
      %s221 = sphi 0, %s205
      %s229 = sphi 0, %s231
      %s232 = sphi 0, %s229
      %s233 = sphi 0, %s232
      %s249 = sphi 0, %s233
    $region4: #{diffusion_transformer_forward.9} parent=1 // loop_header_branch
      %30 = sbr.rel (%p28) target = $region8
    $region5: #{diffusion_transformer_forward.9} parent=1 // loop_body
      %s32 = ssub.s32 %s27, 1
      %s33 = ssub.s32 %s27, 2
      %s40 = sadd.s32 1, %s35
      %p41 = scmp.ge.s32.totalorder %s40, 1
      %s42 = scalar_select %p41, 0, %s40
      %s43 = sadd.s32 1, %s34
      %s44 = scalar_select %p41, %s43, %s34
      %p45 = scmp.ge.s32.totalorder %s44, 2
      %s46 = scalar_select %p45, 0, %s44
      %s47 = ssub.s32 %s34, %s46
      %s48 = ssub.s32 %s35, %s42
      %s49 = sor.u32 %s47, %s48
      %p50 = scmp.eq.s32.totalorder %s49, 0
      %s52 = sadd.s32 %s51, 1
      %s53 = scalar_select %p50, %s51, %s52
      %p56 = pneg %p50
      %p57 = scmp.eq.s32.totalorder %s27, 1
      %p58 = por %p56, %p57
      %p59 = scmp.ne.s32.totalorder %s51, %s54
      %p60 = scmp.eq.s32.totalorder %s27, 0
      %p61 = por %p59, %p60
      %p62 = scmp.ne.s32.totalorder %s51, %s54
      %p63 = scmp.eq.s32.totalorder %s32, 1
      %p64 = por %p62, %p63
      %p65 = scmp.ne.s32.totalorder %s54, %s55
      %p66 = scmp.eq.s32.totalorder %s32, 0
      %p67 = por %p65, %p66
      %p68 = scmp.ne.s32.totalorder %s54, %s55
      %p69 = scmp.eq.s32.totalorder %s33, 1
      %p70 = por %p68, %p69
      %p72 = scmp.ne.s32.totalorder %s55, %s71
      %p73 = scmp.eq.s32.totalorder %s33, 0
      %p74 = por %p72, %p73
      %s75 = ssub.s32 %s34, %s46
      %p76 = scmp.eq.s32.totalorder %s75, 0
      %s78 = sadd.s32 %s77, 1
      %s79 = scalar_select %p76, %s77, %s78
      %p82 = pneg %p76
      %p83 = scmp.eq.s32.totalorder %s27, 1
      %p84 = por %p82, %p83
      %p85 = scmp.ne.s32.totalorder %s77, %s80
      %p86 = scmp.eq.s32.totalorder %s27, 0
      %p87 = por %p85, %p86
      %p88 = scmp.ne.s32.totalorder %s77, %s80
      %p89 = scmp.eq.s32.totalorder %s32, 1
      %p90 = por %p88, %p89
      %p91 = scmp.ne.s32.totalorder %s80, %s81
      %p92 = scmp.eq.s32.totalorder %s32, 0
      %p93 = por %p91, %p92
      %p94 = scmp.ne.s32.totalorder %s80, %s81
      %p95 = scmp.eq.s32.totalorder %s33, 1
      %p96 = por %p94, %p95
      %p98 = scmp.ne.s32.totalorder %s81, %s97
      %p99 = scmp.eq.s32.totalorder %s33, 0
      %p100 = por %p98, %p99
      %s101 = ssub.s32 %s34, %s46
      %p102 = scmp.eq.s32.totalorder %s101, 0
      %s104 = sadd.s32 %s103, 1
      %s105 = scalar_select %p102, %s103, %s104
      %p108 = pneg %p102
      %p109 = scmp.eq.s32.totalorder %s27, 1
      %p110 = por %p108, %p109
      %p111 = scmp.ne.s32.totalorder %s103, %s106
      %p112 = scmp.eq.s32.totalorder %s27, 0
      %p113 = por %p111, %p112
      %p114 = scmp.ne.s32.totalorder %s103, %s106
      %p115 = scmp.eq.s32.totalorder %s32, 1
      %p116 = por %p114, %p115
      %p117 = scmp.ne.s32.totalorder %s106, %s107
      %p118 = scmp.eq.s32.totalorder %s32, 0
      %p119 = por %p117, %p118
      %p120 = scmp.ne.s32.totalorder %s106, %s107
      %p121 = scmp.eq.s32.totalorder %s33, 1
      %p122 = por %p120, %p121
      %p124 = scmp.ne.s32.totalorder %s107, %s123
      %p125 = scmp.eq.s32.totalorder %s33, 0
      %p126 = por %p124, %p125
      %s128 = sadd.s32 %s127, 1
      %p131 = scmp.eq.s32.totalorder %s27, 1
      %p132 = scmp.ne.s32.totalorder %s127, %s129
      %p133 = scmp.eq.s32.totalorder %s27, 0
      %p134 = por %p132, %p133
      %p135 = scmp.ne.s32.totalorder %s127, %s129
      %p136 = scmp.eq.s32.totalorder %s32, 1
      %p137 = por %p135, %p136
      %p138 = scmp.ne.s32.totalorder %s129, %s130
      %p139 = scmp.eq.s32.totalorder %s32, 0
      %p140 = por %p138, %p139
      %p141 = scmp.ne.s32.totalorder %s129, %s130
      %p142 = scmp.eq.s32.totalorder %s33, 1
      %p143 = por %p141, %p142
      %p145 = scmp.ne.s32.totalorder %s130, %s144
      %p146 = scmp.eq.s32.totalorder %s33, 0
      %p147 = por %p145, %p146
      %s149 = sadd.s32 %s148, 1
      %p152 = scmp.eq.s32.totalorder %s27, 1
      %p153 = scmp.ne.s32.totalorder %s148, %s150
      %p154 = scmp.eq.s32.totalorder %s27, 0
      %p155 = por %p153, %p154
      %p156 = scmp.ne.s32.totalorder %s148, %s150
      %p157 = scmp.eq.s32.totalorder %s32, 1
      %p158 = por %p156, %p157
      %p159 = scmp.ne.s32.totalorder %s150, %s151
      %p160 = scmp.eq.s32.totalorder %s32, 0
      %p161 = por %p159, %p160
      %p162 = scmp.ne.s32.totalorder %s150, %s151
      %p163 = scmp.eq.s32.totalorder %s33, 1
      %p164 = por %p162, %p163
      %p166 = scmp.ne.s32.totalorder %s151, %s165
      %p167 = scmp.eq.s32.totalorder %s33, 0
      %p168 = por %p166, %p167
      %s169 = ssub.s32 %s34, %s46
      %s170 = ssub.s32 %s35, %s42
      %s171 = sor.u32 %s169, %s170
      %p172 = scmp.eq.s32.totalorder %s171, 0
      %s174 = sadd.s32 %s173, 1
      %s175 = scalar_select %p172, %s173, %s174
      %p178 = pneg %p172
      %p179 = scmp.eq.s32.totalorder %s27, 1
      %p180 = por %p178, %p179
      %p181 = scmp.ne.s32.totalorder %s173, %s176
      %p182 = scmp.eq.s32.totalorder %s27, 0
      %p183 = por %p181, %p182
      %p184 = scmp.ne.s32.totalorder %s173, %s176
      %p185 = scmp.eq.s32.totalorder %s32, 1
      %p186 = por %p184, %p185
      %p187 = scmp.ne.s32.totalorder %s176, %s177
      %p188 = scmp.eq.s32.totalorder %s32, 0
      %p189 = por %p187, %p188
      %p190 = scmp.ne.s32.totalorder %s176, %s177
      %p191 = scmp.eq.s32.totalorder %s33, 1
      %p192 = por %p190, %p191
      %p194 = scmp.ne.s32.totalorder %s177, %s193
      %p195 = scmp.eq.s32.totalorder %s33, 0
      %p196 = por %p194, %p195
      %s197 = ssub.s32 %s34, %s46
      %s198 = ssub.s32 %s35, %s42
      %s199 = sor.u32 %s197, %s198
      %p200 = scmp.eq.s32.totalorder %s199, 0
      %s202 = sadd.s32 %s201, 1
      %s203 = scalar_select %p200, %s201, %s202
      %p206 = pneg %p200
      %p207 = scmp.eq.s32.totalorder %s27, 1
      %p208 = por %p206, %p207
      %p209 = scmp.ne.s32.totalorder %s201, %s204
      %p210 = scmp.eq.s32.totalorder %s27, 0
      %p211 = por %p209, %p210
      %p212 = scmp.ne.s32.totalorder %s201, %s204
      %p213 = scmp.eq.s32.totalorder %s32, 1
      %p214 = por %p212, %p213
      %p215 = scmp.ne.s32.totalorder %s204, %s205
      %p216 = scmp.eq.s32.totalorder %s32, 0
      %p217 = por %p215, %p216
      %p218 = scmp.ne.s32.totalorder %s204, %s205
      %p219 = scmp.eq.s32.totalorder %s33, 1
      %p220 = por %p218, %p219
      %p222 = scmp.ne.s32.totalorder %s205, %s221
      %p223 = scmp.eq.s32.totalorder %s33, 0
      %p224 = por %p222, %p223
      %s225 = ssub.s32 %s34, %s46
      %s226 = ssub.s32 %s35, %s42
      %s227 = sor.u32 %s225, %s226
      %p228 = scmp.eq.s32.totalorder %s227, 0
      %s230 = sadd.s32 %s229, 1
      %s231 = scalar_select %p228, %s229, %s230
      %p234 = pneg %p228
      %p235 = scmp.eq.s32.totalorder %s27, 1
      %p236 = por %p234, %p235
      %p237 = scmp.ne.s32.totalorder %s229, %s232
      %p238 = scmp.eq.s32.totalorder %s27, 0
      %p239 = por %p237, %p238
      %p240 = scmp.ne.s32.totalorder %s229, %s232
      %p241 = scmp.eq.s32.totalorder %s32, 1
      %p242 = por %p240, %p241
      %p243 = scmp.ne.s32.totalorder %s232, %s233
      %p244 = scmp.eq.s32.totalorder %s32, 0
      %p245 = por %p243, %p244
      %p246 = scmp.ne.s32.totalorder %s232, %s233
      %p247 = scmp.eq.s32.totalorder %s33, 1
      %p248 = por %p246, %p247
      %p250 = scmp.ne.s32.totalorder %s233, %s249
      %p251 = scmp.eq.s32.totalorder %s33, 0
      %p252 = por %p250, %p251
      %p253 = scmp.le.s32.totalorder 1, %s27
      %p254 = scmp.lt.s32.totalorder %s27, 3
      %p255 = pnand %p253, %p254
      %p256 = pneg %p255
      // Predicated region
      $region9: #{diffusion_transformer_forward.9} parent=5 // pred_check
        _
      $region10: #{diffusion_transformer_forward.9} parent=5 // pred_check_branch
        %258 = sbr.rel (%p255) target = $region12
      $region11: #{diffusion_transformer_forward.9} parent=5 // pred_region
        %s259 = ssub.s32 %s27, 1
        // Predicated region
        $region13: #{diffusion_transformer_forward.9} parent=11 // pred_check
          %p260 = pneg %p140
        $region14: #{diffusion_transformer_forward.9} parent=11 // pred_check_branch
          %262 = sbr.rel (%p260) target = $region16
        $region15: #{diffusion_transformer_forward.9} parent=11 // pred_region
          %s264 = ssub.s32 256, 256
          %265 = vsyncadd [#allocation9], %s264
          %s266 = sshll.u32 [#allocation8], 4
          %s267 = int_to_ptr.vmem [resolvable:$true] %s266
          %272 = dma.hbm_to_vmem [thread:$0]  %s3, 256, %s267, [#allocation9], 64, 64, 4
        $region16: #{diffusion_transformer_forward.9} parent=11 // pred_fallthru
          _
        // Predicated region
        $region17: #{diffusion_transformer_forward.9} parent=11 // pred_check
          %p273 = pneg %p161
        $region18: #{diffusion_transformer_forward.9} parent=11 // pred_check_branch
          %275 = sbr.rel (%p273) target = $region20
        $region19: #{diffusion_transformer_forward.9} parent=11 // pred_region
          %s277 = ssub.s32 16, 16
          %278 = vsyncadd [#allocation9], %s277
          %s280 = sshll.u32 [#allocation10], 4
          %s281 = int_to_ptr.vmem [resolvable:$true] %s280
          %283 = dma.hbm_to_vmem [thread:$0]  %s4, 16, %s281, [#allocation9]
        $region20: #{diffusion_transformer_forward.9} parent=11 // pred_fallthru
          _
      $region12: #{diffusion_transformer_forward.9} parent=5 // pred_fallthru
        _
      %p284 = scmp.lt.s32.totalorder %s27, 2
      // Predicated region
      $region21: #{diffusion_transformer_forward.9} parent=5 // pred_check
        %p285 = pneg %p284
      $region22: #{diffusion_transformer_forward.9} parent=5 // pred_check_branch
        %287 = sbr.rel (%p285) target = $region24
      $region23: #{diffusion_transformer_forward.9} parent=5 // pred_region
        // Predicated region
        $region25: #{diffusion_transformer_forward.9} parent=23 // pred_check
          %p288 = pneg %p61
        $region26: #{diffusion_transformer_forward.9} parent=23 // pred_check_branch
          %290 = sbr.rel (%p288) target = $region28
        $region27: #{diffusion_transformer_forward.9} parent=23 // pred_region
          %s291 = sand.u32 %s51, 1
          %s292 = scalar_lea.sflag [#allocation3], %s291
          %s293 = sand.u32 %s51, 1
          %s294 = smul.addr %s293, 8
          %s295 = scalar_lea.vmem [#allocation2], %s294
          %s297 = ssub.s32 128, 128
          %298 = vsyncadd %s292, %s297
          %s299 = sadd.s32 %s35, %s34
          %s300 = smul.addr %s299, 128
          %s301 = scalar_lea.hbm %s0, %s300
          %s303 = sshll.u32 %s295, 4
          %s304 = int_to_ptr.vmem [resolvable:$true] %s303
          %306 = dma.hbm_to_vmem [thread:$0]  %s301, 128, %s304, %s292
        $region28: #{diffusion_transformer_forward.9} parent=23 // pred_fallthru
          _
        // Predicated region
        $region29: #{diffusion_transformer_forward.9} parent=23 // pred_check
          %p307 = pneg %p87
        $region30: #{diffusion_transformer_forward.9} parent=23 // pred_check_branch
          %309 = sbr.rel (%p307) target = $region32
        $region31: #{diffusion_transformer_forward.9} parent=23 // pred_region
          %s310 = sand.u32 %s27, 1
          %s311 = scalar_lea.sflag [#allocation6], %s310
          %s312 = sand.u32 %s77, 1
          %s313 = scalar_lea.vmem [#allocation5], %s312
          %s315 = ssub.s32 16, 16
          %316 = vsyncadd %s311, %s315
          %s317 = smul.addr %s34, 16
          %s318 = scalar_lea.hbm %s1, %s317
          %s320 = sshll.u32 %s313, 4
          %s321 = int_to_ptr.vmem [resolvable:$true] %s320
          %323 = dma.hbm_to_vmem [thread:$0]  %s318, 16, %s321, %s311
        $region32: #{diffusion_transformer_forward.9} parent=23 // pred_fallthru
          _
        // Predicated region
        $region33: #{diffusion_transformer_forward.9} parent=23 // pred_check
          %p324 = pneg %p113
        $region34: #{diffusion_transformer_forward.9} parent=23 // pred_check_branch
          %326 = sbr.rel (%p324) target = $region36
        $region35: #{diffusion_transformer_forward.9} parent=23 // pred_region
          %s327 = sand.u32 %s27, 1
          %s328 = scalar_lea.sflag [#allocation6], %s327
          %s329 = sand.u32 %s103, 1
          %s330 = scalar_lea.vmem [#allocation7], %s329
          %s332 = ssub.s32 16, 16
          %333 = vsyncadd %s328, %s332
          %s334 = smul.addr %s34, 16
          %s335 = scalar_lea.hbm %s2, %s334
          %s337 = sshll.u32 %s330, 4
          %s338 = int_to_ptr.vmem [resolvable:$true] %s337
          %340 = dma.hbm_to_vmem [thread:$0]  %s335, 16, %s338, %s328
        $region36: #{diffusion_transformer_forward.9} parent=23 // pred_fallthru
          _
      $region24: #{diffusion_transformer_forward.9} parent=5 // pred_fallthru
        _
      %p341 = scmp.le.s32.totalorder 1, %s27
      %p342 = scmp.lt.s32.totalorder %s27, 3
      %p343 = pnand %p341, %p342
      %p344 = pneg %p343
      // Predicated region
      $region37: #{diffusion_transformer_forward.9} parent=5 // pred_check
        _
      $region38: #{diffusion_transformer_forward.9} parent=5 // pred_check_branch
        %346 = sbr.rel (%p343) target = $region40
      $region39: #{diffusion_transformer_forward.9} parent=5 // pred_region
        %s347 = ssub.s32 %s27, 1
        %s348 = sand.u32 %s54, 1
        %s349 = scalar_lea.sflag [#allocation3], %s348
        %s350 = sand.u32 %s54, 1
        %s351 = smul.addr %s350, 8
        %s352 = scalar_lea.vmem [#allocation2], %s351
        // Predicated region
        $region41: #{diffusion_transformer_forward.9} parent=39 // pred_check
          %p353 = pneg %p67
        $region42: #{diffusion_transformer_forward.9} parent=39 // pred_check_branch
          %355 = sbr.rel (%p353) target = $region44
        $region43: #{diffusion_transformer_forward.9} parent=39 // pred_region
          %356 = dma.done %s349, 128
        $region44: #{diffusion_transformer_forward.9} parent=39 // pred_fallthru
          _
        %s357 = sand.u32 %s32, 1
        %s358 = scalar_lea.sflag [#allocation6], %s357
        %s359 = sand.u32 %s80, 1
        %s360 = scalar_lea.vmem [#allocation5], %s359
        // Predicated region
        $region45: #{diffusion_transformer_forward.9} parent=39 // pred_check
          %p361 = pneg %p93
        $region46: #{diffusion_transformer_forward.9} parent=39 // pred_check_branch
          %363 = sbr.rel (%p361) target = $region48
        $region47: #{diffusion_transformer_forward.9} parent=39 // pred_region
          %364 = dma.done %s358, 16
        $region48: #{diffusion_transformer_forward.9} parent=39 // pred_fallthru
          _
        %s365 = sand.u32 %s32, 1
        %s366 = scalar_lea.sflag [#allocation6], %s365
        %s367 = sand.u32 %s106, 1
        %s368 = scalar_lea.vmem [#allocation7], %s367
        // Predicated region
        $region49: #{diffusion_transformer_forward.9} parent=39 // pred_check
          %p369 = pneg %p119
        $region50: #{diffusion_transformer_forward.9} parent=39 // pred_check_branch
          %371 = sbr.rel (%p369) target = $region52
        $region51: #{diffusion_transformer_forward.9} parent=39 // pred_region
          %372 = dma.done %s366, 16
        $region52: #{diffusion_transformer_forward.9} parent=39 // pred_fallthru
          _
        // Predicated region
        $region53: #{diffusion_transformer_forward.9} parent=39 // pred_check
          %p373 = pneg %p140
        $region54: #{diffusion_transformer_forward.9} parent=39 // pred_check_branch
          %375 = sbr.rel (%p373) target = $region56
        $region55: #{diffusion_transformer_forward.9} parent=39 // pred_region
          %376 = dma.done [#allocation9], 256
        $region56: #{diffusion_transformer_forward.9} parent=39 // pred_fallthru
          _
        // Predicated region
        $region57: #{diffusion_transformer_forward.9} parent=39 // pred_check
          %p377 = pneg %p161
        $region58: #{diffusion_transformer_forward.9} parent=39 // pred_check_branch
          %379 = sbr.rel (%p377) target = $region60
        $region59: #{diffusion_transformer_forward.9} parent=39 // pred_region
          %380 = dma.done [#allocation9], 16
        $region60: #{diffusion_transformer_forward.9} parent=39 // pred_fallthru
          _
        %s381 = sand.u32 %s54, 1
        %s382 = scalar_lea.sflag [#allocation3], %s381
        %s383 = sand.u32 %s54, 1
        %s384 = smul.addr %s383, 8
        %s385 = scalar_lea.vmem [#allocation2], %s384
        %p386 = pneg %p67
        %p387 = pneg %p64
        %s388 = sand.u32 %s32, 1
        %s389 = scalar_lea.sflag [#allocation6], %s388
        %s390 = sand.u32 %s80, 1
        %s391 = scalar_lea.vmem [#allocation5], %s390
        %p392 = pneg %p93
        %p393 = pneg %p90
        %s394 = sand.u32 %s32, 1
        %s395 = scalar_lea.sflag [#allocation6], %s394
        %s396 = sand.u32 %s106, 1
        %s397 = scalar_lea.vmem [#allocation7], %s396
        %p398 = pneg %p119
        %p399 = pneg %p116
        %p400 = pneg %p140
        %p401 = pneg %p137
        %p402 = pneg %p161
        %p403 = pneg %p158
        %p404 = pneg %p189
        %p405 = pneg %p186
        %s406 = sand.u32 %s176, 1
        %s407 = scalar_lea.sflag [#allocation4], %s406
        %s408 = sand.u32 %s176, 1
        %s409 = smul.addr %s408, 4
        %s410 = scalar_lea.vmem [#allocation11], %s409
        %p411 = pneg %p217
        %p412 = pneg %p214
        %s413 = sand.u32 %s32, 1
        %s414 = scalar_lea.sflag [#allocation13], %s413
        %s415 = sand.u32 %s204, 1
        %s416 = smul.addr %s415, 4
        %s417 = scalar_lea.vmem [#allocation12], %s416
        %p418 = pneg %p245
        %p419 = pneg %p242
        %s420 = sand.u32 %s32, 1
        %s421 = scalar_lea.sflag [#allocation13], %s420
        %s422 = sand.u32 %s232, 1
        %s423 = smul.addr %s422, 4
        %s424 = scalar_lea.vmem [#allocation14], %s423
        %v426 = vld [vmem:[%s352] sm:$0xff]
        %vm427 = vcmask 261120
        %v428 = vsel %vm427, %v426, 0.0
        %429 = vadd.xlane.f32.xlu0 %v428
        %v430 = vpop.xlane.xlu0 %429
        %v431 = vrcp.pop 32.0
        %v432 = vmul.f32 %v430, %v431
        %v433 = vsub.f32 %v426, %v432
        %v434 = vmul.f32 %v433, %v433
        %v435 = vsel %vm427, %v434, 0.0
        %436 = vadd.xlane.f32.xlu0 %v435
        %v437 = vpop.xlane.xlu0 %436
        %v438 = vmul.f32 %v437, %v431
        %v439 = vadd.f32 %v438, 1e-05
        %v440 = vrsqrt.pop %v439
        %v441 = vmul.f32 %v433, %v440
        %v442 = vld [vmem:[%s360] sm:$0x1]
        %v443 = vadd.f32 %v442, 1.0
        %v445 = vlaneseq
        %v446 = vshrl.u32 %v445, 7
        %v447 = vsub.s32 0, %v446
        %v448 = vrot.slane %v443, %v447
        %v450 = vmul.f32 %v441, %v448
        %v451 = vld [vmem:[%s368] sm:$0x1]
        %v453 = vlaneseq
        %v454 = vshrl.u32 %v453, 7
        %v455 = vsub.s32 0, %v454
        %v456 = vrot.slane %v451, %v455
        %v458 = vadd.f32 %v450, %v456
        %v459 = vpack.c.bf16 %v458, %v458
        %v460 = vld [vmem:[#allocation8] sm:$0xf]
        %v461 = vld [vmem:[#allocation8 + $0x4] sm:$0xf]
        %v462 = vld [vmem:[#allocation8 + $0x8] sm:$0xf]
        %v463 = vld [vmem:[#allocation8 + $0xc] sm:$0xf]
        %v464 = vld [vmem:[#allocation10] sm:$0x1]
        %v466 = vlaneseq
        %v467 = vshrl.u32 %v466, 7
        %v468 = vsub.s32 0, %v467
        %v469 = vrot.slane %v464, %v468
        %v475 = vunpack.c.l.b16 %v460
        %v476 = vunpack.c.l.b16 %v461
        %v477 = vunpack.c.l.b16 %v462
        %v478 = vunpack.c.l.b16 %v463
        %v479 = vpack.c.b16 %v476, %v475
        %v480 = vpack.c.b16 %v478, %v477
        %v484 = vsel %vm427, %v459, 0
        %486 = vmatprep.subr.bf16.mxu0 0
        %487 = vmatpush1.bf16.msra.mxu0 %v479
        %488 = vmatprep.subr.bf16.mxu0 0
        %489 = vmatpush1.bf16.msra.mxu0 %v480
        %490 = vmatprep.subr.bf16.mxu0 0
        %491 = vmatpush1.bf16.msra.mxu0 0
        %492 = vmatprep.subr.bf16.mxu0 0
        %493 = vmatpush1.bf16.msra.mxu0 0
        %494 = vmatprep.subr.bf16.mxu0 0
        %495 = vmatpush1.bf16.msra.mxu0 0
        %496 = vmatprep.subr.bf16.mxu0 0
        %497 = vmatpush1.bf16.msra.mxu0 0
        %498 = vmatprep.subr.bf16.mxu0 0
        %499 = vmatpush1.bf16.msra.mxu0 0
        %500 = vmatprep.subr.bf16.mxu0 0
        %501 = vmatpush1.bf16.msra.mxu0 0
        %502 = vmatprep.subr.bf16.mxu0 0
        %503 = vmatpush1.bf16.msra.mxu0 0
        %504 = vmatprep.subr.bf16.mxu0 0
        %505 = vmatpush1.bf16.msra.mxu0 0
        %506 = vmatprep.subr.bf16.mxu0 0
        %507 = vmatpush1.bf16.msra.mxu0 0
        %508 = vmatprep.subr.bf16.mxu0 0
        %509 = vmatpush1.bf16.msra.mxu0 0
        %510 = vmatprep.subr.bf16.mxu0 0
        %511 = vmatpush1.bf16.msra.mxu0 0
        %512 = vmatprep.subr.bf16.mxu0 0
        %513 = vmatpush1.bf16.msra.mxu0 0
        %514 = vmatprep.subr.bf16.mxu0 0
        %515 = vmatpush1.bf16.msra.mxu0 0
        %516 = vmatprep.subr.bf16.mxu0 0
        %517 = vmatpush1.bf16.msra.mxu0 0
        %518 = vmatprep.mubr.bf16.mxu0 0
        %519 = vmatmul.mubr.bf16.gmra.mrb[0].mxu0 %v484
        %v520 = vpop.f32.mrb[0].mxu0
        %v521 = vadd.f32 %v469, %v520
        %v522 = vpop.f32.mrb[0].mxu0
        %v523 = vpop.f32.mrb[0].mxu0
        %v524 = vpop.f32.mrb[0].mxu0
        %525 = vdwg.mxu0
        %v526 = vpack.c.bf16 %v521, %v521
        %vm527 = vcmask 257024
        %528 = vst.msk [vmem:[%s410] sm:$0xf] %vm527, %v526
        %v530 = vunpack.c.l.b16 %v526
        %v531 = vpack.c.b16 %v530, %v530
        %532 = vrot.lane.b32.xlu0 %v531, 96
        %v533 = vpop.permute.xlu0 %532
        %535 = vst.msk [vmem:[%s417] sm:$0xf] %vm527, %v533
        %536 = vrot.lane.b32.xlu0 %v531, 64
        %v537 = vpop.permute.xlu0 %536
        %539 = vst.msk [vmem:[%s424] sm:$0xf] %vm527, %v537
        %s540 = sand.u32 %s176, 1
        %s541 = scalar_lea.sflag [#allocation4], %s540
        %s542 = sand.u32 %s176, 1
        %s543 = smul.addr %s542, 4
        %s544 = scalar_lea.vmem [#allocation11], %s543
        %s545 = sand.u32 %s32, 1
        %s546 = scalar_lea.sflag [#allocation13], %s545
        %s547 = sand.u32 %s204, 1
        %s548 = smul.addr %s547, 4
        %s549 = scalar_lea.vmem [#allocation12], %s548
        %s550 = sand.u32 %s32, 1
        %s551 = scalar_lea.sflag [#allocation13], %s550
        %s552 = sand.u32 %s232, 1
        %s553 = smul.addr %s552, 4
        %s554 = scalar_lea.vmem [#allocation14], %s553
        // Predicated region
        $region61: #{diffusion_transformer_forward.9} parent=39 // pred_check
          %p555 = pneg %p186
        $region62: #{diffusion_transformer_forward.9} parent=39 // pred_check_branch
          %557 = sbr.rel (%p555) target = $region64
        $region63: #{diffusion_transformer_forward.9} parent=39 // pred_region
          %s559 = ssub.s32 64, 64
          %560 = vsyncadd %s541, %s559
          %s561 = sadd.s32 %s37, %s36
          %s562 = smul.addr %s561, 64
          %s563 = scalar_lea.hbm %s5, %s562
          %s565 = sshll.u32 %s544, 4
          %s566 = int_to_ptr.vmem [resolvable:$true] %s565
          %568 = dma.vmem_to_hbm [thread:$0]  %s566, 64, %s563, %s541
        $region64: #{diffusion_transformer_forward.9} parent=39 // pred_fallthru
          _
        // Predicated region
        $region65: #{diffusion_transformer_forward.9} parent=39 // pred_check
          %p569 = pneg %p214
        $region66: #{diffusion_transformer_forward.9} parent=39 // pred_check_branch
          %571 = sbr.rel (%p569) target = $region68
        $region67: #{diffusion_transformer_forward.9} parent=39 // pred_region
          %s573 = ssub.s32 64, 64
          %574 = vsyncadd %s546, %s573
          %s575 = sadd.s32 %s37, %s36
          %s576 = smul.addr %s575, 64
          %s577 = scalar_lea.hbm %s6, %s576
          %s579 = sshll.u32 %s549, 4
          %s580 = int_to_ptr.vmem [resolvable:$true] %s579
          %582 = dma.vmem_to_hbm [thread:$0]  %s580, 64, %s577, %s546
        $region68: #{diffusion_transformer_forward.9} parent=39 // pred_fallthru
          _
        // Predicated region
        $region69: #{diffusion_transformer_forward.9} parent=39 // pred_check
          %p583 = pneg %p242
        $region70: #{diffusion_transformer_forward.9} parent=39 // pred_check_branch
          %585 = sbr.rel (%p583) target = $region72
        $region71: #{diffusion_transformer_forward.9} parent=39 // pred_region
          %s587 = ssub.s32 64, 64
          %588 = vsyncadd %s551, %s587
          %s589 = sadd.s32 %s37, %s36
          %s590 = smul.addr %s589, 64
          %s591 = scalar_lea.hbm %s7, %s590
          %s593 = sshll.u32 %s554, 4
          %s594 = int_to_ptr.vmem [resolvable:$true] %s593
          %596 = dma.vmem_to_hbm [thread:$0]  %s594, 64, %s591, %s551
        $region72: #{diffusion_transformer_forward.9} parent=39 // pred_fallthru
          _
      $region40: #{diffusion_transformer_forward.9} parent=5 // pred_fallthru
        _
      %p597 = scmp.le.s32.totalorder 2, %s27
      // Predicated region
      $region73: #{diffusion_transformer_forward.9} parent=5 // pred_check
        %p598 = pneg %p597
      $region74: #{diffusion_transformer_forward.9} parent=5 // pred_check_branch
        %600 = sbr.rel (%p598) target = $region76
      $region75: #{diffusion_transformer_forward.9} parent=5 // pred_region
        %s601 = ssub.s32 %s27, 2
        // Predicated region
        $region77: #{diffusion_transformer_forward.9} parent=75 // pred_check
          %p602 = pneg %p192
        $region78: #{diffusion_transformer_forward.9} parent=75 // pred_check_branch
          %604 = sbr.rel (%p602) target = $region80
        $region79: #{diffusion_transformer_forward.9} parent=75 // pred_region
          %s605 = sand.u32 %s177, 1
          %s606 = scalar_lea.sflag [#allocation4], %s605
          %s607 = sand.u32 %s177, 1
          %s608 = smul.addr %s607, 4
          %s609 = scalar_lea.vmem [#allocation11], %s608
          %610 = dma.done %s606, 64
        $region80: #{diffusion_transformer_forward.9} parent=75 // pred_fallthru
          _
        // Predicated region
        $region81: #{diffusion_transformer_forward.9} parent=75 // pred_check
          %p611 = pneg %p220
        $region82: #{diffusion_transformer_forward.9} parent=75 // pred_check_branch
          %613 = sbr.rel (%p611) target = $region84
        $region83: #{diffusion_transformer_forward.9} parent=75 // pred_region
          %s614 = sand.u32 %s33, 1
          %s615 = scalar_lea.sflag [#allocation13], %s614
          %s616 = sand.u32 %s205, 1
          %s617 = smul.addr %s616, 4
          %s618 = scalar_lea.vmem [#allocation12], %s617
          %619 = dma.done %s615, 64
        $region84: #{diffusion_transformer_forward.9} parent=75 // pred_fallthru
          _
        // Predicated region
        $region85: #{diffusion_transformer_forward.9} parent=75 // pred_check
          %p620 = pneg %p248
        $region86: #{diffusion_transformer_forward.9} parent=75 // pred_check_branch
          %622 = sbr.rel (%p620) target = $region88
        $region87: #{diffusion_transformer_forward.9} parent=75 // pred_region
          %s623 = sand.u32 %s33, 1
          %s624 = scalar_lea.sflag [#allocation13], %s623
          %s625 = sand.u32 %s233, 1
          %s626 = smul.addr %s625, 4
          %s627 = scalar_lea.vmem [#allocation14], %s626
          %628 = dma.done %s624, 64
        $region88: #{diffusion_transformer_forward.9} parent=75 // pred_fallthru
          _
      $region76: #{diffusion_transformer_forward.9} parent=5 // pred_fallthru
        _
    $region6: #{diffusion_transformer_forward.9} parent=1 // loop_footer
      %s31 = sadd.s32 1, %s27
    $region7: #{diffusion_transformer_forward.9} parent=1 // loop_footer_branch
      %26 = sbr.rel target = $region3
    $region8: #{diffusion_transformer_forward.9} parent=1 // loop_exit
      _
    %629 = vsyncpa [#allocation3], 1
    %s630 = scalar_lea.sflag [#allocation3], 1
    %631 = vsyncpa %s630, 1
    %632 = vsyncpa [#allocation6], 1
    %s633 = scalar_lea.sflag [#allocation6], 1
    %634 = vsyncpa %s633, 1
    %635 = vsyncpa [#allocation9], 1
    %636 = vsyncpa [#allocation4], 1
    %s637 = scalar_lea.sflag [#allocation4], 1
    %638 = vsyncpa %s637, 1
    %639 = vsyncpa [#allocation13], 1
    %s640 = scalar_lea.sflag [#allocation13], 1
    %641 = vsyncpa %s640, 1

// kernel: diffusion_transformer_forward.10
$region0: #{diffusion_transformer_forward.10}
  #allocation0 [shape = 'u32[]', space=smem, size = 0x4, offset = 0x4, fixed_abs, tag = 'smem constant byte address 0x4 - core index']
  #allocation1 [shape = 'u32[144,128]{1,0:T(1,128)}', space=vmem, size = 0x12000, scoped, tag = 'internal scratch']
  #allocation2 [shape = 'f32[8,32]{1,0:T(8,128)}', space=vmem, size = 0x1000, scoped, tag = 'scratch operand']
  #allocation3 [shape = 'f32[8,32]{1,0:T(8,128)}', space=vmem, size = 0x1000, scoped, tag = 'scratch operand']
  #allocation4 [shape = 'f32[8,32]{1,0:T(8,128)}', space=vmem, size = 0x1000, scoped, tag = 'scratch operand']
  %s0 = inlined_call_operand.hbm [shape: bf16[2,8,32], index: 0, kind: input, shape index: {}]
  %s1 = inlined_call_operand.hbm [shape: bf16[2,8,32], index: 1, kind: input, shape index: {}]
  %s2 = inlined_call_operand.hbm [shape: bf16[2,8,32], index: 2, kind: input, shape index: {}]
  %s3 = inlined_call_operand.hbm [shape: bf16[2,8,32], index: 3, kind: output, shape index: {}]
  %s4 = sld [smem:[#allocation0]]
  $region65: #{diffusion_transformer_forward.10} parent=0
    _
  %s6 = ssub.s32 1, %s4
  %s7 = scalar_select 0, %s6, %s4
  $region1: #{diffusion_transformer_forward.10} parent=0
    #allocation5 [shape = 'u8[4096]{0}', space=vmem, size = 0x1000, scoped, tag = 'input window, operand 0']
    #allocation6 [shape = 's32[2]{0}', space=sflag, size = 0x8, scoped, tag = 'scoped memory for diffusion_transformer_forward.10']
    #allocation7 [shape = 's32[2]{0}', space=sflag, size = 0x8, scoped, tag = 'scoped memory for diffusion_transformer_forward.10']
    #allocation8 [shape = 'u8[4096]{0}', space=vmem, size = 0x1000, scoped, tag = 'input window, operand 1']
    #allocation9 [shape = 's32[2]{0}', space=sflag, size = 0x8, scoped, tag = 'scoped memory for diffusion_transformer_forward.10']
    #allocation10 [shape = 'u8[4096]{0}', space=vmem, size = 0x1000, scoped, tag = 'input window, operand 2']
    #allocation11 [shape = 'u8[4096]{0}', space=vmem, size = 0x1000, scoped, tag = 'output window, operand 0']
    %8 = vsyncpa [#allocation6], 0
    %s9 = scalar_lea.sflag [#allocation6], 1
    %10 = vsyncpa %s9, 0
    %11 = vsyncpa [#allocation9], 0
    %s12 = scalar_lea.sflag [#allocation9], 1
    %13 = vsyncpa %s12, 0
    %14 = vsyncpa [#allocation7], 0
    %s15 = scalar_lea.sflag [#allocation7], 1
    %16 = vsyncpa %s15, 0
    loop: start=0, step=1, limit=4
    $region2: #{diffusion_transformer_forward.10} parent=1 // loop_pre_header
      _
    $region3: #{diffusion_transformer_forward.10} parent=1 // loop_header
      %s18 = sphi 0, %s22
      %p19 = scmp.ge.s32.totalorder %s18, 4
      %s25 = sphi 0, %s44
      %s26 = sphi 0, %s40
      %s27 = sphi 0, %s36
      %s28 = sphi 0, %s25
      %s29 = sphi 0, %s26
      %s30 = sphi 0, %s27
      %s31 = sphi 0, %s28
      %s32 = sphi 0, %s29
      %s33 = sphi 0, %s30
      %s49 = sphi 0, %s51
      %s52 = sphi 0, %s49
      %s53 = sphi 0, %s52
      %s69 = sphi 0, %s53
      %s77 = sphi 0, %s79
      %s80 = sphi 0, %s77
      %s81 = sphi 0, %s80
      %s97 = sphi 0, %s81
      %s105 = sphi 0, %s107
      %s108 = sphi 0, %s105
      %s109 = sphi 0, %s108
      %s125 = sphi 0, %s109
      %s133 = sphi 0, %s135
      %s136 = sphi 0, %s133
      %s137 = sphi 0, %s136
      %s153 = sphi 0, %s137
    $region4: #{diffusion_transformer_forward.10} parent=1 // loop_header_branch
      %21 = sbr.rel (%p19) target = $region8
    $region5: #{diffusion_transformer_forward.10} parent=1 // loop_body
      %s23 = ssub.s32 %s18, 1
      %s24 = ssub.s32 %s18, 2
      %s34 = sadd.s32 1, %s27
      %p35 = scmp.ge.s32.totalorder %s34, 1
      %s36 = scalar_select %p35, 0, %s34
      %s37 = sadd.s32 1, %s26
      %s38 = scalar_select %p35, %s37, %s26
      %p39 = scmp.ge.s32.totalorder %s38, 1
      %s40 = scalar_select %p39, 0, %s38
      %s41 = sadd.s32 1, %s25
      %s42 = scalar_select %p39, %s41, %s25
      %p43 = scmp.ge.s32.totalorder %s42, 2
      %s44 = scalar_select %p43, 0, %s42
      %s45 = ssub.s32 %s25, %s44
      %s46 = ssub.s32 %s26, %s40
      %s47 = sor.u32 %s45, %s46
      %p48 = scmp.eq.s32.totalorder %s47, 0
      %s50 = sadd.s32 %s49, 1
      %s51 = scalar_select %p48, %s49, %s50
      %p54 = pneg %p48
      %p55 = scmp.eq.s32.totalorder %s18, 1
      %p56 = por %p54, %p55
      %p57 = scmp.ne.s32.totalorder %s49, %s52
      %p58 = scmp.eq.s32.totalorder %s18, 0
      %p59 = por %p57, %p58
      %p60 = scmp.ne.s32.totalorder %s49, %s52
      %p61 = scmp.eq.s32.totalorder %s23, 1
      %p62 = por %p60, %p61
      %p63 = scmp.ne.s32.totalorder %s52, %s53
      %p64 = scmp.eq.s32.totalorder %s23, 0
      %p65 = por %p63, %p64
      %p66 = scmp.ne.s32.totalorder %s52, %s53
      %p67 = scmp.eq.s32.totalorder %s24, 1
      %p68 = por %p66, %p67
      %p70 = scmp.ne.s32.totalorder %s53, %s69
      %p71 = scmp.eq.s32.totalorder %s24, 0
      %p72 = por %p70, %p71
      %s73 = ssub.s32 %s25, %s44
      %s74 = ssub.s32 %s27, %s36
      %s75 = sor.u32 %s73, %s74
      %p76 = scmp.eq.s32.totalorder %s75, 0
      %s78 = sadd.s32 %s77, 1
      %s79 = scalar_select %p76, %s77, %s78
      %p82 = pneg %p76
      %p83 = scmp.eq.s32.totalorder %s18, 1
      %p84 = por %p82, %p83
      %p85 = scmp.ne.s32.totalorder %s77, %s80
      %p86 = scmp.eq.s32.totalorder %s18, 0
      %p87 = por %p85, %p86
      %p88 = scmp.ne.s32.totalorder %s77, %s80
      %p89 = scmp.eq.s32.totalorder %s23, 1
      %p90 = por %p88, %p89
      %p91 = scmp.ne.s32.totalorder %s80, %s81
      %p92 = scmp.eq.s32.totalorder %s23, 0
      %p93 = por %p91, %p92
      %p94 = scmp.ne.s32.totalorder %s80, %s81
      %p95 = scmp.eq.s32.totalorder %s24, 1
      %p96 = por %p94, %p95
      %p98 = scmp.ne.s32.totalorder %s81, %s97
      %p99 = scmp.eq.s32.totalorder %s24, 0
      %p100 = por %p98, %p99
      %s101 = ssub.s32 %s25, %s44
      %s102 = ssub.s32 %s27, %s36
      %s103 = sor.u32 %s101, %s102
      %p104 = scmp.eq.s32.totalorder %s103, 0
      %s106 = sadd.s32 %s105, 1
      %s107 = scalar_select %p104, %s105, %s106
      %p110 = pneg %p104
      %p111 = scmp.eq.s32.totalorder %s18, 1
      %p112 = por %p110, %p111
      %p113 = scmp.ne.s32.totalorder %s105, %s108
      %p114 = scmp.eq.s32.totalorder %s18, 0
      %p115 = por %p113, %p114
      %p116 = scmp.ne.s32.totalorder %s105, %s108
      %p117 = scmp.eq.s32.totalorder %s23, 1
      %p118 = por %p116, %p117
      %p119 = scmp.ne.s32.totalorder %s108, %s109
      %p120 = scmp.eq.s32.totalorder %s23, 0
      %p121 = por %p119, %p120
      %p122 = scmp.ne.s32.totalorder %s108, %s109
      %p123 = scmp.eq.s32.totalorder %s24, 1
      %p124 = por %p122, %p123
      %p126 = scmp.ne.s32.totalorder %s109, %s125
      %p127 = scmp.eq.s32.totalorder %s24, 0
      %p128 = por %p126, %p127
      %s129 = ssub.s32 %s25, %s44
      %s130 = ssub.s32 %s26, %s40
      %s131 = sor.u32 %s129, %s130
      %p132 = scmp.eq.s32.totalorder %s131, 0
      %s134 = sadd.s32 %s133, 1
      %s135 = scalar_select %p132, %s133, %s134
      %p138 = pneg %p132
      %p139 = scmp.eq.s32.totalorder %s18, 1
      %p140 = por %p138, %p139
      %p141 = scmp.ne.s32.totalorder %s133, %s136
      %p142 = scmp.eq.s32.totalorder %s18, 0
      %p143 = por %p141, %p142
      %p144 = scmp.ne.s32.totalorder %s133, %s136
      %p145 = scmp.eq.s32.totalorder %s23, 1
      %p146 = por %p144, %p145
      %p147 = scmp.ne.s32.totalorder %s136, %s137
      %p148 = scmp.eq.s32.totalorder %s23, 0
      %p149 = por %p147, %p148
      %p150 = scmp.ne.s32.totalorder %s136, %s137
      %p151 = scmp.eq.s32.totalorder %s24, 1
      %p152 = por %p150, %p151
      %p154 = scmp.ne.s32.totalorder %s137, %s153
      %p155 = scmp.eq.s32.totalorder %s24, 0
      %p156 = por %p154, %p155
      %p157 = scmp.le.s32.totalorder 1, %s18
      %p158 = scmp.lt.s32.totalorder %s18, 3
      %p159 = pnand %p157, %p158
      %p160 = pneg %p159
      // Predicated region
      $region9: #{diffusion_transformer_forward.10} parent=5 // pred_check
        _
      $region10: #{diffusion_transformer_forward.10} parent=5 // pred_check_branch
        %162 = sbr.rel (%p159) target = $region12
      $region11: #{diffusion_transformer_forward.10} parent=5 // pred_region
        %s163 = ssub.s32 %s18, 1
      $region12: #{diffusion_transformer_forward.10} parent=5 // pred_fallthru
        _
      %p164 = scmp.lt.s32.totalorder %s18, 2
      // Predicated region
      $region13: #{diffusion_transformer_forward.10} parent=5 // pred_check
        %p165 = pneg %p164
      $region14: #{diffusion_transformer_forward.10} parent=5 // pred_check_branch
        %167 = sbr.rel (%p165) target = $region16
      $region15: #{diffusion_transformer_forward.10} parent=5 // pred_region
        // Predicated region
        $region17: #{diffusion_transformer_forward.10} parent=15 // pred_check
          %p168 = pneg %p59
        $region18: #{diffusion_transformer_forward.10} parent=15 // pred_check_branch
          %170 = sbr.rel (%p168) target = $region20
        $region19: #{diffusion_transformer_forward.10} parent=15 // pred_region
          %s171 = sand.u32 %s49, 1
          %s172 = scalar_lea.sflag [#allocation6], %s171
          %s173 = sand.u32 %s49, 1
          %s174 = smul.addr %s173, 4
          %s175 = scalar_lea.vmem [#allocation5], %s174
          %s177 = ssub.s32 64, 64
          %178 = vsyncadd %s172, %s177
          %s179 = sadd.s32 %s26, %s25
          %s180 = smul.addr %s179, 64
          %s181 = scalar_lea.hbm %s0, %s180
          %s183 = sshll.u32 %s175, 4
          %s184 = int_to_ptr.vmem [resolvable:$true] %s183
          %186 = dma.hbm_to_vmem [thread:$0]  %s181, 64, %s184, %s172
        $region20: #{diffusion_transformer_forward.10} parent=15 // pred_fallthru
          _
        // Predicated region
        $region21: #{diffusion_transformer_forward.10} parent=15 // pred_check
          %p187 = pneg %p87
        $region22: #{diffusion_transformer_forward.10} parent=15 // pred_check_branch
          %189 = sbr.rel (%p187) target = $region24
        $region23: #{diffusion_transformer_forward.10} parent=15 // pred_region
          %s190 = sand.u32 %s18, 1
          %s191 = scalar_lea.sflag [#allocation9], %s190
          %s192 = sand.u32 %s77, 1
          %s193 = smul.addr %s192, 4
          %s194 = scalar_lea.vmem [#allocation8], %s193
          %s196 = ssub.s32 64, 64
          %197 = vsyncadd %s191, %s196
          %s198 = sadd.s32 %s27, %s25
          %s199 = smul.addr %s198, 64
          %s200 = scalar_lea.hbm %s1, %s199
          %s202 = sshll.u32 %s194, 4
          %s203 = int_to_ptr.vmem [resolvable:$true] %s202
          %205 = dma.hbm_to_vmem [thread:$0]  %s200, 64, %s203, %s191
        $region24: #{diffusion_transformer_forward.10} parent=15 // pred_fallthru
          _
        // Predicated region
        $region25: #{diffusion_transformer_forward.10} parent=15 // pred_check
          %p206 = pneg %p115
        $region26: #{diffusion_transformer_forward.10} parent=15 // pred_check_branch
          %208 = sbr.rel (%p206) target = $region28
        $region27: #{diffusion_transformer_forward.10} parent=15 // pred_region
          %s209 = sand.u32 %s18, 1
          %s210 = scalar_lea.sflag [#allocation9], %s209
          %s211 = sand.u32 %s105, 1
          %s212 = smul.addr %s211, 4
          %s213 = scalar_lea.vmem [#allocation10], %s212
          %s215 = ssub.s32 64, 64
          %216 = vsyncadd %s210, %s215
          %s217 = sadd.s32 %s27, %s25
          %s218 = smul.addr %s217, 64
          %s219 = scalar_lea.hbm %s2, %s218
          %s221 = sshll.u32 %s213, 4
          %s222 = int_to_ptr.vmem [resolvable:$true] %s221
          %224 = dma.hbm_to_vmem [thread:$0]  %s219, 64, %s222, %s210
        $region28: #{diffusion_transformer_forward.10} parent=15 // pred_fallthru
          _
      $region16: #{diffusion_transformer_forward.10} parent=5 // pred_fallthru
        _
      %p225 = scmp.le.s32.totalorder 1, %s18
      %p226 = scmp.lt.s32.totalorder %s18, 3
      %p227 = pnand %p225, %p226
      %p228 = pneg %p227
      // Predicated region
      $region29: #{diffusion_transformer_forward.10} parent=5 // pred_check
        _
      $region30: #{diffusion_transformer_forward.10} parent=5 // pred_check_branch
        %230 = sbr.rel (%p227) target = $region32
      $region31: #{diffusion_transformer_forward.10} parent=5 // pred_region
        %s231 = ssub.s32 %s18, 1
        %s232 = sand.u32 %s52, 1
        %s233 = scalar_lea.sflag [#allocation6], %s232
        %s234 = sand.u32 %s52, 1
        %s235 = smul.addr %s234, 4
        %s236 = scalar_lea.vmem [#allocation5], %s235
        // Predicated region
        $region33: #{diffusion_transformer_forward.10} parent=31 // pred_check
          %p237 = pneg %p65
        $region34: #{diffusion_transformer_forward.10} parent=31 // pred_check_branch
          %239 = sbr.rel (%p237) target = $region36
        $region35: #{diffusion_transformer_forward.10} parent=31 // pred_region
          %240 = dma.done %s233, 64
        $region36: #{diffusion_transformer_forward.10} parent=31 // pred_fallthru
          _
        %s241 = sand.u32 %s23, 1
        %s242 = scalar_lea.sflag [#allocation9], %s241
        %s243 = sand.u32 %s80, 1
        %s244 = smul.addr %s243, 4
        %s245 = scalar_lea.vmem [#allocation8], %s244
        // Predicated region
        $region37: #{diffusion_transformer_forward.10} parent=31 // pred_check
          %p246 = pneg %p93
        $region38: #{diffusion_transformer_forward.10} parent=31 // pred_check_branch
          %248 = sbr.rel (%p246) target = $region40
        $region39: #{diffusion_transformer_forward.10} parent=31 // pred_region
          %249 = dma.done %s242, 64
        $region40: #{diffusion_transformer_forward.10} parent=31 // pred_fallthru
          _
        %s250 = sand.u32 %s23, 1
        %s251 = scalar_lea.sflag [#allocation9], %s250
        %s252 = sand.u32 %s108, 1
        %s253 = smul.addr %s252, 4
        %s254 = scalar_lea.vmem [#allocation10], %s253
        // Predicated region
        $region41: #{diffusion_transformer_forward.10} parent=31 // pred_check
          %p255 = pneg %p121
        $region42: #{diffusion_transformer_forward.10} parent=31 // pred_check_branch
          %257 = sbr.rel (%p255) target = $region44
        $region43: #{diffusion_transformer_forward.10} parent=31 // pred_region
          %258 = dma.done %s251, 64
        $region44: #{diffusion_transformer_forward.10} parent=31 // pred_fallthru
          _
        %s259 = sand.u32 %s52, 1
        %s260 = scalar_lea.sflag [#allocation6], %s259
        %s261 = sand.u32 %s52, 1
        %s262 = smul.addr %s261, 4
        %s263 = scalar_lea.vmem [#allocation5], %s262
        %p264 = pneg %p65
        %p265 = pneg %p62
        %s266 = sand.u32 %s23, 1
        %s267 = scalar_lea.sflag [#allocation9], %s266
        %s268 = sand.u32 %s80, 1
        %s269 = smul.addr %s268, 4
        %s270 = scalar_lea.vmem [#allocation8], %s269
        %p271 = pneg %p93
        %p272 = pneg %p90
        %s273 = sand.u32 %s23, 1
        %s274 = scalar_lea.sflag [#allocation9], %s273
        %s275 = sand.u32 %s108, 1
        %s276 = smul.addr %s275, 4
        %s277 = scalar_lea.vmem [#allocation10], %s276
        %p278 = pneg %p121
        %p279 = pneg %p118
        %p280 = pneg %p149
        %p281 = pneg %p146
        %s282 = sand.u32 %s136, 1
        %s283 = scalar_lea.sflag [#allocation7], %s282
        %s284 = sand.u32 %s136, 1
        %s285 = smul.addr %s284, 4
        %s286 = scalar_lea.vmem [#allocation11], %s285
        %p288 = scmp.eq.s32.totalorder %s30, 0
        // Predicated region
        $region45: #{diffusion_transformer_forward.10} parent=31 // pred_check
          %p289 = pneg %p288
        $region46: #{diffusion_transformer_forward.10} parent=31 // pred_check_branch
          %291 = sbr.rel (%p289) target = $region48
        $region47: #{diffusion_transformer_forward.10} parent=31 // pred_region
          %vm292 = vcmask 261120
          %293 = vst.msk [vmem:[#allocation2] sm:$0xff] %vm292, -inf
          %294 = vst.msk [vmem:[#allocation3] sm:$0xff] %vm292, 0.0
          %295 = vst.msk [vmem:[#allocation4] sm:$0xff] %vm292, 0.0
        $region48: #{diffusion_transformer_forward.10} parent=31 // pred_fallthru
          _
        %v296 = vld [vmem:[%s236] sm:$0xf]
        %v297 = vld [vmem:[%s245] sm:$0xf]
        %v298 = vld [vmem:[%s254] sm:$0xf]
        %v299 = vld [vmem:[#allocation2] sm:$0xff]
        %v300 = vld [vmem:[#allocation3] sm:$0xff]
        %v301 = vld [vmem:[#allocation4] sm:$0xff]
        %vm302 = vcmask 64512
        %v304 = vsel %vm302, %v296, 0
        %v307 = vsel %vm302, %v297, 0
        %309 = vmatprep.subr.bf16.mxu0 0
        %310 = vmatpush1.bf16.xpose.msra.mxu0 %v307
        %311 = vmatprep.subr.bf16.mxu0 0
        %312 = vmatpush1.bf16.xpose.msra.mxu0 0
        %313 = vmatprep.subr.bf16.mxu0 0
        %314 = vmatpush1.bf16.xpose.msra.mxu0 0
        %315 = vmatprep.subr.bf16.mxu0 0
        %316 = vmatpush1.bf16.xpose.msra.mxu0 0
        %317 = vmatprep.subr.bf16.mxu0 0
        %318 = vmatpush1.bf16.xpose.msra.mxu0 0
        %319 = vmatprep.subr.bf16.mxu0 0
        %320 = vmatpush1.bf16.xpose.msra.mxu0 0
        %321 = vmatprep.subr.bf16.mxu0 0
        %322 = vmatpush1.bf16.xpose.msra.mxu0 0
        %323 = vmatprep.subr.bf16.mxu0 0
        %324 = vmatpush1.bf16.xpose.msra.mxu0 0
        %325 = vmatprep.subr.bf16.mxu0 0
        %326 = vmatpush1.bf16.xpose.msra.mxu0 0
        %327 = vmatprep.subr.bf16.mxu0 0
        %328 = vmatpush1.bf16.xpose.msra.mxu0 0
        %329 = vmatprep.subr.bf16.mxu0 0
        %330 = vmatpush1.bf16.xpose.msra.mxu0 0
        %331 = vmatprep.subr.bf16.mxu0 0
        %332 = vmatpush1.bf16.xpose.msra.mxu0 0
        %333 = vmatprep.subr.bf16.mxu0 0
        %334 = vmatpush1.bf16.xpose.msra.mxu0 0
        %335 = vmatprep.subr.bf16.mxu0 0
        %336 = vmatpush1.bf16.xpose.msra.mxu0 0
        %337 = vmatprep.subr.bf16.mxu0 0
        %338 = vmatpush1.bf16.xpose.msra.mxu0 0
        %339 = vmatprep.subr.bf16.mxu0 0
        %340 = vmatpush1.bf16.xpose.msra.mxu0 0
        %341 = vmatprep.mubr.bf16.mxu0 0
        %342 = vmatmul.mubr.bf16.gmra.mrb[0].mxu0 %v304
        %v343 = vpop.f32.mrb[0].mxu0
        %v344 = vadd.f32 0.0, %v343
        %v345 = vpop.f32.mrb[0].mxu0
        %v346 = vpop.f32.mrb[0].mxu0
        %v347 = vpop.f32.mrb[0].mxu0
        %348 = vdwg.mxu0
        %v349 = vmul.f32 %v344, 0.35355338
        %v350 = vsel %vm302, %v349, -inf
        %351 = vmax.xlane.f32.xlu0 %v350
        %v352 = vpop.xlane.xlu0 %351
        %v353 = vmax.f32 %v299, %v352
        %v354 = vsub.f32 %v299, %v353
        %v355 = vmul.f32 %v354, 1.442695
        %v356 = vpow.pop %v355
        %358 = vset.pattern.permute.xlu0 0
        %359 = vperm.xlu0 %358, %v353
        %v360 = vpop.permute.xlu0 %359
        %v362 = vsub.f32 %v349, %v360
        %v363 = vmul.f32 %v362, 1.442695
        %v364 = vpow.pop %v363
        %v365 = vmul.f32 %v356, %v300
        %v366 = vsel %vm302, %v364, 0.0
        %367 = vadd.xlane.f32.xlu0 %v366
        %v368 = vpop.xlane.xlu0 %367
        %v369 = vadd.f32 %v365, %v368
        %371 = vset.pattern.permute.xlu0 0
        %372 = vperm.xlu0 %371, %v356
        %v373 = vpop.permute.xlu0 %372
        %v375 = vmul.f32 %v373, %v301
        %v376 = vpack.c.bf16 %v364, %v364
        %v378 = vsel %vm302, %v376, 0
        %vm380 = vcmask 1043456
        %v382 = vsel %vm380, %v298, 0
        %384 = vmatprep.subr.bf16.mxu0 0
        %385 = vmatpush1.bf16.msra.mxu0 %v382
        %386 = vmatprep.subr.bf16.mxu0 0
        %387 = vmatpush1.bf16.msra.mxu0 0
        %388 = vmatprep.subr.bf16.mxu0 0
        %389 = vmatpush1.bf16.msra.mxu0 0
        %390 = vmatprep.subr.bf16.mxu0 0
        %391 = vmatpush1.bf16.msra.mxu0 0
        %392 = vmatprep.subr.bf16.mxu0 0
        %393 = vmatpush1.bf16.msra.mxu0 0
        %394 = vmatprep.subr.bf16.mxu0 0
        %395 = vmatpush1.bf16.msra.mxu0 0
        %396 = vmatprep.subr.bf16.mxu0 0
        %397 = vmatpush1.bf16.msra.mxu0 0
        %398 = vmatprep.subr.bf16.mxu0 0
        %399 = vmatpush1.bf16.msra.mxu0 0
        %400 = vmatprep.subr.bf16.mxu0 0
        %401 = vmatpush1.bf16.msra.mxu0 0
        %402 = vmatprep.subr.bf16.mxu0 0
        %403 = vmatpush1.bf16.msra.mxu0 0
        %404 = vmatprep.subr.bf16.mxu0 0
        %405 = vmatpush1.bf16.msra.mxu0 0
        %406 = vmatprep.subr.bf16.mxu0 0
        %407 = vmatpush1.bf16.msra.mxu0 0
        %408 = vmatprep.subr.bf16.mxu0 0
        %409 = vmatpush1.bf16.msra.mxu0 0
        %410 = vmatprep.subr.bf16.mxu0 0
        %411 = vmatpush1.bf16.msra.mxu0 0
        %412 = vmatprep.subr.bf16.mxu0 0
        %413 = vmatpush1.bf16.msra.mxu0 0
        %414 = vmatprep.subr.bf16.mxu0 0
        %415 = vmatpush1.bf16.msra.mxu0 0
        %416 = vmatprep.mubr.bf16.mxu0 0
        %417 = vmatmul.mubr.bf16.gmra.mrb[0].mxu0 %v378
        %v418 = vpop.f32.mrb[0].mxu0
        %v419 = vadd.f32 0.0, %v418
        %v420 = vpop.f32.mrb[0].mxu0
        %v421 = vpop.f32.mrb[0].mxu0
        %v422 = vpop.f32.mrb[0].mxu0
        %423 = vdwg.mxu0
        %v424 = vadd.f32 %v375, %v419
        %426 = vset.pattern.permute.xlu0 0
        %427 = vperm.xlu0 %426, %v369
        %v428 = vpop.permute.xlu0 %427
        %v431 = vunpack.c.l.b16 %v296
        %v432 = vpack.c.b16 %v431, %v431
        %433 = vrot.lane.b32.xlu0 %v432, 120
        %v434 = vpop.permute.xlu0 %433
        %v436 = vunpack.c.l.b16 %v297
        %v437 = vpack.c.b16 %v436, %v436
        %438 = vrot.lane.b32.xlu0 %v437, 120
        %v439 = vpop.permute.xlu0 %438
        %v441 = vsel %vm302, %v434, 0
        %v444 = vsel %vm302, %v439, 0
        %446 = vmatprep.subr.bf16.mxu0 0
        %447 = vmatpush1.bf16.xpose.msra.mxu0 %v444
        %448 = vmatprep.subr.bf16.mxu0 0
        %449 = vmatpush1.bf16.xpose.msra.mxu0 0
        %450 = vmatprep.subr.bf16.mxu0 0
        %451 = vmatpush1.bf16.xpose.msra.mxu0 0
        %452 = vmatprep.subr.bf16.mxu0 0
        %453 = vmatpush1.bf16.xpose.msra.mxu0 0
        %454 = vmatprep.subr.bf16.mxu0 0
        %455 = vmatpush1.bf16.xpose.msra.mxu0 0
        %456 = vmatprep.subr.bf16.mxu0 0
        %457 = vmatpush1.bf16.xpose.msra.mxu0 0
        %458 = vmatprep.subr.bf16.mxu0 0
        %459 = vmatpush1.bf16.xpose.msra.mxu0 0
        %460 = vmatprep.subr.bf16.mxu0 0
        %461 = vmatpush1.bf16.xpose.msra.mxu0 0
        %462 = vmatprep.subr.bf16.mxu0 0
        %463 = vmatpush1.bf16.xpose.msra.mxu0 0
        %464 = vmatprep.subr.bf16.mxu0 0
        %465 = vmatpush1.bf16.xpose.msra.mxu0 0
        %466 = vmatprep.subr.bf16.mxu0 0
        %467 = vmatpush1.bf16.xpose.msra.mxu0 0
        %468 = vmatprep.subr.bf16.mxu0 0
        %469 = vmatpush1.bf16.xpose.msra.mxu0 0
        %470 = vmatprep.subr.bf16.mxu0 0
        %471 = vmatpush1.bf16.xpose.msra.mxu0 0
        %472 = vmatprep.subr.bf16.mxu0 0
        %473 = vmatpush1.bf16.xpose.msra.mxu0 0
        %474 = vmatprep.subr.bf16.mxu0 0
        %475 = vmatpush1.bf16.xpose.msra.mxu0 0
        %476 = vmatprep.subr.bf16.mxu0 0
        %477 = vmatpush1.bf16.xpose.msra.mxu0 0
        %478 = vmatprep.mubr.bf16.mxu0 0
        %479 = vmatmul.mubr.bf16.gmra.mrb[0].mxu0 %v441
        %v480 = vpop.f32.mrb[0].mxu0
        %v481 = vadd.f32 0.0, %v480
        %v482 = vpop.f32.mrb[0].mxu0
        %v483 = vpop.f32.mrb[0].mxu0
        %v484 = vpop.f32.mrb[0].mxu0
        %485 = vdwg.mxu0
        %v486 = vmul.f32 %v481, 0.35355338
        %v487 = vsel %vm302, %v486, -inf
        %488 = vmax.xlane.f32.xlu0 %v487
        %v489 = vpop.xlane.xlu0 %488
        %v490 = vmax.f32 %v299, %v489
        %v491 = vsub.f32 %v299, %v490
        %v492 = vmul.f32 %v491, 1.442695
        %v493 = vpow.pop %v492
        %495 = vset.pattern.permute.xlu0 8
        %496 = vperm.xlu0 %495, %v490
        %v497 = vpop.permute.xlu0 %496
        %v499 = vsub.f32 %v486, %v497
        %v500 = vmul.f32 %v499, 1.442695
        %v501 = vpow.pop %v500
        %v502 = vmul.f32 %v493, %v300
        %v503 = vsel %vm302, %v501, 0.0
        %504 = vadd.xlane.f32.xlu0 %v503
        %v505 = vpop.xlane.xlu0 %504
        %v506 = vadd.f32 %v502, %v505
        %508 = vset.pattern.permute.xlu0 8
        %509 = vperm.xlu0 %508, %v493
        %v510 = vpop.permute.xlu0 %509
        %v512 = vmul.f32 %v510, %v301
        %v513 = vpack.c.bf16 %v501, %v501
        %v515 = vunpack.c.l.b16 %v298
        %v516 = vpack.c.b16 %v515, %v515
        %517 = vrot.lane.b32.xlu0 %v516, 120
        %v518 = vpop.permute.xlu0 %517
        %v520 = vsel %vm302, %v513, 0
        %v523 = vsel %vm380, %v518, 0
        %525 = vmatprep.subr.bf16.mxu0 0
        %526 = vmatpush1.bf16.msra.mxu0 %v523
        %527 = vmatprep.subr.bf16.mxu0 0
        %528 = vmatpush1.bf16.msra.mxu0 0
        %529 = vmatprep.subr.bf16.mxu0 0
        %530 = vmatpush1.bf16.msra.mxu0 0
        %531 = vmatprep.subr.bf16.mxu0 0
        %532 = vmatpush1.bf16.msra.mxu0 0
        %533 = vmatprep.subr.bf16.mxu0 0
        %534 = vmatpush1.bf16.msra.mxu0 0
        %535 = vmatprep.subr.bf16.mxu0 0
        %536 = vmatpush1.bf16.msra.mxu0 0
        %537 = vmatprep.subr.bf16.mxu0 0
        %538 = vmatpush1.bf16.msra.mxu0 0
        %539 = vmatprep.subr.bf16.mxu0 0
        %540 = vmatpush1.bf16.msra.mxu0 0
        %541 = vmatprep.subr.bf16.mxu0 0
        %542 = vmatpush1.bf16.msra.mxu0 0
        %543 = vmatprep.subr.bf16.mxu0 0
        %544 = vmatpush1.bf16.msra.mxu0 0
        %545 = vmatprep.subr.bf16.mxu0 0
        %546 = vmatpush1.bf16.msra.mxu0 0
        %547 = vmatprep.subr.bf16.mxu0 0
        %548 = vmatpush1.bf16.msra.mxu0 0
        %549 = vmatprep.subr.bf16.mxu0 0
        %550 = vmatpush1.bf16.msra.mxu0 0
        %551 = vmatprep.subr.bf16.mxu0 0
        %552 = vmatpush1.bf16.msra.mxu0 0
        %553 = vmatprep.subr.bf16.mxu0 0
        %554 = vmatpush1.bf16.msra.mxu0 0
        %555 = vmatprep.subr.bf16.mxu0 0
        %556 = vmatpush1.bf16.msra.mxu0 0
        %557 = vmatprep.mubr.bf16.mxu0 0
        %558 = vmatmul.mubr.bf16.gmra.mrb[0].mxu0 %v520
        %v559 = vpop.f32.mrb[0].mxu0
        %v560 = vadd.f32 0.0, %v559
        %v561 = vpop.f32.mrb[0].mxu0
        %v562 = vpop.f32.mrb[0].mxu0
        %v563 = vpop.f32.mrb[0].mxu0
        %564 = vdwg.mxu0
        %566 = vrot.lane.b32.xlu0 %v560, 8
        %v567 = vpop.permute.xlu0 %566
        %v569 = vadd.f32 %v512, %v567
        %571 = vset.pattern.permute.xlu0 8
        %572 = vperm.xlu0 %571, %v506
        %v573 = vpop.permute.xlu0 %572
        %575 = vrot.lane.b32.xlu0 %v432, 112
        %v576 = vpop.permute.xlu0 %575
        %577 = vrot.lane.b32.xlu0 %v437, 112
        %v578 = vpop.permute.xlu0 %577
        %v580 = vsel %vm302, %v576, 0
        %v583 = vsel %vm302, %v578, 0
        %585 = vmatprep.subr.bf16.mxu0 0
        %586 = vmatpush1.bf16.xpose.msra.mxu0 %v583
        %587 = vmatprep.subr.bf16.mxu0 0
        %588 = vmatpush1.bf16.xpose.msra.mxu0 0
        %589 = vmatprep.subr.bf16.mxu0 0
        %590 = vmatpush1.bf16.xpose.msra.mxu0 0
        %591 = vmatprep.subr.bf16.mxu0 0
        %592 = vmatpush1.bf16.xpose.msra.mxu0 0
        %593 = vmatprep.subr.bf16.mxu0 0
        %594 = vmatpush1.bf16.xpose.msra.mxu0 0
        %595 = vmatprep.subr.bf16.mxu0 0
        %596 = vmatpush1.bf16.xpose.msra.mxu0 0
        %597 = vmatprep.subr.bf16.mxu0 0
        %598 = vmatpush1.bf16.xpose.msra.mxu0 0
        %599 = vmatprep.subr.bf16.mxu0 0
        %600 = vmatpush1.bf16.xpose.msra.mxu0 0
        %601 = vmatprep.subr.bf16.mxu0 0
        %602 = vmatpush1.bf16.xpose.msra.mxu0 0
        %603 = vmatprep.subr.bf16.mxu0 0
        %604 = vmatpush1.bf16.xpose.msra.mxu0 0
        %605 = vmatprep.subr.bf16.mxu0 0
        %606 = vmatpush1.bf16.xpose.msra.mxu0 0
        %607 = vmatprep.subr.bf16.mxu0 0
        %608 = vmatpush1.bf16.xpose.msra.mxu0 0
        %609 = vmatprep.subr.bf16.mxu0 0
        %610 = vmatpush1.bf16.xpose.msra.mxu0 0
        %611 = vmatprep.subr.bf16.mxu0 0
        %612 = vmatpush1.bf16.xpose.msra.mxu0 0
        %613 = vmatprep.subr.bf16.mxu0 0
        %614 = vmatpush1.bf16.xpose.msra.mxu0 0
        %615 = vmatprep.subr.bf16.mxu0 0
        %616 = vmatpush1.bf16.xpose.msra.mxu0 0
        %617 = vmatprep.mubr.bf16.mxu0 0
        %618 = vmatmul.mubr.bf16.gmra.mrb[0].mxu0 %v580
        %v619 = vpop.f32.mrb[0].mxu0
        %v620 = vadd.f32 0.0, %v619
        %v621 = vpop.f32.mrb[0].mxu0
        %v622 = vpop.f32.mrb[0].mxu0
        %v623 = vpop.f32.mrb[0].mxu0
        %624 = vdwg.mxu0
        %v625 = vmul.f32 %v620, 0.35355338
        %v626 = vsel %vm302, %v625, -inf
        %627 = vmax.xlane.f32.xlu0 %v626
        %v628 = vpop.xlane.xlu0 %627
        %v629 = vmax.f32 %v299, %v628
        %v630 = vsub.f32 %v299, %v629
        %v631 = vmul.f32 %v630, 1.442695
        %v632 = vpow.pop %v631
        %634 = vset.pattern.permute.xlu0 16
        %635 = vperm.xlu0 %634, %v629
        %v636 = vpop.permute.xlu0 %635
        %v638 = vsub.f32 %v625, %v636
        %v639 = vmul.f32 %v638, 1.442695
        %v640 = vpow.pop %v639
        %v641 = vmul.f32 %v632, %v300
        %v642 = vsel %vm302, %v640, 0.0
        %643 = vadd.xlane.f32.xlu0 %v642
        %v644 = vpop.xlane.xlu0 %643
        %v645 = vadd.f32 %v641, %v644
        %647 = vset.pattern.permute.xlu0 16
        %648 = vperm.xlu0 %647, %v632
        %v649 = vpop.permute.xlu0 %648
        %v651 = vmul.f32 %v649, %v301
        %v652 = vpack.c.bf16 %v640, %v640
        %653 = vrot.lane.b32.xlu0 %v516, 112
        %v654 = vpop.permute.xlu0 %653
        %v656 = vsel %vm302, %v652, 0
        %v659 = vsel %vm380, %v654, 0
        %661 = vmatprep.subr.bf16.mxu0 0
        %662 = vmatpush1.bf16.msra.mxu0 %v659
        %663 = vmatprep.subr.bf16.mxu0 0
        %664 = vmatpush1.bf16.msra.mxu0 0
        %665 = vmatprep.subr.bf16.mxu0 0
        %666 = vmatpush1.bf16.msra.mxu0 0
        %667 = vmatprep.subr.bf16.mxu0 0
        %668 = vmatpush1.bf16.msra.mxu0 0
        %669 = vmatprep.subr.bf16.mxu0 0
        %670 = vmatpush1.bf16.msra.mxu0 0
        %671 = vmatprep.subr.bf16.mxu0 0
        %672 = vmatpush1.bf16.msra.mxu0 0
        %673 = vmatprep.subr.bf16.mxu0 0
        %674 = vmatpush1.bf16.msra.mxu0 0
        %675 = vmatprep.subr.bf16.mxu0 0
        %676 = vmatpush1.bf16.msra.mxu0 0
        %677 = vmatprep.subr.bf16.mxu0 0
        %678 = vmatpush1.bf16.msra.mxu0 0
        %679 = vmatprep.subr.bf16.mxu0 0
        %680 = vmatpush1.bf16.msra.mxu0 0
        %681 = vmatprep.subr.bf16.mxu0 0
        %682 = vmatpush1.bf16.msra.mxu0 0
        %683 = vmatprep.subr.bf16.mxu0 0
        %684 = vmatpush1.bf16.msra.mxu0 0
        %685 = vmatprep.subr.bf16.mxu0 0
        %686 = vmatpush1.bf16.msra.mxu0 0
        %687 = vmatprep.subr.bf16.mxu0 0
        %688 = vmatpush1.bf16.msra.mxu0 0
        %689 = vmatprep.subr.bf16.mxu0 0
        %690 = vmatpush1.bf16.msra.mxu0 0
        %691 = vmatprep.subr.bf16.mxu0 0
        %692 = vmatpush1.bf16.msra.mxu0 0
        %693 = vmatprep.mubr.bf16.mxu0 0
        %694 = vmatmul.mubr.bf16.gmra.mrb[0].mxu0 %v656
        %v695 = vpop.f32.mrb[0].mxu0
        %v696 = vadd.f32 0.0, %v695
        %v697 = vpop.f32.mrb[0].mxu0
        %v698 = vpop.f32.mrb[0].mxu0
        %v699 = vpop.f32.mrb[0].mxu0
        %700 = vdwg.mxu0
        %702 = vrot.lane.b32.xlu0 %v696, 16
        %v703 = vpop.permute.xlu0 %702
        %v705 = vadd.f32 %v651, %v703
        %707 = vset.pattern.permute.xlu0 16
        %708 = vperm.xlu0 %707, %v645
        %v709 = vpop.permute.xlu0 %708
        %711 = vrot.lane.b32.xlu0 %v432, 104
        %v712 = vpop.permute.xlu0 %711
        %713 = vrot.lane.b32.xlu0 %v437, 104
        %v714 = vpop.permute.xlu0 %713
        %v716 = vsel %vm302, %v712, 0
        %v719 = vsel %vm302, %v714, 0
        %721 = vmatprep.subr.bf16.mxu0 0
        %722 = vmatpush1.bf16.xpose.msra.mxu0 %v719
        %723 = vmatprep.subr.bf16.mxu0 0
        %724 = vmatpush1.bf16.xpose.msra.mxu0 0
        %725 = vmatprep.subr.bf16.mxu0 0
        %726 = vmatpush1.bf16.xpose.msra.mxu0 0
        %727 = vmatprep.subr.bf16.mxu0 0
        %728 = vmatpush1.bf16.xpose.msra.mxu0 0
        %729 = vmatprep.subr.bf16.mxu0 0
        %730 = vmatpush1.bf16.xpose.msra.mxu0 0
        %731 = vmatprep.subr.bf16.mxu0 0
        %732 = vmatpush1.bf16.xpose.msra.mxu0 0
        %733 = vmatprep.subr.bf16.mxu0 0
        %734 = vmatpush1.bf16.xpose.msra.mxu0 0
        %735 = vmatprep.subr.bf16.mxu0 0
        %736 = vmatpush1.bf16.xpose.msra.mxu0 0
        %737 = vmatprep.subr.bf16.mxu0 0
        %738 = vmatpush1.bf16.xpose.msra.mxu0 0
        %739 = vmatprep.subr.bf16.mxu0 0
        %740 = vmatpush1.bf16.xpose.msra.mxu0 0
        %741 = vmatprep.subr.bf16.mxu0 0
        %742 = vmatpush1.bf16.xpose.msra.mxu0 0
        %743 = vmatprep.subr.bf16.mxu0 0
        %744 = vmatpush1.bf16.xpose.msra.mxu0 0
        %745 = vmatprep.subr.bf16.mxu0 0
        %746 = vmatpush1.bf16.xpose.msra.mxu0 0
        %747 = vmatprep.subr.bf16.mxu0 0
        %748 = vmatpush1.bf16.xpose.msra.mxu0 0
        %749 = vmatprep.subr.bf16.mxu0 0
        %750 = vmatpush1.bf16.xpose.msra.mxu0 0
        %751 = vmatprep.subr.bf16.mxu0 0
        %752 = vmatpush1.bf16.xpose.msra.mxu0 0
        %753 = vmatprep.mubr.bf16.mxu0 0
        %754 = vmatmul.mubr.bf16.gmra.mrb[0].mxu0 %v716
        %v755 = vpop.f32.mrb[0].mxu0
        %v756 = vadd.f32 0.0, %v755
        %v757 = vpop.f32.mrb[0].mxu0
        %v758 = vpop.f32.mrb[0].mxu0
        %v759 = vpop.f32.mrb[0].mxu0
        %760 = vdwg.mxu0
        %v761 = vmul.f32 %v756, 0.35355338
        %v762 = vsel %vm302, %v761, -inf
        %763 = vmax.xlane.f32.xlu0 %v762
        %v764 = vpop.xlane.xlu0 %763
        %v765 = vmax.f32 %v299, %v764
        %v766 = vsub.f32 %v299, %v765
        %v767 = vmul.f32 %v766, 1.442695
        %v768 = vpow.pop %v767
        %770 = vset.pattern.permute.xlu0 24
        %771 = vperm.xlu0 %770, %v765
        %v772 = vpop.permute.xlu0 %771
        %v774 = vsub.f32 %v761, %v772
        %v775 = vmul.f32 %v774, 1.442695
        %v776 = vpow.pop %v775
        %v777 = vmul.f32 %v768, %v300
        %v778 = vsel %vm302, %v776, 0.0
        %779 = vadd.xlane.f32.xlu0 %v778
        %v780 = vpop.xlane.xlu0 %779
        %v781 = vadd.f32 %v777, %v780
        %783 = vset.pattern.permute.xlu0 24
        %784 = vperm.xlu0 %783, %v768
        %v785 = vpop.permute.xlu0 %784
        %v787 = vmul.f32 %v785, %v301
        %v788 = vpack.c.bf16 %v776, %v776
        %789 = vrot.lane.b32.xlu0 %v516, 104
        %v790 = vpop.permute.xlu0 %789
        %v792 = vsel %vm302, %v788, 0
        %v795 = vsel %vm380, %v790, 0
        %797 = vmatprep.subr.bf16.mxu0 0
        %798 = vmatpush1.bf16.msra.mxu0 %v795
        %799 = vmatprep.subr.bf16.mxu0 0
        %800 = vmatpush1.bf16.msra.mxu0 0
        %801 = vmatprep.subr.bf16.mxu0 0
        %802 = vmatpush1.bf16.msra.mxu0 0
        %803 = vmatprep.subr.bf16.mxu0 0
        %804 = vmatpush1.bf16.msra.mxu0 0
        %805 = vmatprep.subr.bf16.mxu0 0
        %806 = vmatpush1.bf16.msra.mxu0 0
        %807 = vmatprep.subr.bf16.mxu0 0
        %808 = vmatpush1.bf16.msra.mxu0 0
        %809 = vmatprep.subr.bf16.mxu0 0
        %810 = vmatpush1.bf16.msra.mxu0 0
        %811 = vmatprep.subr.bf16.mxu0 0
        %812 = vmatpush1.bf16.msra.mxu0 0
        %813 = vmatprep.subr.bf16.mxu0 0
        %814 = vmatpush1.bf16.msra.mxu0 0
        %815 = vmatprep.subr.bf16.mxu0 0
        %816 = vmatpush1.bf16.msra.mxu0 0
        %817 = vmatprep.subr.bf16.mxu0 0
        %818 = vmatpush1.bf16.msra.mxu0 0
        %819 = vmatprep.subr.bf16.mxu0 0
        %820 = vmatpush1.bf16.msra.mxu0 0
        %821 = vmatprep.subr.bf16.mxu0 0
        %822 = vmatpush1.bf16.msra.mxu0 0
        %823 = vmatprep.subr.bf16.mxu0 0
        %824 = vmatpush1.bf16.msra.mxu0 0
        %825 = vmatprep.subr.bf16.mxu0 0
        %826 = vmatpush1.bf16.msra.mxu0 0
        %827 = vmatprep.subr.bf16.mxu0 0
        %828 = vmatpush1.bf16.msra.mxu0 0
        %829 = vmatprep.mubr.bf16.mxu0 0
        %830 = vmatmul.mubr.bf16.gmra.mrb[0].mxu0 %v792
        %v831 = vpop.f32.mrb[0].mxu0
        %v832 = vadd.f32 0.0, %v831
        %v833 = vpop.f32.mrb[0].mxu0
        %v834 = vpop.f32.mrb[0].mxu0
        %v835 = vpop.f32.mrb[0].mxu0
        %836 = vdwg.mxu0
        %838 = vrot.lane.b32.xlu0 %v832, 24
        %v839 = vpop.permute.xlu0 %838
        %v841 = vadd.f32 %v787, %v839
        %843 = vset.pattern.permute.xlu0 24
        %844 = vperm.xlu0 %843, %v781
        %v845 = vpop.permute.xlu0 %844
        %v847 = vsel %vm302, %v360, %v497
        %vm848 = vcmask 130048
        %v849 = vsel %vm848, %v847, %v636
        %vm850 = vcmask 195584
        %v851 = vsel %vm850, %v849, %v772
        %vm852 = vcmask 261120
        %853 = vst.msk [vmem:[#allocation2] sm:$0xff] %vm852, %v851
        %v854 = vsel %vm302, %v428, %v573
        %v855 = vsel %vm848, %v854, %v709
        %v856 = vsel %vm850, %v855, %v845
        %857 = vst.msk [vmem:[#allocation3] sm:$0xff] %vm852, %v856
        %v858 = vsel %vm302, %v424, %v569
        %v859 = vsel %vm848, %v858, %v705
        %v860 = vsel %vm850, %v859, %v841
        %861 = vst.msk [vmem:[#allocation4] sm:$0xff] %vm852, %v860
        // Predicated region
        $region49: #{diffusion_transformer_forward.10} parent=31 // pred_check
          %p862 = pneg %p288
        $region50: #{diffusion_transformer_forward.10} parent=31 // pred_check_branch
          %864 = sbr.rel (%p862) target = $region52
        $region51: #{diffusion_transformer_forward.10} parent=31 // pred_region
          %v865 = vld [vmem:[#allocation4] sm:$0xff]
          %v866 = vld [vmem:[#allocation3] sm:$0xff]
          %v867 = vrcp.pop %v866
          %v868 = vmul.f32 %v865, %v867
          %v869 = vpack.c.bf16 %v868, %v868
          %vm870 = vcmask 257024
          %871 = vst.msk [vmem:[%s286] sm:$0xf] %vm870, %v869
        $region52: #{diffusion_transformer_forward.10} parent=31 // pred_fallthru
          _
        %s872 = sand.u32 %s136, 1
        %s873 = scalar_lea.sflag [#allocation7], %s872
        %s874 = sand.u32 %s136, 1
        %s875 = smul.addr %s874, 4
        %s876 = scalar_lea.vmem [#allocation11], %s875
        // Predicated region
        $region53: #{diffusion_transformer_forward.10} parent=31 // pred_check
          %p877 = pneg %p146
        $region54: #{diffusion_transformer_forward.10} parent=31 // pred_check_branch
          %879 = sbr.rel (%p877) target = $region56
        $region55: #{diffusion_transformer_forward.10} parent=31 // pred_region
          %s881 = ssub.s32 64, 64
          %882 = vsyncadd %s873, %s881
          %s883 = sadd.s32 %s29, %s28
          %s884 = smul.addr %s883, 64
          %s885 = scalar_lea.hbm %s3, %s884
          %s887 = sshll.u32 %s876, 4
          %s888 = int_to_ptr.vmem [resolvable:$true] %s887
          %890 = dma.vmem_to_hbm [thread:$0]  %s888, 64, %s885, %s873
        $region56: #{diffusion_transformer_forward.10} parent=31 // pred_fallthru
          _
      $region32: #{diffusion_transformer_forward.10} parent=5 // pred_fallthru
        _
      %p891 = scmp.le.s32.totalorder 2, %s18
      // Predicated region
      $region57: #{diffusion_transformer_forward.10} parent=5 // pred_check
        %p892 = pneg %p891
      $region58: #{diffusion_transformer_forward.10} parent=5 // pred_check_branch
        %894 = sbr.rel (%p892) target = $region60
      $region59: #{diffusion_transformer_forward.10} parent=5 // pred_region
        %s895 = ssub.s32 %s18, 2
        // Predicated region
        $region61: #{diffusion_transformer_forward.10} parent=59 // pred_check
          %p896 = pneg %p152
        $region62: #{diffusion_transformer_forward.10} parent=59 // pred_check_branch
          %898 = sbr.rel (%p896) target = $region64
        $region63: #{diffusion_transformer_forward.10} parent=59 // pred_region
          %s899 = sand.u32 %s137, 1
          %s900 = scalar_lea.sflag [#allocation7], %s899
          %s901 = sand.u32 %s137, 1
          %s902 = smul.addr %s901, 4
          %s903 = scalar_lea.vmem [#allocation11], %s902
          %904 = dma.done %s900, 64
        $region64: #{diffusion_transformer_forward.10} parent=59 // pred_fallthru
          _
      $region60: #{diffusion_transformer_forward.10} parent=5 // pred_fallthru
        _
    $region6: #{diffusion_transformer_forward.10} parent=1 // loop_footer
      %s22 = sadd.s32 1, %s18
    $region7: #{diffusion_transformer_forward.10} parent=1 // loop_footer_branch
      %17 = sbr.rel target = $region3
    $region8: #{diffusion_transformer_forward.10} parent=1 // loop_exit
      _
    %905 = vsyncpa [#allocation6], 1
    %s906 = scalar_lea.sflag [#allocation6], 1
    %907 = vsyncpa %s906, 1
    %908 = vsyncpa [#allocation9], 1
    %s909 = scalar_lea.sflag [#allocation9], 1
    %910 = vsyncpa %s909, 1
    %911 = vsyncpa [#allocation7], 1
    %s912 = scalar_lea.sflag [#allocation7], 1
    %913 = vsyncpa %s912, 1

// kernel: diffusion_transformer_forward.11
$region0: #{diffusion_transformer_forward.11}
  #allocation0 [shape = 'u32[]', space=smem, size = 0x4, offset = 0x4, fixed_abs, tag = 'smem constant byte address 0x4 - core index']
  #allocation1 [shape = 'u32[144,128]{1,0:T(1,128)}', space=vmem, size = 0x12000, scoped, tag = 'internal scratch']
  %s0 = inlined_call_operand.hbm [shape: f32[2,8,32], index: 0, kind: input, shape index: {}, may-alias: {0,13}]
  %s1 = inlined_call_operand.hbm [shape: bf16[2,8,32], index: 1, kind: input, shape index: {}]
  %s2 = inlined_call_operand.hbm [shape: f32[2,8,16], index: 2, kind: input, shape index: {}]
  %s3 = inlined_call_operand.hbm [shape: bf16[32,32], index: 3, kind: input, shape index: {}]
  %s4 = inlined_call_operand.hbm [shape: f32[1,32], index: 4, kind: input, shape index: {}]
  %s5 = inlined_call_operand.hbm [shape: bf16[16,32], index: 5, kind: input, shape index: {}]
  %s6 = inlined_call_operand.hbm [shape: f32[1,32], index: 6, kind: input, shape index: {}]
  %s7 = inlined_call_operand.hbm [shape: f32[1,32], index: 7, kind: input, shape index: {}]
  %s8 = inlined_call_operand.hbm [shape: f32[1,32], index: 8, kind: input, shape index: {}]
  %s9 = inlined_call_operand.hbm [shape: bf16[32,128], index: 9, kind: input, shape index: {}]
  %s10 = inlined_call_operand.hbm [shape: f32[1,128], index: 10, kind: input, shape index: {}]
  %s11 = inlined_call_operand.hbm [shape: bf16[128,32], index: 11, kind: input, shape index: {}]
  %s12 = inlined_call_operand.hbm [shape: f32[1,32], index: 12, kind: input, shape index: {}]
  %s13 = inlined_call_operand.hbm [shape: f32[2,8,32], index: 13, kind: output, shape index: {}, may-alias: {0,13}]
  %s14 = sld [smem:[#allocation0]]
  $region137: #{diffusion_transformer_forward.11} parent=0
    _
  %s16 = ssub.s32 1, %s14
  %s17 = scalar_select 0, %s16, %s14
  $region1: #{diffusion_transformer_forward.11} parent=0
    #allocation2 [shape = 'u8[8192]{0}', space=vmem, size = 0x2000, scoped, tag = 'input window, operand 0']
    #allocation3 [shape = 's32[2]{0}', space=sflag, size = 0x8, scoped, tag = 'scoped memory for diffusion_transformer_forward.11']
    #allocation4 [shape = 's32[2]{0}', space=sflag, size = 0x8, scoped, tag = 'scoped memory for diffusion_transformer_forward.11']
    #allocation5 [shape = 'u8[4096]{0}', space=vmem, size = 0x1000, scoped, tag = 'input window, operand 1']
    #allocation6 [shape = 's32[2]{0}', space=sflag, size = 0x8, scoped, tag = 'scoped memory for diffusion_transformer_forward.11']
    #allocation7 [shape = 'u8[8192]{0}', space=vmem, size = 0x2000, scoped, tag = 'input window, operand 2']
    #allocation8 [shape = 'u8[8192]{0}', space=vmem, size = 0x2000, scoped, tag = 'input window, operand 3, single buffered']
    #allocation9 [shape = 's32[1]{0}', space=sflag, size = 0x4, scoped, tag = 'scoped memory for diffusion_transformer_forward.11']
    #allocation10 [shape = 'u8[512]{0}', space=vmem, size = 0x400, scoped, tag = 'input window, operand 4, single buffered']
    #allocation11 [shape = 'u8[4096]{0}', space=vmem, size = 0x1000, scoped, tag = 'input window, operand 5, single buffered']
    #allocation12 [shape = 's32[1]{0}', space=sflag, size = 0x4, scoped, tag = 'scoped memory for diffusion_transformer_forward.11']
    #allocation13 [shape = 'u8[512]{0}', space=vmem, size = 0x400, scoped, tag = 'input window, operand 6, single buffered']
    #allocation14 [shape = 'u8[512]{0}', space=vmem, size = 0x400, scoped, tag = 'input window, operand 7, single buffered']
    #allocation15 [shape = 's32[1]{0}', space=sflag, size = 0x4, scoped, tag = 'scoped memory for diffusion_transformer_forward.11']
    #allocation16 [shape = 'u8[512]{0}', space=vmem, size = 0x400, scoped, tag = 'input window, operand 8, single buffered']
    #allocation17 [shape = 'u8[8192]{0}', space=vmem, size = 0x2000, scoped, tag = 'input window, operand 9, single buffered']
    #allocation18 [shape = 's32[1]{0}', space=sflag, size = 0x4, scoped, tag = 'scoped memory for diffusion_transformer_forward.11']
    #allocation19 [shape = 'u8[512]{0}', space=vmem, size = 0x400, scoped, tag = 'input window, operand 10, single buffered']
    #allocation20 [shape = 'u8[32768]{0}', space=vmem, size = 0x8000, scoped, tag = 'input window, operand 11, single buffered']
    #allocation21 [shape = 's32[1]{0}', space=sflag, size = 0x4, scoped, tag = 'scoped memory for diffusion_transformer_forward.11']
    #allocation22 [shape = 'u8[512]{0}', space=vmem, size = 0x400, scoped, tag = 'input window, operand 12, single buffered']
    #allocation23 [shape = 'u8[8192]{0}', space=vmem, size = 0x2000, scoped, tag = 'output window, operand 0']
    %18 = vsyncpa [#allocation3], 0
    %s19 = scalar_lea.sflag [#allocation3], 1
    %20 = vsyncpa %s19, 0
    %21 = vsyncpa [#allocation6], 0
    %s22 = scalar_lea.sflag [#allocation6], 1
    %23 = vsyncpa %s22, 0
    %24 = vsyncpa [#allocation9], 0
    %25 = vsyncpa [#allocation12], 0
    %26 = vsyncpa [#allocation15], 0
    %27 = vsyncpa [#allocation18], 0
    %28 = vsyncpa [#allocation21], 0
    %29 = vsyncpa [#allocation4], 0
    %s30 = scalar_lea.sflag [#allocation4], 1
    %31 = vsyncpa %s30, 0
    loop: start=0, step=1, limit=4
    $region2: #{diffusion_transformer_forward.11} parent=1 // loop_pre_header
      _
    $region3: #{diffusion_transformer_forward.11} parent=1 // loop_header
      %s33 = sphi 0, %s37
      %p34 = scmp.ge.s32.totalorder %s33, 4
      %s40 = sphi 0, %s52
      %s41 = sphi 0, %s48
      %s42 = sphi 0, %s40
      %s43 = sphi 0, %s41
      %s44 = sphi 0, %s42
      %s45 = sphi 0, %s43
      %s57 = sphi 0, %s59
      %s60 = sphi 0, %s57
      %s61 = sphi 0, %s60
      %s77 = sphi 0, %s61
      %s85 = sphi 0, %s87
      %s88 = sphi 0, %s85
      %s89 = sphi 0, %s88
      %s105 = sphi 0, %s89
      %s113 = sphi 0, %s115
      %s116 = sphi 0, %s113
      %s117 = sphi 0, %s116
      %s133 = sphi 0, %s117
      %s137 = sphi 0, %s137
      %s139 = sphi 0, %s137
      %s140 = sphi 0, %s139
      %s154 = sphi 0, %s140
      %s158 = sphi 0, %s158
      %s160 = sphi 0, %s158
      %s161 = sphi 0, %s160
      %s175 = sphi 0, %s161
      %s179 = sphi 0, %s179
      %s181 = sphi 0, %s179
      %s182 = sphi 0, %s181
      %s196 = sphi 0, %s182
      %s200 = sphi 0, %s200
      %s202 = sphi 0, %s200
      %s203 = sphi 0, %s202
      %s217 = sphi 0, %s203
      %s221 = sphi 0, %s221
      %s223 = sphi 0, %s221
      %s224 = sphi 0, %s223
      %s238 = sphi 0, %s224
      %s242 = sphi 0, %s242
      %s244 = sphi 0, %s242
      %s245 = sphi 0, %s244
      %s259 = sphi 0, %s245
      %s263 = sphi 0, %s263
      %s265 = sphi 0, %s263
      %s266 = sphi 0, %s265
      %s280 = sphi 0, %s266
      %s284 = sphi 0, %s284
      %s286 = sphi 0, %s284
      %s287 = sphi 0, %s286
      %s301 = sphi 0, %s287
      %s305 = sphi 0, %s305
      %s307 = sphi 0, %s305
      %s308 = sphi 0, %s307
      %s322 = sphi 0, %s308
      %s326 = sphi 0, %s326
      %s328 = sphi 0, %s326
      %s329 = sphi 0, %s328
      %s343 = sphi 0, %s329
      %s351 = sphi 0, %s353
      %s354 = sphi 0, %s351
      %s355 = sphi 0, %s354
      %s371 = sphi 0, %s355
    $region4: #{diffusion_transformer_forward.11} parent=1 // loop_header_branch
      %36 = sbr.rel (%p34) target = $region8
    $region5: #{diffusion_transformer_forward.11} parent=1 // loop_body
      %s38 = ssub.s32 %s33, 1
      %s39 = ssub.s32 %s33, 2
      %s46 = sadd.s32 1, %s41
      %p47 = scmp.ge.s32.totalorder %s46, 1
      %s48 = scalar_select %p47, 0, %s46
      %s49 = sadd.s32 1, %s40
      %s50 = scalar_select %p47, %s49, %s40
      %p51 = scmp.ge.s32.totalorder %s50, 2
      %s52 = scalar_select %p51, 0, %s50
      %s53 = ssub.s32 %s40, %s52
      %s54 = ssub.s32 %s41, %s48
      %s55 = sor.u32 %s53, %s54
      %p56 = scmp.eq.s32.totalorder %s55, 0
      %s58 = sadd.s32 %s57, 1
      %s59 = scalar_select %p56, %s57, %s58
      %p62 = pneg %p56
      %p63 = scmp.eq.s32.totalorder %s33, 1
      %p64 = por %p62, %p63
      %p65 = scmp.ne.s32.totalorder %s57, %s60
      %p66 = scmp.eq.s32.totalorder %s33, 0
      %p67 = por %p65, %p66
      %p68 = scmp.ne.s32.totalorder %s57, %s60
      %p69 = scmp.eq.s32.totalorder %s38, 1
      %p70 = por %p68, %p69
      %p71 = scmp.ne.s32.totalorder %s60, %s61
      %p72 = scmp.eq.s32.totalorder %s38, 0
      %p73 = por %p71, %p72
      %p74 = scmp.ne.s32.totalorder %s60, %s61
      %p75 = scmp.eq.s32.totalorder %s39, 1
      %p76 = por %p74, %p75
      %p78 = scmp.ne.s32.totalorder %s61, %s77
      %p79 = scmp.eq.s32.totalorder %s39, 0
      %p80 = por %p78, %p79
      %s81 = ssub.s32 %s40, %s52
      %s82 = ssub.s32 %s41, %s48
      %s83 = sor.u32 %s81, %s82
      %p84 = scmp.eq.s32.totalorder %s83, 0
      %s86 = sadd.s32 %s85, 1
      %s87 = scalar_select %p84, %s85, %s86
      %p90 = pneg %p84
      %p91 = scmp.eq.s32.totalorder %s33, 1
      %p92 = por %p90, %p91
      %p93 = scmp.ne.s32.totalorder %s85, %s88
      %p94 = scmp.eq.s32.totalorder %s33, 0
      %p95 = por %p93, %p94
      %p96 = scmp.ne.s32.totalorder %s85, %s88
      %p97 = scmp.eq.s32.totalorder %s38, 1
      %p98 = por %p96, %p97
      %p99 = scmp.ne.s32.totalorder %s88, %s89
      %p100 = scmp.eq.s32.totalorder %s38, 0
      %p101 = por %p99, %p100
      %p102 = scmp.ne.s32.totalorder %s88, %s89
      %p103 = scmp.eq.s32.totalorder %s39, 1
      %p104 = por %p102, %p103
      %p106 = scmp.ne.s32.totalorder %s89, %s105
      %p107 = scmp.eq.s32.totalorder %s39, 0
      %p108 = por %p106, %p107
      %s109 = ssub.s32 %s40, %s52
      %s110 = ssub.s32 %s41, %s48
      %s111 = sor.u32 %s109, %s110
      %p112 = scmp.eq.s32.totalorder %s111, 0
      %s114 = sadd.s32 %s113, 1
      %s115 = scalar_select %p112, %s113, %s114
      %p118 = pneg %p112
      %p119 = scmp.eq.s32.totalorder %s33, 1
      %p120 = por %p118, %p119
      %p121 = scmp.ne.s32.totalorder %s113, %s116
      %p122 = scmp.eq.s32.totalorder %s33, 0
      %p123 = por %p121, %p122
      %p124 = scmp.ne.s32.totalorder %s113, %s116
      %p125 = scmp.eq.s32.totalorder %s38, 1
      %p126 = por %p124, %p125
      %p127 = scmp.ne.s32.totalorder %s116, %s117
      %p128 = scmp.eq.s32.totalorder %s38, 0
      %p129 = por %p127, %p128
      %p130 = scmp.ne.s32.totalorder %s116, %s117
      %p131 = scmp.eq.s32.totalorder %s39, 1
      %p132 = por %p130, %p131
      %p134 = scmp.ne.s32.totalorder %s117, %s133
      %p135 = scmp.eq.s32.totalorder %s39, 0
      %p136 = por %p134, %p135
      %s138 = sadd.s32 %s137, 1
      %p141 = scmp.eq.s32.totalorder %s33, 1
      %p142 = scmp.ne.s32.totalorder %s137, %s139
      %p143 = scmp.eq.s32.totalorder %s33, 0
      %p144 = por %p142, %p143
      %p145 = scmp.ne.s32.totalorder %s137, %s139
      %p146 = scmp.eq.s32.totalorder %s38, 1
      %p147 = por %p145, %p146
      %p148 = scmp.ne.s32.totalorder %s139, %s140
      %p149 = scmp.eq.s32.totalorder %s38, 0
      %p150 = por %p148, %p149
      %p151 = scmp.ne.s32.totalorder %s139, %s140
      %p152 = scmp.eq.s32.totalorder %s39, 1
      %p153 = por %p151, %p152
      %p155 = scmp.ne.s32.totalorder %s140, %s154
      %p156 = scmp.eq.s32.totalorder %s39, 0
      %p157 = por %p155, %p156
      %s159 = sadd.s32 %s158, 1
      %p162 = scmp.eq.s32.totalorder %s33, 1
      %p163 = scmp.ne.s32.totalorder %s158, %s160
      %p164 = scmp.eq.s32.totalorder %s33, 0
      %p165 = por %p163, %p164
      %p166 = scmp.ne.s32.totalorder %s158, %s160
      %p167 = scmp.eq.s32.totalorder %s38, 1
      %p168 = por %p166, %p167
      %p169 = scmp.ne.s32.totalorder %s160, %s161
      %p170 = scmp.eq.s32.totalorder %s38, 0
      %p171 = por %p169, %p170
      %p172 = scmp.ne.s32.totalorder %s160, %s161
      %p173 = scmp.eq.s32.totalorder %s39, 1
      %p174 = por %p172, %p173
      %p176 = scmp.ne.s32.totalorder %s161, %s175
      %p177 = scmp.eq.s32.totalorder %s39, 0
      %p178 = por %p176, %p177
      %s180 = sadd.s32 %s179, 1
      %p183 = scmp.eq.s32.totalorder %s33, 1
      %p184 = scmp.ne.s32.totalorder %s179, %s181
      %p185 = scmp.eq.s32.totalorder %s33, 0
      %p186 = por %p184, %p185
      %p187 = scmp.ne.s32.totalorder %s179, %s181
      %p188 = scmp.eq.s32.totalorder %s38, 1
      %p189 = por %p187, %p188
      %p190 = scmp.ne.s32.totalorder %s181, %s182
      %p191 = scmp.eq.s32.totalorder %s38, 0
      %p192 = por %p190, %p191
      %p193 = scmp.ne.s32.totalorder %s181, %s182
      %p194 = scmp.eq.s32.totalorder %s39, 1
      %p195 = por %p193, %p194
      %p197 = scmp.ne.s32.totalorder %s182, %s196
      %p198 = scmp.eq.s32.totalorder %s39, 0
      %p199 = por %p197, %p198
      %s201 = sadd.s32 %s200, 1
      %p204 = scmp.eq.s32.totalorder %s33, 1
      %p205 = scmp.ne.s32.totalorder %s200, %s202
      %p206 = scmp.eq.s32.totalorder %s33, 0
      %p207 = por %p205, %p206
      %p208 = scmp.ne.s32.totalorder %s200, %s202
      %p209 = scmp.eq.s32.totalorder %s38, 1
      %p210 = por %p208, %p209
      %p211 = scmp.ne.s32.totalorder %s202, %s203
      %p212 = scmp.eq.s32.totalorder %s38, 0
      %p213 = por %p211, %p212
      %p214 = scmp.ne.s32.totalorder %s202, %s203
      %p215 = scmp.eq.s32.totalorder %s39, 1
      %p216 = por %p214, %p215
      %p218 = scmp.ne.s32.totalorder %s203, %s217
      %p219 = scmp.eq.s32.totalorder %s39, 0
      %p220 = por %p218, %p219
      %s222 = sadd.s32 %s221, 1
      %p225 = scmp.eq.s32.totalorder %s33, 1
      %p226 = scmp.ne.s32.totalorder %s221, %s223
      %p227 = scmp.eq.s32.totalorder %s33, 0
      %p228 = por %p226, %p227
      %p229 = scmp.ne.s32.totalorder %s221, %s223
      %p230 = scmp.eq.s32.totalorder %s38, 1
      %p231 = por %p229, %p230
      %p232 = scmp.ne.s32.totalorder %s223, %s224
      %p233 = scmp.eq.s32.totalorder %s38, 0
      %p234 = por %p232, %p233
      %p235 = scmp.ne.s32.totalorder %s223, %s224
      %p236 = scmp.eq.s32.totalorder %s39, 1
      %p237 = por %p235, %p236
      %p239 = scmp.ne.s32.totalorder %s224, %s238
      %p240 = scmp.eq.s32.totalorder %s39, 0
      %p241 = por %p239, %p240
      %s243 = sadd.s32 %s242, 1
      %p246 = scmp.eq.s32.totalorder %s33, 1
      %p247 = scmp.ne.s32.totalorder %s242, %s244
      %p248 = scmp.eq.s32.totalorder %s33, 0
      %p249 = por %p247, %p248
      %p250 = scmp.ne.s32.totalorder %s242, %s244
      %p251 = scmp.eq.s32.totalorder %s38, 1
      %p252 = por %p250, %p251
      %p253 = scmp.ne.s32.totalorder %s244, %s245
      %p254 = scmp.eq.s32.totalorder %s38, 0
      %p255 = por %p253, %p254
      %p256 = scmp.ne.s32.totalorder %s244, %s245
      %p257 = scmp.eq.s32.totalorder %s39, 1
      %p258 = por %p256, %p257
      %p260 = scmp.ne.s32.totalorder %s245, %s259
      %p261 = scmp.eq.s32.totalorder %s39, 0
      %p262 = por %p260, %p261
      %s264 = sadd.s32 %s263, 1
      %p267 = scmp.eq.s32.totalorder %s33, 1
      %p268 = scmp.ne.s32.totalorder %s263, %s265
      %p269 = scmp.eq.s32.totalorder %s33, 0
      %p270 = por %p268, %p269
      %p271 = scmp.ne.s32.totalorder %s263, %s265
      %p272 = scmp.eq.s32.totalorder %s38, 1
      %p273 = por %p271, %p272
      %p274 = scmp.ne.s32.totalorder %s265, %s266
      %p275 = scmp.eq.s32.totalorder %s38, 0
      %p276 = por %p274, %p275
      %p277 = scmp.ne.s32.totalorder %s265, %s266
      %p278 = scmp.eq.s32.totalorder %s39, 1
      %p279 = por %p277, %p278
      %p281 = scmp.ne.s32.totalorder %s266, %s280
      %p282 = scmp.eq.s32.totalorder %s39, 0
      %p283 = por %p281, %p282
      %s285 = sadd.s32 %s284, 1
      %p288 = scmp.eq.s32.totalorder %s33, 1
      %p289 = scmp.ne.s32.totalorder %s284, %s286
      %p290 = scmp.eq.s32.totalorder %s33, 0
      %p291 = por %p289, %p290
      %p292 = scmp.ne.s32.totalorder %s284, %s286
      %p293 = scmp.eq.s32.totalorder %s38, 1
      %p294 = por %p292, %p293
      %p295 = scmp.ne.s32.totalorder %s286, %s287
      %p296 = scmp.eq.s32.totalorder %s38, 0
      %p297 = por %p295, %p296
      %p298 = scmp.ne.s32.totalorder %s286, %s287
      %p299 = scmp.eq.s32.totalorder %s39, 1
      %p300 = por %p298, %p299
      %p302 = scmp.ne.s32.totalorder %s287, %s301
      %p303 = scmp.eq.s32.totalorder %s39, 0
      %p304 = por %p302, %p303
      %s306 = sadd.s32 %s305, 1
      %p309 = scmp.eq.s32.totalorder %s33, 1
      %p310 = scmp.ne.s32.totalorder %s305, %s307
      %p311 = scmp.eq.s32.totalorder %s33, 0
      %p312 = por %p310, %p311
      %p313 = scmp.ne.s32.totalorder %s305, %s307
      %p314 = scmp.eq.s32.totalorder %s38, 1
      %p315 = por %p313, %p314
      %p316 = scmp.ne.s32.totalorder %s307, %s308
      %p317 = scmp.eq.s32.totalorder %s38, 0
      %p318 = por %p316, %p317
      %p319 = scmp.ne.s32.totalorder %s307, %s308
      %p320 = scmp.eq.s32.totalorder %s39, 1
      %p321 = por %p319, %p320
      %p323 = scmp.ne.s32.totalorder %s308, %s322
      %p324 = scmp.eq.s32.totalorder %s39, 0
      %p325 = por %p323, %p324
      %s327 = sadd.s32 %s326, 1
      %p330 = scmp.eq.s32.totalorder %s33, 1
      %p331 = scmp.ne.s32.totalorder %s326, %s328
      %p332 = scmp.eq.s32.totalorder %s33, 0
      %p333 = por %p331, %p332
      %p334 = scmp.ne.s32.totalorder %s326, %s328
      %p335 = scmp.eq.s32.totalorder %s38, 1
      %p336 = por %p334, %p335
      %p337 = scmp.ne.s32.totalorder %s328, %s329
      %p338 = scmp.eq.s32.totalorder %s38, 0
      %p339 = por %p337, %p338
      %p340 = scmp.ne.s32.totalorder %s328, %s329
      %p341 = scmp.eq.s32.totalorder %s39, 1
      %p342 = por %p340, %p341
      %p344 = scmp.ne.s32.totalorder %s329, %s343
      %p345 = scmp.eq.s32.totalorder %s39, 0
      %p346 = por %p344, %p345
      %s347 = ssub.s32 %s40, %s52
      %s348 = ssub.s32 %s41, %s48
      %s349 = sor.u32 %s347, %s348
      %p350 = scmp.eq.s32.totalorder %s349, 0
      %s352 = sadd.s32 %s351, 1
      %s353 = scalar_select %p350, %s351, %s352
      %p356 = pneg %p350
      %p357 = scmp.eq.s32.totalorder %s33, 1
      %p358 = por %p356, %p357
      %p359 = scmp.ne.s32.totalorder %s351, %s354
      %p360 = scmp.eq.s32.totalorder %s33, 0
      %p361 = por %p359, %p360
      %p362 = scmp.ne.s32.totalorder %s351, %s354
      %p363 = scmp.eq.s32.totalorder %s38, 1
      %p364 = por %p362, %p363
      %p365 = scmp.ne.s32.totalorder %s354, %s355
      %p366 = scmp.eq.s32.totalorder %s38, 0
      %p367 = por %p365, %p366
      %p368 = scmp.ne.s32.totalorder %s354, %s355
      %p369 = scmp.eq.s32.totalorder %s39, 1
      %p370 = por %p368, %p369
      %p372 = scmp.ne.s32.totalorder %s355, %s371
      %p373 = scmp.eq.s32.totalorder %s39, 0
      %p374 = por %p372, %p373
      %p375 = scmp.le.s32.totalorder 1, %s33
      %p376 = scmp.lt.s32.totalorder %s33, 3
      %p377 = pnand %p375, %p376
      %p378 = pneg %p377
      // Predicated region
      $region9: #{diffusion_transformer_forward.11} parent=5 // pred_check
        _
      $region10: #{diffusion_transformer_forward.11} parent=5 // pred_check_branch
        %380 = sbr.rel (%p377) target = $region12
      $region11: #{diffusion_transformer_forward.11} parent=5 // pred_region
        %s381 = ssub.s32 %s33, 1
        // Predicated region
        $region13: #{diffusion_transformer_forward.11} parent=11 // pred_check
          %p382 = pneg %p150
        $region14: #{diffusion_transformer_forward.11} parent=11 // pred_check_branch
          %384 = sbr.rel (%p382) target = $region16
        $region15: #{diffusion_transformer_forward.11} parent=11 // pred_region
          %s386 = ssub.s32 256, 256
          %387 = vsyncadd [#allocation9], %s386
          %s388 = sshll.u32 [#allocation8], 4
          %s389 = int_to_ptr.vmem [resolvable:$true] %s388
          %394 = dma.hbm_to_vmem [thread:$0]  %s3, 256, %s389, [#allocation9], 64, 64, 4
        $region16: #{diffusion_transformer_forward.11} parent=11 // pred_fallthru
          _
        // Predicated region
        $region17: #{diffusion_transformer_forward.11} parent=11 // pred_check
          %p395 = pneg %p171
        $region18: #{diffusion_transformer_forward.11} parent=11 // pred_check_branch
          %397 = sbr.rel (%p395) target = $region20
        $region19: #{diffusion_transformer_forward.11} parent=11 // pred_region
          %s399 = ssub.s32 16, 16
          %400 = vsyncadd [#allocation9], %s399
          %s402 = sshll.u32 [#allocation10], 4
          %s403 = int_to_ptr.vmem [resolvable:$true] %s402
          %405 = dma.hbm_to_vmem [thread:$0]  %s4, 16, %s403, [#allocation9]
        $region20: #{diffusion_transformer_forward.11} parent=11 // pred_fallthru
          _
        // Predicated region
        $region21: #{diffusion_transformer_forward.11} parent=11 // pred_check
          %p406 = pneg %p192
        $region22: #{diffusion_transformer_forward.11} parent=11 // pred_check_branch
          %408 = sbr.rel (%p406) target = $region24
        $region23: #{diffusion_transformer_forward.11} parent=11 // pred_region
          %s410 = ssub.s32 128, 128
          %411 = vsyncadd [#allocation12], %s410
          %s412 = sshll.u32 [#allocation11], 4
          %s413 = int_to_ptr.vmem [resolvable:$true] %s412
          %418 = dma.hbm_to_vmem [thread:$0]  %s5, 128, %s413, [#allocation12], 64, 64, 4
        $region24: #{diffusion_transformer_forward.11} parent=11 // pred_fallthru
          _
        // Predicated region
        $region25: #{diffusion_transformer_forward.11} parent=11 // pred_check
          %p419 = pneg %p213
        $region26: #{diffusion_transformer_forward.11} parent=11 // pred_check_branch
          %421 = sbr.rel (%p419) target = $region28
        $region27: #{diffusion_transformer_forward.11} parent=11 // pred_region
          %s423 = ssub.s32 16, 16
          %424 = vsyncadd [#allocation12], %s423
          %s426 = sshll.u32 [#allocation13], 4
          %s427 = int_to_ptr.vmem [resolvable:$true] %s426
          %429 = dma.hbm_to_vmem [thread:$0]  %s6, 16, %s427, [#allocation12]
        $region28: #{diffusion_transformer_forward.11} parent=11 // pred_fallthru
          _
        // Predicated region
        $region29: #{diffusion_transformer_forward.11} parent=11 // pred_check
          %p430 = pneg %p234
        $region30: #{diffusion_transformer_forward.11} parent=11 // pred_check_branch
          %432 = sbr.rel (%p430) target = $region32
        $region31: #{diffusion_transformer_forward.11} parent=11 // pred_region
          %s434 = ssub.s32 16, 16
          %435 = vsyncadd [#allocation15], %s434
          %s437 = sshll.u32 [#allocation14], 4
          %s438 = int_to_ptr.vmem [resolvable:$true] %s437
          %440 = dma.hbm_to_vmem [thread:$0]  %s7, 16, %s438, [#allocation15]
        $region32: #{diffusion_transformer_forward.11} parent=11 // pred_fallthru
          _
        // Predicated region
        $region33: #{diffusion_transformer_forward.11} parent=11 // pred_check
          %p441 = pneg %p255
        $region34: #{diffusion_transformer_forward.11} parent=11 // pred_check_branch
          %443 = sbr.rel (%p441) target = $region36
        $region35: #{diffusion_transformer_forward.11} parent=11 // pred_region
          %s445 = ssub.s32 16, 16
          %446 = vsyncadd [#allocation15], %s445
          %s448 = sshll.u32 [#allocation16], 4
          %s449 = int_to_ptr.vmem [resolvable:$true] %s448
          %451 = dma.hbm_to_vmem [thread:$0]  %s8, 16, %s449, [#allocation15]
        $region36: #{diffusion_transformer_forward.11} parent=11 // pred_fallthru
          _
        // Predicated region
        $region37: #{diffusion_transformer_forward.11} parent=11 // pred_check
          %p452 = pneg %p276
        $region38: #{diffusion_transformer_forward.11} parent=11 // pred_check_branch
          %454 = sbr.rel (%p452) target = $region40
        $region39: #{diffusion_transformer_forward.11} parent=11 // pred_region
          %s456 = ssub.s32 256, 256
          %457 = vsyncadd [#allocation18], %s456
          %s458 = sshll.u32 [#allocation17], 4
          %s459 = int_to_ptr.vmem [resolvable:$true] %s458
          %464 = dma.hbm_to_vmem [thread:$0]  %s9, 256, %s459, [#allocation18], 64, 64, 4
        $region40: #{diffusion_transformer_forward.11} parent=11 // pred_fallthru
          _
        // Predicated region
        $region41: #{diffusion_transformer_forward.11} parent=11 // pred_check
          %p465 = pneg %p297
        $region42: #{diffusion_transformer_forward.11} parent=11 // pred_check_branch
          %467 = sbr.rel (%p465) target = $region44
        $region43: #{diffusion_transformer_forward.11} parent=11 // pred_region
          %s469 = ssub.s32 16, 16
          %470 = vsyncadd [#allocation18], %s469
          %s472 = sshll.u32 [#allocation19], 4
          %s473 = int_to_ptr.vmem [resolvable:$true] %s472
          %475 = dma.hbm_to_vmem [thread:$0]  %s10, 16, %s473, [#allocation18]
        $region44: #{diffusion_transformer_forward.11} parent=11 // pred_fallthru
          _
        // Predicated region
        $region45: #{diffusion_transformer_forward.11} parent=11 // pred_check
          %p476 = pneg %p318
        $region46: #{diffusion_transformer_forward.11} parent=11 // pred_check_branch
          %478 = sbr.rel (%p476) target = $region48
        $region47: #{diffusion_transformer_forward.11} parent=11 // pred_region
          %s480 = ssub.s32 1024, 1024
          %481 = vsyncadd [#allocation21], %s480
          %s482 = sshll.u32 [#allocation20], 4
          %s483 = int_to_ptr.vmem [resolvable:$true] %s482
          %488 = dma.hbm_to_vmem [thread:$0]  %s11, 1024, %s483, [#allocation21], 64, 64, 4
        $region48: #{diffusion_transformer_forward.11} parent=11 // pred_fallthru
          _
        // Predicated region
        $region49: #{diffusion_transformer_forward.11} parent=11 // pred_check
          %p489 = pneg %p339
        $region50: #{diffusion_transformer_forward.11} parent=11 // pred_check_branch
          %491 = sbr.rel (%p489) target = $region52
        $region51: #{diffusion_transformer_forward.11} parent=11 // pred_region
          %s493 = ssub.s32 16, 16
          %494 = vsyncadd [#allocation21], %s493
          %s496 = sshll.u32 [#allocation22], 4
          %s497 = int_to_ptr.vmem [resolvable:$true] %s496
          %499 = dma.hbm_to_vmem [thread:$0]  %s12, 16, %s497, [#allocation21]
        $region52: #{diffusion_transformer_forward.11} parent=11 // pred_fallthru
          _
      $region12: #{diffusion_transformer_forward.11} parent=5 // pred_fallthru
        _
      %p500 = scmp.lt.s32.totalorder %s33, 2
      // Predicated region
      $region53: #{diffusion_transformer_forward.11} parent=5 // pred_check
        %p501 = pneg %p500
      $region54: #{diffusion_transformer_forward.11} parent=5 // pred_check_branch
        %503 = sbr.rel (%p501) target = $region56
      $region55: #{diffusion_transformer_forward.11} parent=5 // pred_region
        // Predicated region
        $region57: #{diffusion_transformer_forward.11} parent=55 // pred_check
          %p504 = pneg %p67
        $region58: #{diffusion_transformer_forward.11} parent=55 // pred_check_branch
          %506 = sbr.rel (%p504) target = $region60
        $region59: #{diffusion_transformer_forward.11} parent=55 // pred_region
          %s507 = sand.u32 %s57, 1
          %s508 = scalar_lea.sflag [#allocation3], %s507
          %s509 = sand.u32 %s57, 1
          %s510 = smul.addr %s509, 8
          %s511 = scalar_lea.vmem [#allocation2], %s510
          %s513 = ssub.s32 128, 128
          %514 = vsyncadd %s508, %s513
          %s515 = sadd.s32 %s41, %s40
          %s516 = smul.addr %s515, 128
          %s517 = scalar_lea.hbm %s0, %s516
          %s519 = sshll.u32 %s511, 4
          %s520 = int_to_ptr.vmem [resolvable:$true] %s519
          %522 = dma.hbm_to_vmem [thread:$0]  %s517, 128, %s520, %s508
        $region60: #{diffusion_transformer_forward.11} parent=55 // pred_fallthru
          _
        // Predicated region
        $region61: #{diffusion_transformer_forward.11} parent=55 // pred_check
          %p523 = pneg %p95
        $region62: #{diffusion_transformer_forward.11} parent=55 // pred_check_branch
          %525 = sbr.rel (%p523) target = $region64
        $region63: #{diffusion_transformer_forward.11} parent=55 // pred_region
          %s526 = sand.u32 %s33, 1
          %s527 = scalar_lea.sflag [#allocation6], %s526
          %s528 = sand.u32 %s85, 1
          %s529 = smul.addr %s528, 4
          %s530 = scalar_lea.vmem [#allocation5], %s529
          %s532 = ssub.s32 64, 64
          %533 = vsyncadd %s527, %s532
          %s534 = sadd.s32 %s41, %s40
          %s535 = smul.addr %s534, 64
          %s536 = scalar_lea.hbm %s1, %s535
          %s538 = sshll.u32 %s530, 4
          %s539 = int_to_ptr.vmem [resolvable:$true] %s538
          %541 = dma.hbm_to_vmem [thread:$0]  %s536, 64, %s539, %s527
        $region64: #{diffusion_transformer_forward.11} parent=55 // pred_fallthru
          _
        // Predicated region
        $region65: #{diffusion_transformer_forward.11} parent=55 // pred_check
          %p542 = pneg %p123
        $region66: #{diffusion_transformer_forward.11} parent=55 // pred_check_branch
          %544 = sbr.rel (%p542) target = $region68
        $region67: #{diffusion_transformer_forward.11} parent=55 // pred_region
          %s545 = sand.u32 %s33, 1
          %s546 = scalar_lea.sflag [#allocation6], %s545
          %s547 = sand.u32 %s113, 1
          %s548 = smul.addr %s547, 8
          %s549 = scalar_lea.vmem [#allocation7], %s548
          %s551 = ssub.s32 128, 128
          %552 = vsyncadd %s546, %s551
          %s553 = sadd.s32 %s41, %s40
          %s554 = smul.addr %s553, 128
          %s555 = scalar_lea.hbm %s2, %s554
          %s557 = sshll.u32 %s549, 4
          %s558 = int_to_ptr.vmem [resolvable:$true] %s557
          %560 = dma.hbm_to_vmem [thread:$0]  %s555, 128, %s558, %s546
        $region68: #{diffusion_transformer_forward.11} parent=55 // pred_fallthru
          _
      $region56: #{diffusion_transformer_forward.11} parent=5 // pred_fallthru
        _
      %p561 = scmp.le.s32.totalorder 1, %s33
      %p562 = scmp.lt.s32.totalorder %s33, 3
      %p563 = pnand %p561, %p562
      %p564 = pneg %p563
      // Predicated region
      $region69: #{diffusion_transformer_forward.11} parent=5 // pred_check
        _
      $region70: #{diffusion_transformer_forward.11} parent=5 // pred_check_branch
        %566 = sbr.rel (%p563) target = $region72
      $region71: #{diffusion_transformer_forward.11} parent=5 // pred_region
        %s567 = ssub.s32 %s33, 1
        %s568 = sand.u32 %s60, 1
        %s569 = scalar_lea.sflag [#allocation3], %s568
        %s570 = sand.u32 %s60, 1
        %s571 = smul.addr %s570, 8
        %s572 = scalar_lea.vmem [#allocation2], %s571
        // Predicated region
        $region73: #{diffusion_transformer_forward.11} parent=71 // pred_check
          %p573 = pneg %p73
        $region74: #{diffusion_transformer_forward.11} parent=71 // pred_check_branch
          %575 = sbr.rel (%p573) target = $region76
        $region75: #{diffusion_transformer_forward.11} parent=71 // pred_region
          %576 = dma.done %s569, 128
        $region76: #{diffusion_transformer_forward.11} parent=71 // pred_fallthru
          _
        %s577 = sand.u32 %s38, 1
        %s578 = scalar_lea.sflag [#allocation6], %s577
        %s579 = sand.u32 %s88, 1
        %s580 = smul.addr %s579, 4
        %s581 = scalar_lea.vmem [#allocation5], %s580
        // Predicated region
        $region77: #{diffusion_transformer_forward.11} parent=71 // pred_check
          %p582 = pneg %p101
        $region78: #{diffusion_transformer_forward.11} parent=71 // pred_check_branch
          %584 = sbr.rel (%p582) target = $region80
        $region79: #{diffusion_transformer_forward.11} parent=71 // pred_region
          %585 = dma.done %s578, 64
        $region80: #{diffusion_transformer_forward.11} parent=71 // pred_fallthru
          _
        %s586 = sand.u32 %s38, 1
        %s587 = scalar_lea.sflag [#allocation6], %s586
        %s588 = sand.u32 %s116, 1
        %s589 = smul.addr %s588, 8
        %s590 = scalar_lea.vmem [#allocation7], %s589
        // Predicated region
        $region81: #{diffusion_transformer_forward.11} parent=71 // pred_check
          %p591 = pneg %p129
        $region82: #{diffusion_transformer_forward.11} parent=71 // pred_check_branch
          %593 = sbr.rel (%p591) target = $region84
        $region83: #{diffusion_transformer_forward.11} parent=71 // pred_region
          %594 = dma.done %s587, 128
        $region84: #{diffusion_transformer_forward.11} parent=71 // pred_fallthru
          _
        // Predicated region
        $region85: #{diffusion_transformer_forward.11} parent=71 // pred_check
          %p595 = pneg %p150
        $region86: #{diffusion_transformer_forward.11} parent=71 // pred_check_branch
          %597 = sbr.rel (%p595) target = $region88
        $region87: #{diffusion_transformer_forward.11} parent=71 // pred_region
          %598 = dma.done [#allocation9], 256
        $region88: #{diffusion_transformer_forward.11} parent=71 // pred_fallthru
          _
        // Predicated region
        $region89: #{diffusion_transformer_forward.11} parent=71 // pred_check
          %p599 = pneg %p171
        $region90: #{diffusion_transformer_forward.11} parent=71 // pred_check_branch
          %601 = sbr.rel (%p599) target = $region92
        $region91: #{diffusion_transformer_forward.11} parent=71 // pred_region
          %602 = dma.done [#allocation9], 16
        $region92: #{diffusion_transformer_forward.11} parent=71 // pred_fallthru
          _
        // Predicated region
        $region93: #{diffusion_transformer_forward.11} parent=71 // pred_check
          %p603 = pneg %p192
        $region94: #{diffusion_transformer_forward.11} parent=71 // pred_check_branch
          %605 = sbr.rel (%p603) target = $region96
        $region95: #{diffusion_transformer_forward.11} parent=71 // pred_region
          %606 = dma.done [#allocation12], 128
        $region96: #{diffusion_transformer_forward.11} parent=71 // pred_fallthru
          _
        // Predicated region
        $region97: #{diffusion_transformer_forward.11} parent=71 // pred_check
          %p607 = pneg %p213
        $region98: #{diffusion_transformer_forward.11} parent=71 // pred_check_branch
          %609 = sbr.rel (%p607) target = $region100
        $region99: #{diffusion_transformer_forward.11} parent=71 // pred_region
          %610 = dma.done [#allocation12], 16
        $region100: #{diffusion_transformer_forward.11} parent=71 // pred_fallthru
          _
        // Predicated region
        $region101: #{diffusion_transformer_forward.11} parent=71 // pred_check
          %p611 = pneg %p234
        $region102: #{diffusion_transformer_forward.11} parent=71 // pred_check_branch
          %613 = sbr.rel (%p611) target = $region104
        $region103: #{diffusion_transformer_forward.11} parent=71 // pred_region
          %614 = dma.done [#allocation15], 16
        $region104: #{diffusion_transformer_forward.11} parent=71 // pred_fallthru
          _
        // Predicated region
        $region105: #{diffusion_transformer_forward.11} parent=71 // pred_check
          %p615 = pneg %p255
        $region106: #{diffusion_transformer_forward.11} parent=71 // pred_check_branch
          %617 = sbr.rel (%p615) target = $region108
        $region107: #{diffusion_transformer_forward.11} parent=71 // pred_region
          %618 = dma.done [#allocation15], 16
        $region108: #{diffusion_transformer_forward.11} parent=71 // pred_fallthru
          _
        // Predicated region
        $region109: #{diffusion_transformer_forward.11} parent=71 // pred_check
          %p619 = pneg %p276
        $region110: #{diffusion_transformer_forward.11} parent=71 // pred_check_branch
          %621 = sbr.rel (%p619) target = $region112
        $region111: #{diffusion_transformer_forward.11} parent=71 // pred_region
          %622 = dma.done [#allocation18], 256
        $region112: #{diffusion_transformer_forward.11} parent=71 // pred_fallthru
          _
        // Predicated region
        $region113: #{diffusion_transformer_forward.11} parent=71 // pred_check
          %p623 = pneg %p297
        $region114: #{diffusion_transformer_forward.11} parent=71 // pred_check_branch
          %625 = sbr.rel (%p623) target = $region116
        $region115: #{diffusion_transformer_forward.11} parent=71 // pred_region
          %626 = dma.done [#allocation18], 16
        $region116: #{diffusion_transformer_forward.11} parent=71 // pred_fallthru
          _
        // Predicated region
        $region117: #{diffusion_transformer_forward.11} parent=71 // pred_check
          %p627 = pneg %p318
        $region118: #{diffusion_transformer_forward.11} parent=71 // pred_check_branch
          %629 = sbr.rel (%p627) target = $region120
        $region119: #{diffusion_transformer_forward.11} parent=71 // pred_region
          %630 = dma.done [#allocation21], 1024
        $region120: #{diffusion_transformer_forward.11} parent=71 // pred_fallthru
          _
        // Predicated region
        $region121: #{diffusion_transformer_forward.11} parent=71 // pred_check
          %p631 = pneg %p339
        $region122: #{diffusion_transformer_forward.11} parent=71 // pred_check_branch
          %633 = sbr.rel (%p631) target = $region124
        $region123: #{diffusion_transformer_forward.11} parent=71 // pred_region
          %634 = dma.done [#allocation21], 16
        $region124: #{diffusion_transformer_forward.11} parent=71 // pred_fallthru
          _
        %s635 = sand.u32 %s60, 1
        %s636 = scalar_lea.sflag [#allocation3], %s635
        %s637 = sand.u32 %s60, 1
        %s638 = smul.addr %s637, 8
        %s639 = scalar_lea.vmem [#allocation2], %s638
        %p640 = pneg %p73
        %p641 = pneg %p70
        %s642 = sand.u32 %s38, 1
        %s643 = scalar_lea.sflag [#allocation6], %s642
        %s644 = sand.u32 %s88, 1
        %s645 = smul.addr %s644, 4
        %s646 = scalar_lea.vmem [#allocation5], %s645
        %p647 = pneg %p101
        %p648 = pneg %p98
        %s649 = sand.u32 %s38, 1
        %s650 = scalar_lea.sflag [#allocation6], %s649
        %s651 = sand.u32 %s116, 1
        %s652 = smul.addr %s651, 8
        %s653 = scalar_lea.vmem [#allocation7], %s652
        %p654 = pneg %p129
        %p655 = pneg %p126
        %p656 = pneg %p150
        %p657 = pneg %p147
        %p658 = pneg %p171
        %p659 = pneg %p168
        %p660 = pneg %p192
        %p661 = pneg %p189
        %p662 = pneg %p213
        %p663 = pneg %p210
        %p664 = pneg %p234
        %p665 = pneg %p231
        %p666 = pneg %p255
        %p667 = pneg %p252
        %p668 = pneg %p276
        %p669 = pneg %p273
        %p670 = pneg %p297
        %p671 = pneg %p294
        %p672 = pneg %p318
        %p673 = pneg %p315
        %p674 = pneg %p339
        %p675 = pneg %p336
        %p676 = pneg %p367
        %p677 = pneg %p364
        %s678 = sand.u32 %s354, 1
        %s679 = scalar_lea.sflag [#allocation4], %s678
        %s680 = sand.u32 %s354, 1
        %s681 = smul.addr %s680, 8
        %s682 = scalar_lea.vmem [#allocation23], %s681
        %v684 = vld [vmem:[%s572] sm:$0xff]
        %v685 = vld [vmem:[%s581] sm:$0xf]
        %v686 = vld [vmem:[#allocation8] sm:$0xf]
        %v687 = vld [vmem:[#allocation8 + $0x4] sm:$0xf]
        %v688 = vld [vmem:[#allocation8 + $0x8] sm:$0xf]
        %v689 = vld [vmem:[#allocation8 + $0xc] sm:$0xf]
        %v690 = vld [vmem:[#allocation10] sm:$0x1]
        %v692 = vlaneseq
        %v693 = vshrl.u32 %v692, 7
        %v694 = vsub.s32 0, %v693
        %v695 = vrot.slane %v690, %v694
        %v701 = vunpack.c.l.b16 %v686
        %v702 = vunpack.c.l.b16 %v687
        %v703 = vunpack.c.l.b16 %v688
        %v704 = vunpack.c.l.b16 %v689
        %v705 = vpack.c.b16 %v702, %v701
        %v706 = vpack.c.b16 %v704, %v703
        %vm709 = vcmask 261120
        %v711 = vsel %vm709, %v685, 0
        %713 = vmatprep.subr.bf16.mxu0 0
        %714 = vmatpush1.bf16.msra.mxu0 %v705
        %715 = vmatprep.subr.bf16.mxu0 0
        %716 = vmatpush1.bf16.msra.mxu0 %v706
        %717 = vmatprep.subr.bf16.mxu0 0
        %718 = vmatpush1.bf16.msra.mxu0 0
        %719 = vmatprep.subr.bf16.mxu0 0
        %720 = vmatpush1.bf16.msra.mxu0 0
        %721 = vmatprep.subr.bf16.mxu0 0
        %722 = vmatpush1.bf16.msra.mxu0 0
        %723 = vmatprep.subr.bf16.mxu0 0
        %724 = vmatpush1.bf16.msra.mxu0 0
        %725 = vmatprep.subr.bf16.mxu0 0
        %726 = vmatpush1.bf16.msra.mxu0 0
        %727 = vmatprep.subr.bf16.mxu0 0
        %728 = vmatpush1.bf16.msra.mxu0 0
        %729 = vmatprep.subr.bf16.mxu0 0
        %730 = vmatpush1.bf16.msra.mxu0 0
        %731 = vmatprep.subr.bf16.mxu0 0
        %732 = vmatpush1.bf16.msra.mxu0 0
        %733 = vmatprep.subr.bf16.mxu0 0
        %734 = vmatpush1.bf16.msra.mxu0 0
        %735 = vmatprep.subr.bf16.mxu0 0
        %736 = vmatpush1.bf16.msra.mxu0 0
        %737 = vmatprep.subr.bf16.mxu0 0
        %738 = vmatpush1.bf16.msra.mxu0 0
        %739 = vmatprep.subr.bf16.mxu0 0
        %740 = vmatpush1.bf16.msra.mxu0 0
        %741 = vmatprep.subr.bf16.mxu0 0
        %742 = vmatpush1.bf16.msra.mxu0 0
        %743 = vmatprep.subr.bf16.mxu0 0
        %744 = vmatpush1.bf16.msra.mxu0 0
        %745 = vmatprep.mubr.bf16.mxu0 0
        %746 = vmatmul.mubr.bf16.gmra.mrb[0].mxu0 %v711
        %v747 = vpop.f32.mrb[0].mxu0
        %v748 = vadd.f32 %v695, %v747
        %v749 = vpop.f32.mrb[0].mxu0
        %v750 = vpop.f32.mrb[0].mxu0
        %v751 = vpop.f32.mrb[0].mxu0
        %752 = vdwg.mxu0
        %v753 = vld [vmem:[%s590] sm:$0xff]
        %v754 = vpack.c.bf16 %v753, %v753
        %v755 = vld [vmem:[#allocation11] sm:$0xf]
        %v756 = vld [vmem:[#allocation11 + $0x4] sm:$0xf]
        %v757 = vld [vmem:[#allocation13] sm:$0x1]
        %v759 = vlaneseq
        %v760 = vshrl.u32 %v759, 7
        %v761 = vsub.s32 0, %v760
        %v762 = vrot.slane %v757, %v761
        %v766 = vunpack.c.l.b16 %v755
        %v767 = vunpack.c.l.b16 %v756
        %v768 = vpack.c.b16 %v767, %v766
        %vm770 = vcmask 130048
        %v772 = vsel %vm770, %v754, 0
        %774 = vmatprep.subr.bf16.mxu0 0
        %775 = vmatpush1.bf16.msra.mxu0 %v768
        %776 = vmatprep.subr.bf16.mxu0 0
        %777 = vmatpush1.bf16.msra.mxu0 0
        %778 = vmatprep.subr.bf16.mxu0 0
        %779 = vmatpush1.bf16.msra.mxu0 0
        %780 = vmatprep.subr.bf16.mxu0 0
        %781 = vmatpush1.bf16.msra.mxu0 0
        %782 = vmatprep.subr.bf16.mxu0 0
        %783 = vmatpush1.bf16.msra.mxu0 0
        %784 = vmatprep.subr.bf16.mxu0 0
        %785 = vmatpush1.bf16.msra.mxu0 0
        %786 = vmatprep.subr.bf16.mxu0 0
        %787 = vmatpush1.bf16.msra.mxu0 0
        %788 = vmatprep.subr.bf16.mxu0 0
        %789 = vmatpush1.bf16.msra.mxu0 0
        %790 = vmatprep.subr.bf16.mxu0 0
        %791 = vmatpush1.bf16.msra.mxu0 0
        %792 = vmatprep.subr.bf16.mxu0 0
        %793 = vmatpush1.bf16.msra.mxu0 0
        %794 = vmatprep.subr.bf16.mxu0 0
        %795 = vmatpush1.bf16.msra.mxu0 0
        %796 = vmatprep.subr.bf16.mxu0 0
        %797 = vmatpush1.bf16.msra.mxu0 0
        %798 = vmatprep.subr.bf16.mxu0 0
        %799 = vmatpush1.bf16.msra.mxu0 0
        %800 = vmatprep.subr.bf16.mxu0 0
        %801 = vmatpush1.bf16.msra.mxu0 0
        %802 = vmatprep.subr.bf16.mxu0 0
        %803 = vmatpush1.bf16.msra.mxu0 0
        %804 = vmatprep.subr.bf16.mxu0 0
        %805 = vmatpush1.bf16.msra.mxu0 0
        %806 = vmatprep.mubr.bf16.mxu0 0
        %807 = vmatmul.mubr.bf16.gmra.mrb[0].mxu0 %v772
        %v808 = vpop.f32.mrb[0].mxu0
        %v809 = vadd.f32 %v762, %v808
        %v810 = vpop.f32.mrb[0].mxu0
        %v811 = vpop.f32.mrb[0].mxu0
        %v812 = vpop.f32.mrb[0].mxu0
        %813 = vdwg.mxu0
        %v814 = vadd.f32 %v684, %v748
        %v815 = vadd.f32 %v814, %v809
        %v816 = vsel %vm709, %v815, 0.0
        %817 = vadd.xlane.f32.xlu0 %v816
        %v818 = vpop.xlane.xlu0 %817
        %v819 = vrcp.pop 32.0
        %v820 = vmul.f32 %v818, %v819
        %v821 = vsub.f32 %v815, %v820
        %v822 = vmul.f32 %v821, %v821
        %v823 = vsel %vm709, %v822, 0.0
        %824 = vadd.xlane.f32.xlu0 %v823
        %v825 = vpop.xlane.xlu0 %824
        %v826 = vmul.f32 %v825, %v819
        %v827 = vadd.f32 %v826, 1e-05
        %v828 = vrsqrt.pop %v827
        %v829 = vmul.f32 %v821, %v828
        %v830 = vld [vmem:[#allocation14] sm:$0x1]
        %v832 = vlaneseq
        %v833 = vshrl.u32 %v832, 7
        %v834 = vsub.s32 0, %v833
        %v835 = vrot.slane %v830, %v834
        %v837 = vmul.f32 %v829, %v835
        %v838 = vld [vmem:[#allocation16] sm:$0x1]
        %v840 = vlaneseq
        %v841 = vshrl.u32 %v840, 7
        %v842 = vsub.s32 0, %v841
        %v843 = vrot.slane %v838, %v842
        %v845 = vadd.f32 %v837, %v843
        %v846 = vpack.c.bf16 %v845, %v845
        %v847 = vld [vmem:[#allocation17] sm:$0xf]
        %v848 = vld [vmem:[#allocation17 + $0x4] sm:$0xf]
        %v849 = vld [vmem:[#allocation17 + $0x8] sm:$0xf]
        %v850 = vld [vmem:[#allocation17 + $0xc] sm:$0xf]
        %v851 = vld [vmem:[#allocation19] sm:$0x1]
        %v853 = vlaneseq
        %v854 = vshrl.u32 %v853, 7
        %v855 = vsub.s32 0, %v854
        %v856 = vrot.slane %v851, %v855
        %v862 = vunpack.c.l.b16 %v847
        %v863 = vunpack.c.l.b16 %v848
        %v864 = vunpack.c.l.b16 %v849
        %v865 = vunpack.c.l.b16 %v850
        %v866 = vpack.c.b16 %v863, %v862
        %v867 = vpack.c.b16 %v865, %v864
        %v871 = vsel %vm709, %v846, 0
        %873 = vmatprep.subr.bf16.mxu0 0
        %874 = vmatpush1.bf16.msra.mxu0 %v866
        %875 = vmatprep.subr.bf16.mxu0 0
        %876 = vmatpush1.bf16.msra.mxu0 %v867
        %877 = vmatprep.subr.bf16.mxu0 0
        %878 = vmatpush1.bf16.msra.mxu0 0
        %879 = vmatprep.subr.bf16.mxu0 0
        %880 = vmatpush1.bf16.msra.mxu0 0
        %881 = vmatprep.subr.bf16.mxu0 0
        %882 = vmatpush1.bf16.msra.mxu0 0
        %883 = vmatprep.subr.bf16.mxu0 0
        %884 = vmatpush1.bf16.msra.mxu0 0
        %885 = vmatprep.subr.bf16.mxu0 0
        %886 = vmatpush1.bf16.msra.mxu0 0
        %887 = vmatprep.subr.bf16.mxu0 0
        %888 = vmatpush1.bf16.msra.mxu0 0
        %889 = vmatprep.subr.bf16.mxu0 0
        %890 = vmatpush1.bf16.msra.mxu0 0
        %891 = vmatprep.subr.bf16.mxu0 0
        %892 = vmatpush1.bf16.msra.mxu0 0
        %893 = vmatprep.subr.bf16.mxu0 0
        %894 = vmatpush1.bf16.msra.mxu0 0
        %895 = vmatprep.subr.bf16.mxu0 0
        %896 = vmatpush1.bf16.msra.mxu0 0
        %897 = vmatprep.subr.bf16.mxu0 0
        %898 = vmatpush1.bf16.msra.mxu0 0
        %899 = vmatprep.subr.bf16.mxu0 0
        %900 = vmatpush1.bf16.msra.mxu0 0
        %901 = vmatprep.subr.bf16.mxu0 0
        %902 = vmatpush1.bf16.msra.mxu0 0
        %903 = vmatprep.subr.bf16.mxu0 0
        %904 = vmatpush1.bf16.msra.mxu0 0
        %905 = vmatprep.mubr.bf16.mxu0 0
        %906 = vmatmul.mubr.bf16.gmra.mrb[0].mxu0 %v871
        %v907 = vpop.f32.mrb[0].mxu0
        %v908 = vadd.f32 %v856, %v907
        %v909 = vpop.f32.mrb[0].mxu0
        %v910 = vpop.f32.mrb[0].mxu0
        %v911 = vpop.f32.mrb[0].mxu0
        %912 = vdwg.mxu0
        %v913 = vmul.f32 %v908, 0.5
        %v914 = vmul.f32 %v908, 0.70710677
        %v915 = verf.f32.pop %v914
        %v916 = vadd.f32 %v915, 1.0
        %v917 = vmul.f32 %v913, %v916
        %v918 = vpack.c.bf16 %v917, %v917
        %v919 = vld [vmem:[#allocation20] sm:$0xf]
        %v920 = vld [vmem:[#allocation20 + $0x4] sm:$0xf]
        %v921 = vld [vmem:[#allocation20 + $0x8] sm:$0xf]
        %v922 = vld [vmem:[#allocation20 + $0xc] sm:$0xf]
        %v923 = vld [vmem:[#allocation20 + $0x10] sm:$0xf]
        %v924 = vld [vmem:[#allocation20 + $0x14] sm:$0xf]
        %v925 = vld [vmem:[#allocation20 + $0x18] sm:$0xf]
        %v926 = vld [vmem:[#allocation20 + $0x1c] sm:$0xf]
        %v927 = vld [vmem:[#allocation20 + $0x20] sm:$0xf]
        %v928 = vld [vmem:[#allocation20 + $0x24] sm:$0xf]
        %v929 = vld [vmem:[#allocation20 + $0x28] sm:$0xf]
        %v930 = vld [vmem:[#allocation20 + $0x2c] sm:$0xf]
        %v931 = vld [vmem:[#allocation20 + $0x30] sm:$0xf]
        %v932 = vld [vmem:[#allocation20 + $0x34] sm:$0xf]
        %v933 = vld [vmem:[#allocation20 + $0x38] sm:$0xf]
        %v934 = vld [vmem:[#allocation20 + $0x3c] sm:$0xf]
        %v951 = vunpack.c.l.b16 %v919
        %v952 = vunpack.c.l.b16 %v920
        %v953 = vunpack.c.l.b16 %v921
        %v954 = vunpack.c.l.b16 %v922
        %v955 = vunpack.c.l.b16 %v923
        %v956 = vunpack.c.l.b16 %v924
        %v957 = vunpack.c.l.b16 %v925
        %v958 = vunpack.c.l.b16 %v926
        %v959 = vunpack.c.l.b16 %v927
        %v960 = vunpack.c.l.b16 %v928
        %v961 = vunpack.c.l.b16 %v929
        %v962 = vunpack.c.l.b16 %v930
        %v963 = vunpack.c.l.b16 %v931
        %v964 = vunpack.c.l.b16 %v932
        %v965 = vunpack.c.l.b16 %v933
        %v966 = vunpack.c.l.b16 %v934
        %v967 = vpack.c.b16 %v952, %v951
        %v968 = vpack.c.b16 %v954, %v953
        %v969 = vpack.c.b16 %v956, %v955
        %v970 = vpack.c.b16 %v958, %v957
        %v971 = vpack.c.b16 %v960, %v959
        %v972 = vpack.c.b16 %v962, %v961
        %v973 = vpack.c.b16 %v964, %v963
        %v974 = vpack.c.b16 %v966, %v965
        %983 = vmatprep.subr.bf16.mxu0 0
        %984 = vmatpush1.bf16.msra.mxu0 %v967
        %985 = vmatprep.subr.bf16.mxu0 0
        %986 = vmatpush1.bf16.msra.mxu0 %v968
        %987 = vmatprep.subr.bf16.mxu0 0
        %988 = vmatpush1.bf16.msra.mxu0 %v969
        %989 = vmatprep.subr.bf16.mxu0 0
        %990 = vmatpush1.bf16.msra.mxu0 %v970
        %991 = vmatprep.subr.bf16.mxu0 0
        %992 = vmatpush1.bf16.msra.mxu0 %v971
        %993 = vmatprep.subr.bf16.mxu0 0
        %994 = vmatpush1.bf16.msra.mxu0 %v972
        %995 = vmatprep.subr.bf16.mxu0 0
        %996 = vmatpush1.bf16.msra.mxu0 %v973
        %997 = vmatprep.subr.bf16.mxu0 0
        %998 = vmatpush1.bf16.msra.mxu0 %v974
        %999 = vmatprep.subr.bf16.mxu0 0
        %1000 = vmatpush1.bf16.msra.mxu0 0
        %1001 = vmatprep.subr.bf16.mxu0 0
        %1002 = vmatpush1.bf16.msra.mxu0 0
        %1003 = vmatprep.subr.bf16.mxu0 0
        %1004 = vmatpush1.bf16.msra.mxu0 0
        %1005 = vmatprep.subr.bf16.mxu0 0
        %1006 = vmatpush1.bf16.msra.mxu0 0
        %1007 = vmatprep.subr.bf16.mxu0 0
        %1008 = vmatpush1.bf16.msra.mxu0 0
        %1009 = vmatprep.subr.bf16.mxu0 0
        %1010 = vmatpush1.bf16.msra.mxu0 0
        %1011 = vmatprep.subr.bf16.mxu0 0
        %1012 = vmatpush1.bf16.msra.mxu0 0
        %1013 = vmatprep.subr.bf16.mxu0 0
        %1014 = vmatpush1.bf16.msra.mxu0 0
        %1015 = vmatprep.mubr.bf16.mxu0 0
        %1016 = vmatmul.mubr.bf16.gmra.mrb[0].mxu0 %v918
        %v1017 = vpop.f32.mrb[0].mxu0
        %v1018 = vadd.f32 0.0, %v1017
        %v1019 = vpop.f32.mrb[0].mxu0
        %v1020 = vpop.f32.mrb[0].mxu0
        %v1021 = vpop.f32.mrb[0].mxu0
        %1022 = vdwg.mxu0
        %v1023 = vadd.f32 %v815, %v1018
        %v1024 = vld [vmem:[#allocation22] sm:$0x1]
        %v1026 = vlaneseq
        %v1027 = vshrl.u32 %v1026, 7
        %v1028 = vsub.s32 0, %v1027
        %v1029 = vrot.slane %v1024, %v1028
        %v1031 = vadd.f32 %v1023, %v1029
        %1032 = vst.msk [vmem:[%s682] sm:$0xff] %vm709, %v1031
        %s1033 = sand.u32 %s354, 1
        %s1034 = scalar_lea.sflag [#allocation4], %s1033
        %s1035 = sand.u32 %s354, 1
        %s1036 = smul.addr %s1035, 8
        %s1037 = scalar_lea.vmem [#allocation23], %s1036
        // Predicated region
        $region125: #{diffusion_transformer_forward.11} parent=71 // pred_check
          %p1038 = pneg %p364
        $region126: #{diffusion_transformer_forward.11} parent=71 // pred_check_branch
          %1040 = sbr.rel (%p1038) target = $region128
        $region127: #{diffusion_transformer_forward.11} parent=71 // pred_region
          %s1042 = ssub.s32 128, 128
          %1043 = vsyncadd %s1034, %s1042
          %s1044 = sadd.s32 %s43, %s42
          %s1045 = smul.addr %s1044, 128
          %s1046 = scalar_lea.hbm %s13, %s1045
          %s1048 = sshll.u32 %s1037, 4
          %s1049 = int_to_ptr.vmem [resolvable:$true] %s1048
          %1051 = dma.vmem_to_hbm [thread:$0]  %s1049, 128, %s1046, %s1034
        $region128: #{diffusion_transformer_forward.11} parent=71 // pred_fallthru
          _
      $region72: #{diffusion_transformer_forward.11} parent=5 // pred_fallthru
        _
      %p1052 = scmp.le.s32.totalorder 2, %s33
      // Predicated region
      $region129: #{diffusion_transformer_forward.11} parent=5 // pred_check
        %p1053 = pneg %p1052
      $region130: #{diffusion_transformer_forward.11} parent=5 // pred_check_branch
        %1055 = sbr.rel (%p1053) target = $region132
      $region131: #{diffusion_transformer_forward.11} parent=5 // pred_region
        %s1056 = ssub.s32 %s33, 2
        // Predicated region
        $region133: #{diffusion_transformer_forward.11} parent=131 // pred_check
          %p1057 = pneg %p370
        $region134: #{diffusion_transformer_forward.11} parent=131 // pred_check_branch
          %1059 = sbr.rel (%p1057) target = $region136
        $region135: #{diffusion_transformer_forward.11} parent=131 // pred_region
          %s1060 = sand.u32 %s355, 1
          %s1061 = scalar_lea.sflag [#allocation4], %s1060
          %s1062 = sand.u32 %s355, 1
          %s1063 = smul.addr %s1062, 8
          %s1064 = scalar_lea.vmem [#allocation23], %s1063
          %1065 = dma.done %s1061, 128
        $region136: #{diffusion_transformer_forward.11} parent=131 // pred_fallthru
          _
      $region132: #{diffusion_transformer_forward.11} parent=5 // pred_fallthru
        _
    $region6: #{diffusion_transformer_forward.11} parent=1 // loop_footer
      %s37 = sadd.s32 1, %s33
    $region7: #{diffusion_transformer_forward.11} parent=1 // loop_footer_branch
      %32 = sbr.rel target = $region3
    $region8: #{diffusion_transformer_forward.11} parent=1 // loop_exit
      _
    %1066 = vsyncpa [#allocation3], 1
    %s1067 = scalar_lea.sflag [#allocation3], 1
    %1068 = vsyncpa %s1067, 1
    %1069 = vsyncpa [#allocation6], 1
    %s1070 = scalar_lea.sflag [#allocation6], 1
    %1071 = vsyncpa %s1070, 1
    %1072 = vsyncpa [#allocation9], 1
    %1073 = vsyncpa [#allocation12], 1
    %1074 = vsyncpa [#allocation15], 1
    %1075 = vsyncpa [#allocation18], 1
    %1076 = vsyncpa [#allocation21], 1
    %1077 = vsyncpa [#allocation4], 1
    %s1078 = scalar_lea.sflag [#allocation4], 1
    %1079 = vsyncpa %s1078, 1

// kernel: diffusion_transformer_forward.15
$region0: #{diffusion_transformer_forward.15}
  #allocation0 [shape = 'u32[]', space=smem, size = 0x4, offset = 0x4, fixed_abs, tag = 'smem constant byte address 0x4 - core index']
  #allocation1 [shape = 'u32[144,128]{1,0:T(1,128)}', space=vmem, size = 0x12000, scoped, tag = 'internal scratch']
  %s0 = inlined_call_operand.hbm [shape: f32[2,8,32], index: 0, kind: input, shape index: {}]
  %s1 = inlined_call_operand.hbm [shape: f32[1,32], index: 1, kind: input, shape index: {}]
  %s2 = inlined_call_operand.hbm [shape: f32[1,32], index: 2, kind: input, shape index: {}]
  %s3 = inlined_call_operand.hbm [shape: bf16[8,32], index: 3, kind: input, shape index: {}]
  %s4 = inlined_call_operand.hbm [shape: f32[8,1], index: 4, kind: input, shape index: {}]
  %s5 = inlined_call_operand.hbm [shape: f32[2,8,8], index: 5, kind: output, shape index: {}]
  %s6 = sld [smem:[#allocation0]]
  $region73: #{diffusion_transformer_forward.15} parent=0
    _
  %s8 = ssub.s32 1, %s6
  %s9 = scalar_select 0, %s8, %s6
  $region1: #{diffusion_transformer_forward.15} parent=0
    #allocation2 [shape = 'u8[8192]{0}', space=vmem, size = 0x2000, scoped, tag = 'input window, operand 0']
    #allocation3 [shape = 's32[2]{0}', space=sflag, size = 0x8, scoped, tag = 'scoped memory for diffusion_transformer_forward.15']
    #allocation4 [shape = 's32[2]{0}', space=sflag, size = 0x8, scoped, tag = 'scoped memory for diffusion_transformer_forward.15']
    #allocation5 [shape = 'u8[512]{0}', space=vmem, size = 0x400, scoped, tag = 'input window, operand 1, single buffered']
    #allocation6 [shape = 's32[1]{0}', space=sflag, size = 0x4, scoped, tag = 'scoped memory for diffusion_transformer_forward.15']
    #allocation7 [shape = 'u8[512]{0}', space=vmem, size = 0x400, scoped, tag = 'input window, operand 2, single buffered']
    #allocation8 [shape = 'u8[2048]{0}', space=vmem, size = 0x800, scoped, tag = 'input window, operand 3, single buffered']
    #allocation9 [shape = 's32[1]{0}', space=sflag, size = 0x4, scoped, tag = 'scoped memory for diffusion_transformer_forward.15']
    #allocation10 [shape = 'u8[4096]{0}', space=vmem, size = 0x1000, scoped, tag = 'input window, operand 4, single buffered']
    #allocation11 [shape = 'u8[8192]{0}', space=vmem, size = 0x2000, scoped, tag = 'output window, operand 0']
    %10 = vsyncpa [#allocation3], 0
    %s11 = scalar_lea.sflag [#allocation3], 1
    %12 = vsyncpa %s11, 0
    %13 = vsyncpa [#allocation6], 0
    %14 = vsyncpa [#allocation9], 0
    %15 = vsyncpa [#allocation4], 0
    %s16 = scalar_lea.sflag [#allocation4], 1
    %17 = vsyncpa %s16, 0
    loop: start=0, step=1, limit=4
    $region2: #{diffusion_transformer_forward.15} parent=1 // loop_pre_header
      _
    $region3: #{diffusion_transformer_forward.15} parent=1 // loop_header
      %s19 = sphi 0, %s23
      %p20 = scmp.ge.s32.totalorder %s19, 4
      %s26 = sphi 0, %s38
      %s27 = sphi 0, %s34
      %s28 = sphi 0, %s26
      %s29 = sphi 0, %s27
      %s30 = sphi 0, %s28
      %s31 = sphi 0, %s29
      %s43 = sphi 0, %s45
      %s46 = sphi 0, %s43
      %s47 = sphi 0, %s46
      %s63 = sphi 0, %s47
      %s67 = sphi 0, %s67
      %s69 = sphi 0, %s67
      %s70 = sphi 0, %s69
      %s84 = sphi 0, %s70
      %s88 = sphi 0, %s88
      %s90 = sphi 0, %s88
      %s91 = sphi 0, %s90
      %s105 = sphi 0, %s91
      %s109 = sphi 0, %s109
      %s111 = sphi 0, %s109
      %s112 = sphi 0, %s111
      %s126 = sphi 0, %s112
      %s130 = sphi 0, %s130
      %s132 = sphi 0, %s130
      %s133 = sphi 0, %s132
      %s147 = sphi 0, %s133
      %s155 = sphi 0, %s157
      %s158 = sphi 0, %s155
      %s159 = sphi 0, %s158
      %s175 = sphi 0, %s159
    $region4: #{diffusion_transformer_forward.15} parent=1 // loop_header_branch
      %22 = sbr.rel (%p20) target = $region8
    $region5: #{diffusion_transformer_forward.15} parent=1 // loop_body
      %s24 = ssub.s32 %s19, 1
      %s25 = ssub.s32 %s19, 2
      %s32 = sadd.s32 1, %s27
      %p33 = scmp.ge.s32.totalorder %s32, 1
      %s34 = scalar_select %p33, 0, %s32
      %s35 = sadd.s32 1, %s26
      %s36 = scalar_select %p33, %s35, %s26
      %p37 = scmp.ge.s32.totalorder %s36, 2
      %s38 = scalar_select %p37, 0, %s36
      %s39 = ssub.s32 %s26, %s38
      %s40 = ssub.s32 %s27, %s34
      %s41 = sor.u32 %s39, %s40
      %p42 = scmp.eq.s32.totalorder %s41, 0
      %s44 = sadd.s32 %s43, 1
      %s45 = scalar_select %p42, %s43, %s44
      %p48 = pneg %p42
      %p49 = scmp.eq.s32.totalorder %s19, 1
      %p50 = por %p48, %p49
      %p51 = scmp.ne.s32.totalorder %s43, %s46
      %p52 = scmp.eq.s32.totalorder %s19, 0
      %p53 = por %p51, %p52
      %p54 = scmp.ne.s32.totalorder %s43, %s46
      %p55 = scmp.eq.s32.totalorder %s24, 1
      %p56 = por %p54, %p55
      %p57 = scmp.ne.s32.totalorder %s46, %s47
      %p58 = scmp.eq.s32.totalorder %s24, 0
      %p59 = por %p57, %p58
      %p60 = scmp.ne.s32.totalorder %s46, %s47
      %p61 = scmp.eq.s32.totalorder %s25, 1
      %p62 = por %p60, %p61
      %p64 = scmp.ne.s32.totalorder %s47, %s63
      %p65 = scmp.eq.s32.totalorder %s25, 0
      %p66 = por %p64, %p65
      %s68 = sadd.s32 %s67, 1
      %p71 = scmp.eq.s32.totalorder %s19, 1
      %p72 = scmp.ne.s32.totalorder %s67, %s69
      %p73 = scmp.eq.s32.totalorder %s19, 0
      %p74 = por %p72, %p73
      %p75 = scmp.ne.s32.totalorder %s67, %s69
      %p76 = scmp.eq.s32.totalorder %s24, 1
      %p77 = por %p75, %p76
      %p78 = scmp.ne.s32.totalorder %s69, %s70
      %p79 = scmp.eq.s32.totalorder %s24, 0
      %p80 = por %p78, %p79
      %p81 = scmp.ne.s32.totalorder %s69, %s70
      %p82 = scmp.eq.s32.totalorder %s25, 1
      %p83 = por %p81, %p82
      %p85 = scmp.ne.s32.totalorder %s70, %s84
      %p86 = scmp.eq.s32.totalorder %s25, 0
      %p87 = por %p85, %p86
      %s89 = sadd.s32 %s88, 1
      %p92 = scmp.eq.s32.totalorder %s19, 1
      %p93 = scmp.ne.s32.totalorder %s88, %s90
      %p94 = scmp.eq.s32.totalorder %s19, 0
      %p95 = por %p93, %p94
      %p96 = scmp.ne.s32.totalorder %s88, %s90
      %p97 = scmp.eq.s32.totalorder %s24, 1
      %p98 = por %p96, %p97
      %p99 = scmp.ne.s32.totalorder %s90, %s91
      %p100 = scmp.eq.s32.totalorder %s24, 0
      %p101 = por %p99, %p100
      %p102 = scmp.ne.s32.totalorder %s90, %s91
      %p103 = scmp.eq.s32.totalorder %s25, 1
      %p104 = por %p102, %p103
      %p106 = scmp.ne.s32.totalorder %s91, %s105
      %p107 = scmp.eq.s32.totalorder %s25, 0
      %p108 = por %p106, %p107
      %s110 = sadd.s32 %s109, 1
      %p113 = scmp.eq.s32.totalorder %s19, 1
      %p114 = scmp.ne.s32.totalorder %s109, %s111
      %p115 = scmp.eq.s32.totalorder %s19, 0
      %p116 = por %p114, %p115
      %p117 = scmp.ne.s32.totalorder %s109, %s111
      %p118 = scmp.eq.s32.totalorder %s24, 1
      %p119 = por %p117, %p118
      %p120 = scmp.ne.s32.totalorder %s111, %s112
      %p121 = scmp.eq.s32.totalorder %s24, 0
      %p122 = por %p120, %p121
      %p123 = scmp.ne.s32.totalorder %s111, %s112
      %p124 = scmp.eq.s32.totalorder %s25, 1
      %p125 = por %p123, %p124
      %p127 = scmp.ne.s32.totalorder %s112, %s126
      %p128 = scmp.eq.s32.totalorder %s25, 0
      %p129 = por %p127, %p128
      %s131 = sadd.s32 %s130, 1
      %p134 = scmp.eq.s32.totalorder %s19, 1
      %p135 = scmp.ne.s32.totalorder %s130, %s132
      %p136 = scmp.eq.s32.totalorder %s19, 0
      %p137 = por %p135, %p136
      %p138 = scmp.ne.s32.totalorder %s130, %s132
      %p139 = scmp.eq.s32.totalorder %s24, 1
      %p140 = por %p138, %p139
      %p141 = scmp.ne.s32.totalorder %s132, %s133
      %p142 = scmp.eq.s32.totalorder %s24, 0
      %p143 = por %p141, %p142
      %p144 = scmp.ne.s32.totalorder %s132, %s133
      %p145 = scmp.eq.s32.totalorder %s25, 1
      %p146 = por %p144, %p145
      %p148 = scmp.ne.s32.totalorder %s133, %s147
      %p149 = scmp.eq.s32.totalorder %s25, 0
      %p150 = por %p148, %p149
      %s151 = ssub.s32 %s26, %s38
      %s152 = ssub.s32 %s27, %s34
      %s153 = sor.u32 %s151, %s152
      %p154 = scmp.eq.s32.totalorder %s153, 0
      %s156 = sadd.s32 %s155, 1
      %s157 = scalar_select %p154, %s155, %s156
      %p160 = pneg %p154
      %p161 = scmp.eq.s32.totalorder %s19, 1
      %p162 = por %p160, %p161
      %p163 = scmp.ne.s32.totalorder %s155, %s158
      %p164 = scmp.eq.s32.totalorder %s19, 0
      %p165 = por %p163, %p164
      %p166 = scmp.ne.s32.totalorder %s155, %s158
      %p167 = scmp.eq.s32.totalorder %s24, 1
      %p168 = por %p166, %p167
      %p169 = scmp.ne.s32.totalorder %s158, %s159
      %p170 = scmp.eq.s32.totalorder %s24, 0
      %p171 = por %p169, %p170
      %p172 = scmp.ne.s32.totalorder %s158, %s159
      %p173 = scmp.eq.s32.totalorder %s25, 1
      %p174 = por %p172, %p173
      %p176 = scmp.ne.s32.totalorder %s159, %s175
      %p177 = scmp.eq.s32.totalorder %s25, 0
      %p178 = por %p176, %p177
      %p179 = scmp.le.s32.totalorder 1, %s19
      %p180 = scmp.lt.s32.totalorder %s19, 3
      %p181 = pnand %p179, %p180
      %p182 = pneg %p181
      // Predicated region
      $region9: #{diffusion_transformer_forward.15} parent=5 // pred_check
        _
      $region10: #{diffusion_transformer_forward.15} parent=5 // pred_check_branch
        %184 = sbr.rel (%p181) target = $region12
      $region11: #{diffusion_transformer_forward.15} parent=5 // pred_region
        %s185 = ssub.s32 %s19, 1
        // Predicated region
        $region13: #{diffusion_transformer_forward.15} parent=11 // pred_check
          %p186 = pneg %p80
        $region14: #{diffusion_transformer_forward.15} parent=11 // pred_check_branch
          %188 = sbr.rel (%p186) target = $region16
        $region15: #{diffusion_transformer_forward.15} parent=11 // pred_region
          %s190 = ssub.s32 16, 16
          %191 = vsyncadd [#allocation6], %s190
          %s193 = sshll.u32 [#allocation5], 4
          %s194 = int_to_ptr.vmem [resolvable:$true] %s193
          %196 = dma.hbm_to_vmem [thread:$0]  %s1, 16, %s194, [#allocation6]
        $region16: #{diffusion_transformer_forward.15} parent=11 // pred_fallthru
          _
        // Predicated region
        $region17: #{diffusion_transformer_forward.15} parent=11 // pred_check
          %p197 = pneg %p101
        $region18: #{diffusion_transformer_forward.15} parent=11 // pred_check_branch
          %199 = sbr.rel (%p197) target = $region20
        $region19: #{diffusion_transformer_forward.15} parent=11 // pred_region
          %s201 = ssub.s32 16, 16
          %202 = vsyncadd [#allocation6], %s201
          %s204 = sshll.u32 [#allocation7], 4
          %s205 = int_to_ptr.vmem [resolvable:$true] %s204
          %207 = dma.hbm_to_vmem [thread:$0]  %s2, 16, %s205, [#allocation6]
        $region20: #{diffusion_transformer_forward.15} parent=11 // pred_fallthru
          _
        // Predicated region
        $region21: #{diffusion_transformer_forward.15} parent=11 // pred_check
          %p208 = pneg %p122
        $region22: #{diffusion_transformer_forward.15} parent=11 // pred_check_branch
          %210 = sbr.rel (%p208) target = $region24
        $region23: #{diffusion_transformer_forward.15} parent=11 // pred_region
          %s212 = ssub.s32 64, 64
          %213 = vsyncadd [#allocation9], %s212
          %s215 = sshll.u32 [#allocation8], 4
          %s216 = int_to_ptr.vmem [resolvable:$true] %s215
          %218 = dma.hbm_to_vmem [thread:$0]  %s3, 64, %s216, [#allocation9]
        $region24: #{diffusion_transformer_forward.15} parent=11 // pred_fallthru
          _
        // Predicated region
        $region25: #{diffusion_transformer_forward.15} parent=11 // pred_check
          %p219 = pneg %p143
        $region26: #{diffusion_transformer_forward.15} parent=11 // pred_check_branch
          %221 = sbr.rel (%p219) target = $region28
        $region27: #{diffusion_transformer_forward.15} parent=11 // pred_region
          %s223 = ssub.s32 128, 128
          %224 = vsyncadd [#allocation9], %s223
          %s226 = sshll.u32 [#allocation10], 4
          %s227 = int_to_ptr.vmem [resolvable:$true] %s226
          %229 = dma.hbm_to_vmem [thread:$0]  %s4, 128, %s227, [#allocation9]
        $region28: #{diffusion_transformer_forward.15} parent=11 // pred_fallthru
          _
      $region12: #{diffusion_transformer_forward.15} parent=5 // pred_fallthru
        _
      %p230 = scmp.lt.s32.totalorder %s19, 2
      // Predicated region
      $region29: #{diffusion_transformer_forward.15} parent=5 // pred_check
        %p231 = pneg %p230
      $region30: #{diffusion_transformer_forward.15} parent=5 // pred_check_branch
        %233 = sbr.rel (%p231) target = $region32
      $region31: #{diffusion_transformer_forward.15} parent=5 // pred_region
        // Predicated region
        $region33: #{diffusion_transformer_forward.15} parent=31 // pred_check
          %p234 = pneg %p53
        $region34: #{diffusion_transformer_forward.15} parent=31 // pred_check_branch
          %236 = sbr.rel (%p234) target = $region36
        $region35: #{diffusion_transformer_forward.15} parent=31 // pred_region
          %s237 = sand.u32 %s43, 1
          %s238 = scalar_lea.sflag [#allocation3], %s237
          %s239 = sand.u32 %s43, 1
          %s240 = smul.addr %s239, 8
          %s241 = scalar_lea.vmem [#allocation2], %s240
          %s243 = ssub.s32 128, 128
          %244 = vsyncadd %s238, %s243
          %s245 = sadd.s32 %s27, %s26
          %s246 = smul.addr %s245, 128
          %s247 = scalar_lea.hbm %s0, %s246
          %s249 = sshll.u32 %s241, 4
          %s250 = int_to_ptr.vmem [resolvable:$true] %s249
          %252 = dma.hbm_to_vmem [thread:$0]  %s247, 128, %s250, %s238
        $region36: #{diffusion_transformer_forward.15} parent=31 // pred_fallthru
          _
      $region32: #{diffusion_transformer_forward.15} parent=5 // pred_fallthru
        _
      %p253 = scmp.le.s32.totalorder 1, %s19
      %p254 = scmp.lt.s32.totalorder %s19, 3
      %p255 = pnand %p253, %p254
      %p256 = pneg %p255
      // Predicated region
      $region37: #{diffusion_transformer_forward.15} parent=5 // pred_check
        _
      $region38: #{diffusion_transformer_forward.15} parent=5 // pred_check_branch
        %258 = sbr.rel (%p255) target = $region40
      $region39: #{diffusion_transformer_forward.15} parent=5 // pred_region
        %s259 = ssub.s32 %s19, 1
        %s260 = sand.u32 %s46, 1
        %s261 = scalar_lea.sflag [#allocation3], %s260
        %s262 = sand.u32 %s46, 1
        %s263 = smul.addr %s262, 8
        %s264 = scalar_lea.vmem [#allocation2], %s263
        // Predicated region
        $region41: #{diffusion_transformer_forward.15} parent=39 // pred_check
          %p265 = pneg %p59
        $region42: #{diffusion_transformer_forward.15} parent=39 // pred_check_branch
          %267 = sbr.rel (%p265) target = $region44
        $region43: #{diffusion_transformer_forward.15} parent=39 // pred_region
          %268 = dma.done %s261, 128
        $region44: #{diffusion_transformer_forward.15} parent=39 // pred_fallthru
          _
        // Predicated region
        $region45: #{diffusion_transformer_forward.15} parent=39 // pred_check
          %p269 = pneg %p80
        $region46: #{diffusion_transformer_forward.15} parent=39 // pred_check_branch
          %271 = sbr.rel (%p269) target = $region48
        $region47: #{diffusion_transformer_forward.15} parent=39 // pred_region
          %272 = dma.done [#allocation6], 16
        $region48: #{diffusion_transformer_forward.15} parent=39 // pred_fallthru
          _
        // Predicated region
        $region49: #{diffusion_transformer_forward.15} parent=39 // pred_check
          %p273 = pneg %p101
        $region50: #{diffusion_transformer_forward.15} parent=39 // pred_check_branch
          %275 = sbr.rel (%p273) target = $region52
        $region51: #{diffusion_transformer_forward.15} parent=39 // pred_region
          %276 = dma.done [#allocation6], 16
        $region52: #{diffusion_transformer_forward.15} parent=39 // pred_fallthru
          _
        // Predicated region
        $region53: #{diffusion_transformer_forward.15} parent=39 // pred_check
          %p277 = pneg %p122
        $region54: #{diffusion_transformer_forward.15} parent=39 // pred_check_branch
          %279 = sbr.rel (%p277) target = $region56
        $region55: #{diffusion_transformer_forward.15} parent=39 // pred_region
          %280 = dma.done [#allocation9], 64
        $region56: #{diffusion_transformer_forward.15} parent=39 // pred_fallthru
          _
        // Predicated region
        $region57: #{diffusion_transformer_forward.15} parent=39 // pred_check
          %p281 = pneg %p143
        $region58: #{diffusion_transformer_forward.15} parent=39 // pred_check_branch
          %283 = sbr.rel (%p281) target = $region60
        $region59: #{diffusion_transformer_forward.15} parent=39 // pred_region
          %284 = dma.done [#allocation9], 128
        $region60: #{diffusion_transformer_forward.15} parent=39 // pred_fallthru
          _
        %s285 = sand.u32 %s46, 1
        %s286 = scalar_lea.sflag [#allocation3], %s285
        %s287 = sand.u32 %s46, 1
        %s288 = smul.addr %s287, 8
        %s289 = scalar_lea.vmem [#allocation2], %s288
        %p290 = pneg %p59
        %p291 = pneg %p56
        %p292 = pneg %p80
        %p293 = pneg %p77
        %p294 = pneg %p101
        %p295 = pneg %p98
        %p296 = pneg %p122
        %p297 = pneg %p119
        %p298 = pneg %p143
        %p299 = pneg %p140
        %p300 = pneg %p171
        %p301 = pneg %p168
        %s302 = sand.u32 %s158, 1
        %s303 = scalar_lea.sflag [#allocation4], %s302
        %s304 = sand.u32 %s158, 1
        %s305 = smul.addr %s304, 8
        %s306 = scalar_lea.vmem [#allocation11], %s305
        %v308 = vld [vmem:[%s264] sm:$0xff]
        %vm309 = vcmask 261120
        %v310 = vsel %vm309, %v308, 0.0
        %311 = vadd.xlane.f32.xlu0 %v310
        %v312 = vpop.xlane.xlu0 %311
        %v313 = vrcp.pop 32.0
        %v314 = vmul.f32 %v312, %v313
        %v315 = vsub.f32 %v308, %v314
        %v316 = vmul.f32 %v315, %v315
        %v317 = vsel %vm309, %v316, 0.0
        %318 = vadd.xlane.f32.xlu0 %v317
        %v319 = vpop.xlane.xlu0 %318
        %v320 = vmul.f32 %v319, %v313
        %v321 = vadd.f32 %v320, 1e-05
        %v322 = vrsqrt.pop %v321
        %v323 = vmul.f32 %v315, %v322
        %v324 = vld [vmem:[#allocation5] sm:$0x1]
        %v326 = vlaneseq
        %v327 = vshrl.u32 %v326, 7
        %v328 = vsub.s32 0, %v327
        %v329 = vrot.slane %v324, %v328
        %v331 = vmul.f32 %v323, %v329
        %v332 = vld [vmem:[#allocation7] sm:$0x1]
        %v334 = vlaneseq
        %v335 = vshrl.u32 %v334, 7
        %v336 = vsub.s32 0, %v335
        %v337 = vrot.slane %v332, %v336
        %v339 = vadd.f32 %v331, %v337
        %v340 = vld [vmem:[#allocation8] sm:$0xf]
        %v341 = vpack.c.bf16 %v339, %v339
        %v342 = vld [vmem:[#allocation10] sm:$0xff]
        %344 = vset.pattern.permute.xlu0 0
        %345 = vperm.xlu0 %344, %v342
        %v346 = vpop.permute.xlu0 %345
        %v349 = vsel %vm309, %v340, 0
        %v352 = vsel %vm309, %v341, 0
        %354 = vmatprep.subr.bf16.mxu0 0
        %355 = vmatpush1.bf16.xpose.msra.mxu0 %v352
        %356 = vmatprep.subr.bf16.mxu0 0
        %357 = vmatpush1.bf16.xpose.msra.mxu0 0
        %358 = vmatprep.subr.bf16.mxu0 0
        %359 = vmatpush1.bf16.xpose.msra.mxu0 0
        %360 = vmatprep.subr.bf16.mxu0 0
        %361 = vmatpush1.bf16.xpose.msra.mxu0 0
        %362 = vmatprep.subr.bf16.mxu0 0
        %363 = vmatpush1.bf16.xpose.msra.mxu0 0
        %364 = vmatprep.subr.bf16.mxu0 0
        %365 = vmatpush1.bf16.xpose.msra.mxu0 0
        %366 = vmatprep.subr.bf16.mxu0 0
        %367 = vmatpush1.bf16.xpose.msra.mxu0 0
        %368 = vmatprep.subr.bf16.mxu0 0
        %369 = vmatpush1.bf16.xpose.msra.mxu0 0
        %370 = vmatprep.subr.bf16.mxu0 0
        %371 = vmatpush1.bf16.xpose.msra.mxu0 0
        %372 = vmatprep.subr.bf16.mxu0 0
        %373 = vmatpush1.bf16.xpose.msra.mxu0 0
        %374 = vmatprep.subr.bf16.mxu0 0
        %375 = vmatpush1.bf16.xpose.msra.mxu0 0
        %376 = vmatprep.subr.bf16.mxu0 0
        %377 = vmatpush1.bf16.xpose.msra.mxu0 0
        %378 = vmatprep.subr.bf16.mxu0 0
        %379 = vmatpush1.bf16.xpose.msra.mxu0 0
        %380 = vmatprep.subr.bf16.mxu0 0
        %381 = vmatpush1.bf16.xpose.msra.mxu0 0
        %382 = vmatprep.subr.bf16.mxu0 0
        %383 = vmatpush1.bf16.xpose.msra.mxu0 0
        %384 = vmatprep.subr.bf16.mxu0 0
        %385 = vmatpush1.bf16.xpose.msra.mxu0 0
        %386 = vmatprep.mubr.bf16.mxu0 0
        %387 = vmatmul.mubr.bf16.gmra.mrb[0].mxu0 %v349
        %v388 = vpop.f32.mrb[0].mxu0
        %v389 = vadd.f32 %v346, %v388
        %v390 = vpop.f32.mrb[0].mxu0
        %v391 = vpop.f32.mrb[0].mxu0
        %v392 = vpop.f32.mrb[0].mxu0
        %393 = vdwg.mxu0
        %vm394 = vcmask 64512
        %395 = vst.msk [vmem:[%s306] sm:$0xff] %vm394, %v389
        %s396 = sand.u32 %s158, 1
        %s397 = scalar_lea.sflag [#allocation4], %s396
        %s398 = sand.u32 %s158, 1
        %s399 = smul.addr %s398, 8
        %s400 = scalar_lea.vmem [#allocation11], %s399
        // Predicated region
        $region61: #{diffusion_transformer_forward.15} parent=39 // pred_check
          %p401 = pneg %p168
        $region62: #{diffusion_transformer_forward.15} parent=39 // pred_check_branch
          %403 = sbr.rel (%p401) target = $region64
        $region63: #{diffusion_transformer_forward.15} parent=39 // pred_region
          %s405 = ssub.s32 128, 128
          %406 = vsyncadd %s397, %s405
          %s407 = sadd.s32 %s29, %s28
          %s408 = smul.addr %s407, 128
          %s409 = scalar_lea.hbm %s5, %s408
          %s411 = sshll.u32 %s400, 4
          %s412 = int_to_ptr.vmem [resolvable:$true] %s411
          %414 = dma.vmem_to_hbm [thread:$0]  %s412, 128, %s409, %s397
        $region64: #{diffusion_transformer_forward.15} parent=39 // pred_fallthru
          _
      $region40: #{diffusion_transformer_forward.15} parent=5 // pred_fallthru
        _
      %p415 = scmp.le.s32.totalorder 2, %s19
      // Predicated region
      $region65: #{diffusion_transformer_forward.15} parent=5 // pred_check
        %p416 = pneg %p415
      $region66: #{diffusion_transformer_forward.15} parent=5 // pred_check_branch
        %418 = sbr.rel (%p416) target = $region68
      $region67: #{diffusion_transformer_forward.15} parent=5 // pred_region
        %s419 = ssub.s32 %s19, 2
        // Predicated region
        $region69: #{diffusion_transformer_forward.15} parent=67 // pred_check
          %p420 = pneg %p174
        $region70: #{diffusion_transformer_forward.15} parent=67 // pred_check_branch
          %422 = sbr.rel (%p420) target = $region72
        $region71: #{diffusion_transformer_forward.15} parent=67 // pred_region
          %s423 = sand.u32 %s159, 1
          %s424 = scalar_lea.sflag [#allocation4], %s423
          %s425 = sand.u32 %s159, 1
          %s426 = smul.addr %s425, 8
          %s427 = scalar_lea.vmem [#allocation11], %s426
          %428 = dma.done %s424, 128
        $region72: #{diffusion_transformer_forward.15} parent=67 // pred_fallthru
          _
      $region68: #{diffusion_transformer_forward.15} parent=5 // pred_fallthru
        _
    $region6: #{diffusion_transformer_forward.15} parent=1 // loop_footer
      %s23 = sadd.s32 1, %s19
    $region7: #{diffusion_transformer_forward.15} parent=1 // loop_footer_branch
      %18 = sbr.rel target = $region3
    $region8: #{diffusion_transformer_forward.15} parent=1 // loop_exit
      _
    %429 = vsyncpa [#allocation3], 1
    %s430 = scalar_lea.sflag [#allocation3], 1
    %431 = vsyncpa %s430, 1
    %432 = vsyncpa [#allocation6], 1
    %433 = vsyncpa [#allocation9], 1
    %434 = vsyncpa [#allocation4], 1
    %s435 = scalar_lea.sflag [#allocation4], 1
    %436 = vsyncpa %s435, 1

</llo_original>
